<compile_context>
chip_gen: v7x
topology: tpu7x:2x2x1
jax: 0.10.0
libtpu: 0.0.40
codegen_flags: <defaults>
</compile_context>

<pallas_src>
import math
import functools

import jax
import jax.numpy as jnp
from jax import lax
from jax.experimental import pallas as pl
from jax.experimental.pallas import tpu as pltpu  # noqa: F401  (TPU backend)

LN_EPS = 1e-5


# ----------------------------- shared math helpers ----------------------------
def _layernorm(x, gamma, beta):
    # PyTorch nn.LayerNorm semantics (biased variance, eps inside sqrt), f32.
    mu = jnp.mean(x, axis=-1, keepdims=True)
    var = jnp.mean((x - mu) ** 2, axis=-1, keepdims=True)
    return (x - mu) * lax.rsqrt(var + LN_EPS) * gamma + beta


def _gelu_tanh(x):
    # tanh-approx GELU: runs on the EUP slot instead of the erf VALU polynomial.
    # TODO(synk): nn.GELU() default is the exact erf form; tanh approx is a
    # small intentional numeric deviation taken for TPU performance.
    c = math.sqrt(2.0 / math.pi)
    return 0.5 * x * (1.0 + jnp.tanh(c * (x + 0.044715 * x * x * x)))


# ------------------------------- fused kernel --------------------------------
def fused_forward_kernel(
    x_ref, tokw_ref, tokb_ref,
    g_ref, b_ref, wqkv_ref, bqkv_ref, wo_ref, bo_ref,
    w1_ref, b1_ref, w2_ref, b2_ref,
    ng_ref, nb_ref, wc_ref, bc_ref,
    o_ref, *, B, S, D, depth,
):
    cdt = jnp.bfloat16

    # --- ColumnTokenizer on the whole (B*S, C*W) slab ---
    x = x_ref[...]                                              # (B*S, CW) f32
    h = (
        jnp.dot(x.astype(cdt), tokw_ref[...],
                preferred_element_type=jnp.float32)
        + tokb_ref[...]
    )                                                           # (B*S, D) f32

    # --- depth x SelfAttention (num_heads=1), statically unrolled ---
    for l in range(depth):
        g = g_ref[l]                                            # (1, D)
        bln = b_ref[l]                                          # (1, D)

        # pre-norm + single-head self-attention (1/sqrt(D) folded into W_q/b_q)
        xn = _layernorm(h, g, bln).astype(cdt)
        qkv = (
            jnp.dot(xn, wqkv_ref[l], preferred_element_type=jnp.float32)
            + bqkv_ref[l]
        )                                                       # (B*S, 3D) f32
        q = qkv[:, :D].astype(cdt).reshape(B, S, D)
        k = qkv[:, D:2 * D].astype(cdt).reshape(B, S, D)
        v = qkv[:, 2 * D:].astype(cdt).reshape(B, S, D)

        scores = jnp.einsum('bqd,bkd->bqk', q, k,
                            preferred_element_type=jnp.float32)  # (B, S, S)
        scores = scores - jnp.max(scores, axis=-1, keepdims=True)
        p = jnp.exp(scores)
        p = p * pl.reciprocal(jnp.sum(p, axis=-1, keepdims=True), approx=True)

        attn = jnp.einsum('bqk,bkd->bqd', p.astype(cdt), v,
                          preferred_element_type=jnp.float32)    # (B, S, D)
        attn = attn.reshape(B * S, D).astype(cdt)
        attn_out = (
            jnp.dot(attn, wo_ref[l], preferred_element_type=jnp.float32)
            + bo_ref[l]
        )
        h = h + attn_out

        # pre-norm (SelfAttention reuses the SAME LayerNorm for both branches,
        # matching the PyTorch module) + MLP
        xn = _layernorm(h, g, bln).astype(cdt)
        mid = _gelu_tanh(
            jnp.dot(xn, w1_ref[l], preferred_element_type=jnp.float32)
            + b1_ref[l]
        )
        mlp_out = (
            jnp.dot(mid.astype(cdt), w2_ref[l],
                    preferred_element_type=jnp.float32)
            + b2_ref[l]
        )
        h = h + mlp_out

    # --- final LayerNorm -> max over sequence (agg='max') -> classifier ---
    xn = _layernorm(h, ng_ref[...], nb_ref[...])                 # (B*S, D) f32
    pooled = jnp.max(xn.reshape(B, S, D), axis=1)                # (B, D)
    logits = (
        jnp.dot(pooled.astype(cdt), wc_ref[...],
                preferred_element_type=jnp.float32)
        + bc_ref[...]
    )                                                            # (B, NCP)
    o_ref[...] = logits


# --------------------------------- wrapper ------------------------------------
def baby_transformer_forward(x, params, *, n_classes):
    (tok_w, tok_b, g, bln, wqkv, bqkv, wo, bo,
     w1, b1, w2, b2, norm_g, norm_b, wc, bc) = params

    B, C, H, W = x.shape
    S = H
    CW = C * W
    D = tok_w.shape[1]
    depth = wqkv.shape[0]
    NCP = wc.shape[1]                 # lane-padded classifier width (128)

    # ColumnTokenizer glue: NCHW -> (B, H, C*W) -> (B*S, C*W) slab so every
    # projection matmul sees B*S rows (better MXU sublane occupancy, no grid).
    x_tok = jnp.transpose(x, (0, 2, 1, 3)).reshape(B * S, CW)

    kernel = functools.partial(fused_forward_kernel, B=B, S=S, D=D, depth=depth)

    # No grid, no BlockSpecs: every operand is a whole-array VMEM block and the
    # whole network runs in a single pipeline step (weights ~1.1 MiB bf16,
    # activations <100 KiB — far below the scoped VMEM limit on v5e/v6e/v7x).
    out = pl.pallas_call(
        kernel,
        out_shape=jax.ShapeDtypeStruct((B, NCP), jnp.float32),
    )(x_tok, tok_w, tok_b, g, bln, wqkv, bqkv, wo, bo,
      w1, b1, w2, b2, norm_g, norm_b, wc, bc)

    return out[:, :n_classes]


# ----------------------- pure-JAX reference (same numerics) -------------------
def baby_transformer_reference(x, params, *, n_classes):
    (tok_w, tok_b, g, bln, wqkv, bqkv, wo, bo,
     w1, b1, w2, b2, norm_g, norm_b, wc, bc) = params
    B, C, H, W = x.shape
    S, CW = H, C * W
    D = tok_w.shape[1]
    depth = wqkv.shape[0]
    cdt = jnp.bfloat16

    xt = jnp.transpose(x, (0, 2, 1, 3)).reshape(B * S, CW)
    h = jnp.dot(xt.astype(cdt), tok_w, preferred_element_type=jnp.float32) + tok_b
    for l in range(depth):
        xn = _layernorm(h, g[l], bln[l]).astype(cdt)
        qkv = jnp.dot(xn, wqkv[l], preferred_element_type=jnp.float32) + bqkv[l]
        q = qkv[:, :D].astype(cdt).reshape(B, S, D)
        k = qkv[:, D:2 * D].astype(cdt).reshape(B, S, D)
        v = qkv[:, 2 * D:].astype(cdt).reshape(B, S, D)
        s = jnp.einsum('bqd,bkd->bqk', q, k, preferred_element_type=jnp.float32)
        p = jax.nn.softmax(s, axis=-1)
        attn = jnp.einsum('bqk,bkd->bqd', p.astype(cdt), v,
                          preferred_element_type=jnp.float32).reshape(B * S, D)
        h = h + jnp.dot(attn.astype(cdt), wo[l],
                        preferred_element_type=jnp.float32) + bo[l]
        xn = _layernorm(h, g[l], bln[l]).astype(cdt)
        mid = _gelu_tanh(jnp.dot(xn, w1[l],
                                 preferred_element_type=jnp.float32) + b1[l])
        h = h + jnp.dot(mid.astype(cdt), w2[l],
                        preferred_element_type=jnp.float32) + b2[l]
    xn = _layernorm(h, norm_g, norm_b)
    pooled = jnp.max(xn.reshape(B, S, D), axis=1)
    logits = jnp.dot(pooled.astype(cdt), wc,
                     preferred_element_type=jnp.float32) + bc
    return logits[:, :n_classes]


# ------------------------------ parameter init --------------------------------
def init_params(key, *, C, W, D, n_classes, depth, mlp_ratio):
    # Deterministic synthetic weights.  Matmul weights stored pre-transposed as
    # (in_features, out_features), stacked over depth, cast to bf16 (MXU-native);
    # biases / LayerNorm params stay f32.  Classifier padded to 128 lanes.
    scale = 0.02
    wdt = jnp.bfloat16
    inv_sqrt_d = 1.0 / math.sqrt(D)
    keys = jax.random.split(key, 3 + depth)

    tok_w = (jax.random.normal(keys[0], (C * W, D), jnp.float32) * scale).astype(wdt)
    tok_b = jax.random.normal(keys[1], (1, D), jnp.float32) * scale

    gs, bs, wqkvs, bqkvs, wos, bos, w1s, b1s, w2s, b2s = ([] for _ in range(10))
    for l in range(depth):
        lk = jax.random.split(keys[2 + l], 8)
        gs.append(jnp.ones((1, D), jnp.float32))
        bs.append(jnp.zeros((1, D), jnp.float32))
        wqkv = jax.random.normal(lk[0], (D, 3 * D), jnp.float32) * scale
        bqkv = jax.random.normal(lk[1], (1, 3 * D), jnp.float32) * scale
        # Fold the 1/sqrt(D) attention scale into the Q projection (free at init).
        wqkv = wqkv.at[:, :D].multiply(inv_sqrt_d)
        bqkv = bqkv.at[:, :D].multiply(inv_sqrt_d)
        wqkvs.append(wqkv.astype(wdt))
        bqkvs.append(bqkv)
        wos.append((jax.random.normal(lk[2], (D, D), jnp.float32) * scale).astype(wdt))
        bos.append(jax.random.normal(lk[3], (1, D), jnp.float32) * scale)
        w1s.append((jax.random.normal(lk[4], (D, mlp_ratio * D), jnp.float32) * scale).astype(wdt))
        b1s.append(jax.random.normal(lk[5], (1, mlp_ratio * D), jnp.float32) * scale)
        w2s.append((jax.random.normal(lk[6], (mlp_ratio * D, D), jnp.float32) * scale).astype(wdt))
        b2s.append(jax.random.normal(lk[7], (1, D), jnp.float32) * scale)

    stack = lambda xs: jnp.stack(xs, axis=0)

    norm_g = jnp.ones((1, D), jnp.float32)
    norm_b = jnp.zeros((1, D), jnp.float32)

    NCP = 128  # lane-dense classifier output; real logits live in cols [:n_classes]
    kc = jax.random.split(keys[-1], 2)
    wc = jnp.zeros((D, NCP), jnp.float32).at[:, :n_classes].set(
        jax.random.normal(kc[0], (D, n_classes), jnp.float32) * scale
    ).astype(wdt)
    bc = jnp.zeros((1, NCP), jnp.float32).at[:, :n_classes].set(
        jax.random.normal(kc[1], (1, n_classes), jnp.float32) * scale
    )

    return (tok_w, tok_b, stack(gs), stack(bs), stack(wqkvs), stack(bqkvs),
            stack(wos), stack(bos), stack(w1s), stack(b1s), stack(w2s), stack(b2s),
            norm_g, norm_b, wc, bc)


# ----------------------------------- main --------------------------------------
if __name__ == "__main__":
    # BabyTransformer defaults: width=32, in_channels=1, hidden=128, classes=2,
    # depth=4, mlp_ratio=2, agg='max', tokenizer='mlp'.  H (=16) is the seq len.
    B, C, H, W = 2, 1, 16, 32
    D, n_classes, depth, mlp_ratio = 128, 2, 4, 2

    key = jax.random.PRNGKey(0)
    kx, kp = jax.random.split(key)
    x = jax.random.normal(kx, (B, C, H, W), jnp.float32)
    params = init_params(kp, C=C, W=W, D=D, n_classes=n_classes,
                         depth=depth, mlp_ratio=mlp_ratio)

    fwd = jax.jit(lambda xx: baby_transformer_forward(xx, params,
                                                      n_classes=n_classes))
    logits = fwd(x)
    jax.block_until_ready(logits)

    assert logits.shape == (B, n_classes) and logits.dtype == jnp.float32
    assert bool(jnp.all(jnp.isfinite(logits)))

    # Tolerance check against a pure-JAX reference with matched numerics
    # (bf16 MXU inputs, tanh GELU); kernel additionally uses approx reciprocal.
    ref = jax.jit(lambda xx: baby_transformer_reference(xx, params,
                                                        n_classes=n_classes))(x)
    jax.block_until_ready(ref)
    max_err = float(jnp.max(jnp.abs(logits - ref)))
    assert max_err < 5e-2, f"kernel vs reference max abs err {max_err}"

    print("KERNEL_OK")
</pallas_src>

<mosaic_0001>
module attributes {stable_mosaic.version = 11 : i64} {
  func.func @fused_forward_kernel(%arg0: memref<32x32xf32, #tpu.memory_space<vmem>>, %arg1: memref<32x128xbf16, #tpu.memory_space<vmem>>, %arg2: memref<1x128xf32, #tpu.memory_space<vmem>>, %arg3: memref<4x1x128xf32, #tpu.memory_space<vmem>>, %arg4: memref<4x1x128xf32, #tpu.memory_space<vmem>>, %arg5: memref<4x128x384xbf16, #tpu.memory_space<vmem>>, %arg6: memref<4x1x384xf32, #tpu.memory_space<vmem>>, %arg7: memref<4x128x128xbf16, #tpu.memory_space<vmem>>, %arg8: memref<4x1x128xf32, #tpu.memory_space<vmem>>, %arg9: memref<4x128x256xbf16, #tpu.memory_space<vmem>>, %arg10: memref<4x1x256xf32, #tpu.memory_space<vmem>>, %arg11: memref<4x256x128xbf16, #tpu.memory_space<vmem>>, %arg12: memref<4x1x128xf32, #tpu.memory_space<vmem>>, %arg13: memref<1x128xf32, #tpu.memory_space<vmem>>, %arg14: memref<1x128xf32, #tpu.memory_space<vmem>>, %arg15: memref<128x128xbf16, #tpu.memory_space<vmem>>, %arg16: memref<1x128xf32, #tpu.memory_space<vmem>>, %arg17: memref<2x128xf32, #tpu.memory_space<vmem>>) attributes {dimension_semantics = [], scalar_prefetch = 0 : i64, scratch_operands = 0 : i64, tpu.core_type = #tpu.core_type<tc>} {
    %c0 = arith.constant 0 : index
    %c0_0 = arith.constant 0 : index
    %0 = vector.load %arg0[%c0, %c0_0] : memref<32x32xf32, #tpu.memory_space<vmem>>, vector<32x32xf32>
    %1 = arith.truncf %0 : vector<32x32xf32> to vector<32x32xbf16>
    %c0_1 = arith.constant 0 : index
    %c0_2 = arith.constant 0 : index
    %2 = vector.load %arg1[%c0_1, %c0_2] : memref<32x128xbf16, #tpu.memory_space<vmem>>, vector<32x128xbf16>
    %cst = arith.constant dense<0.000000e+00> : vector<32x128xf32>
    %3 = tpu.matmul %1, %2, %cst {dimension_numbers = #tpu.dot_dimension_numbers<[1], [0], [0], [1], [0, 0, 1, 1], [], []>} : vector<32x32xbf16>, vector<32x128xbf16>, vector<32x128xf32> -> vector<32x128xf32>
    %c0_3 = arith.constant 0 : index
    %c0_4 = arith.constant 0 : index
    %4 = vector.load %arg2[%c0_3, %c0_4] : memref<1x128xf32, #tpu.memory_space<vmem>>, vector<1x128xf32>
    %5 = vector.broadcast %4 : vector<1x128xf32> to vector<32x128xf32>
    %6 = arith.addf %3, %5 : vector<32x128xf32>
    %c0_5 = arith.constant 0 : index
    %c0_6 = arith.constant 0 : index
    %c0_7 = arith.constant 0 : index
    %7 = vector.load %arg3[%c0_5, %c0_6, %c0_7] : memref<4x1x128xf32, #tpu.memory_space<vmem>>, vector<1x1x128xf32>
    %8 = vector.shape_cast %7 : vector<1x1x128xf32> to vector<1x128xf32>
    %c0_8 = arith.constant 0 : index
    %c0_9 = arith.constant 0 : index
    %c0_10 = arith.constant 0 : index
    %9 = vector.load %arg4[%c0_8, %c0_9, %c0_10] : memref<4x1x128xf32, #tpu.memory_space<vmem>>, vector<1x1x128xf32>
    %10 = vector.shape_cast %9 : vector<1x1x128xf32> to vector<1x128xf32>
    %cst_11 = arith.constant dense<0.000000e+00> : vector<32xf32>
    %11 = vector.multi_reduction <add>, %6, %cst_11 [1] : vector<32x128xf32> to vector<32xf32>
    %12 = vector.shape_cast %11 : vector<32xf32> to vector<32x1xf32>
    %cst_12 = arith.constant 1.280000e+02 : f32
    %13 = vector.broadcast %cst_12 : f32 to vector<32x1xf32>
    %14 = arith.divf %12, %13 : vector<32x1xf32>
    %15 = vector.broadcast %14 : vector<32x1xf32> to vector<32x128xf32>
    %16 = arith.subf %6, %15 : vector<32x128xf32>
    %17 = arith.mulf %16, %16 : vector<32x128xf32>
    %cst_13 = arith.constant dense<0.000000e+00> : vector<32xf32>
    %18 = vector.multi_reduction <add>, %17, %cst_13 [1] : vector<32x128xf32> to vector<32xf32>
    %19 = vector.shape_cast %18 : vector<32xf32> to vector<32x1xf32>
    %cst_14 = arith.constant 1.280000e+02 : f32
    %20 = vector.broadcast %cst_14 : f32 to vector<32x1xf32>
    %21 = arith.divf %19, %20 : vector<32x1xf32>
    %22 = vector.broadcast %14 : vector<32x1xf32> to vector<32x128xf32>
    %23 = arith.subf %6, %22 : vector<32x128xf32>
    %cst_15 = arith.constant 9.99999974E-6 : f32
    %24 = vector.broadcast %cst_15 : f32 to vector<32x1xf32>
    %25 = arith.addf %21, %24 : vector<32x1xf32>
    %26 = math.rsqrt %25 : vector<32x1xf32>
    %27 = vector.broadcast %26 : vector<32x1xf32> to vector<32x128xf32>
    %28 = arith.mulf %23, %27 : vector<32x128xf32>
    %29 = vector.broadcast %8 : vector<1x128xf32> to vector<32x128xf32>
    %30 = arith.mulf %28, %29 : vector<32x128xf32>
    %31 = vector.broadcast %10 : vector<1x128xf32> to vector<32x128xf32>
    %32 = arith.addf %30, %31 : vector<32x128xf32>
    %33 = arith.truncf %32 : vector<32x128xf32> to vector<32x128xbf16>
    %c0_16 = arith.constant 0 : index
    %c0_17 = arith.constant 0 : index
    %c0_18 = arith.constant 0 : index
    %34 = vector.load %arg5[%c0_16, %c0_17, %c0_18] : memref<4x128x384xbf16, #tpu.memory_space<vmem>>, vector<1x128x384xbf16>
    %35 = vector.shape_cast %34 : vector<1x128x384xbf16> to vector<128x384xbf16>
    %cst_19 = arith.constant dense<0.000000e+00> : vector<32x384xf32>
    %36 = tpu.matmul %33, %35, %cst_19 {dimension_numbers = #tpu.dot_dimension_numbers<[1], [0], [0], [1], [0, 0, 1, 1], [], []>} : vector<32x128xbf16>, vector<128x384xbf16>, vector<32x384xf32> -> vector<32x384xf32>
    %c0_20 = arith.constant 0 : index
    %c0_21 = arith.constant 0 : index
    %c0_22 = arith.constant 0 : index
    %37 = vector.load %arg6[%c0_20, %c0_21, %c0_22] : memref<4x1x384xf32, #tpu.memory_space<vmem>>, vector<1x1x384xf32>
    %38 = vector.shape_cast %37 : vector<1x1x384xf32> to vector<1x384xf32>
    %39 = vector.broadcast %38 : vector<1x384xf32> to vector<32x384xf32>
    %40 = arith.addf %36, %39 : vector<32x384xf32>
    %41 = vector.extract_strided_slice %40 {offsets = [0, 0], sizes = [32, 128], strides = [1, 1]} : vector<32x384xf32> to vector<32x128xf32>
    %42 = arith.truncf %41 : vector<32x128xf32> to vector<32x128xbf16>
    %43 = vector.shape_cast %42 : vector<32x128xbf16> to vector<2x16x128xbf16>
    %44 = vector.extract_strided_slice %40 {offsets = [0, 128], sizes = [32, 128], strides = [1, 1]} : vector<32x384xf32> to vector<32x128xf32>
    %45 = arith.truncf %44 : vector<32x128xf32> to vector<32x128xbf16>
    %46 = vector.shape_cast %45 : vector<32x128xbf16> to vector<2x16x128xbf16>
    %47 = vector.extract_strided_slice %40 {offsets = [0, 256], sizes = [32, 128], strides = [1, 1]} : vector<32x384xf32> to vector<32x128xf32>
    %48 = arith.truncf %47 : vector<32x128xf32> to vector<32x128xbf16>
    %49 = vector.shape_cast %48 : vector<32x128xbf16> to vector<2x16x128xbf16>
    "tpu.trace_start"() <{level = 10 : i32, message = "bqd,bkd->bqk"}> : () -> ()
    %cst_23 = arith.constant dense<0.000000e+00> : vector<2x16x16xf32>
    %50 = tpu.matmul %43, %46, %cst_23 {dimension_numbers = #tpu.dot_dimension_numbers<[2], [2], [1], [1], [0, 0, 0, 1, 1, 1], [0], [0]>} : vector<2x16x128xbf16>, vector<2x16x128xbf16>, vector<2x16x16xf32> -> vector<2x16x16xf32>
    "tpu.trace_stop"() : () -> ()
    %cst_24 = arith.constant dense<0xFF800000> : vector<2x16xf32>
    %51 = vector.multi_reduction <maximumf>, %50, %cst_24 [2] : vector<2x16x16xf32> to vector<2x16xf32>
    %52 = vector.shape_cast %51 : vector<2x16xf32> to vector<2x16x1xf32>
    %53 = vector.broadcast %52 : vector<2x16x1xf32> to vector<2x16x16xf32>
    %54 = arith.subf %50, %53 : vector<2x16x16xf32>
    %55 = math.exp %54 : vector<2x16x16xf32>
    %cst_25 = arith.constant dense<0.000000e+00> : vector<2x16xf32>
    %56 = vector.multi_reduction <add>, %55, %cst_25 [2] : vector<2x16x16xf32> to vector<2x16xf32>
    %57 = vector.shape_cast %56 : vector<2x16xf32> to vector<2x16x1xf32>
    %58 = tpu.reciprocal %57 {approx = true} : vector<2x16x1xf32> -> vector<2x16x1xf32>
    %59 = vector.broadcast %58 : vector<2x16x1xf32> to vector<2x16x16xf32>
    %60 = arith.mulf %55, %59 : vector<2x16x16xf32>
    %61 = arith.truncf %60 : vector<2x16x16xf32> to vector<2x16x16xbf16>
    "tpu.trace_start"() <{level = 10 : i32, message = "bqk,bkd->bqd"}> : () -> ()
    %cst_26 = arith.constant dense<0.000000e+00> : vector<2x16x128xf32>
    %62 = tpu.matmul %61, %49, %cst_26 {dimension_numbers = #tpu.dot_dimension_numbers<[2], [1], [1], [2], [0, 0, 0, 1, 1, 2], [0], [0]>} : vector<2x16x16xbf16>, vector<2x16x128xbf16>, vector<2x16x128xf32> -> vector<2x16x128xf32>
    "tpu.trace_stop"() : () -> ()
    %63 = vector.shape_cast %62 : vector<2x16x128xf32> to vector<32x128xf32>
    %64 = arith.truncf %63 : vector<32x128xf32> to vector<32x128xbf16>
    %c0_27 = arith.constant 0 : index
    %c0_28 = arith.constant 0 : index
    %c0_29 = arith.constant 0 : index
    %65 = vector.load %arg7[%c0_27, %c0_28, %c0_29] : memref<4x128x128xbf16, #tpu.memory_space<vmem>>, vector<1x128x128xbf16>
    %66 = vector.shape_cast %65 : vector<1x128x128xbf16> to vector<128x128xbf16>
    %cst_30 = arith.constant dense<0.000000e+00> : vector<32x128xf32>
    %67 = tpu.matmul %64, %66, %cst_30 {dimension_numbers = #tpu.dot_dimension_numbers<[1], [0], [0], [1], [0, 0, 1, 1], [], []>} : vector<32x128xbf16>, vector<128x128xbf16>, vector<32x128xf32> -> vector<32x128xf32>
    %c0_31 = arith.constant 0 : index
    %c0_32 = arith.constant 0 : index
    %c0_33 = arith.constant 0 : index
    %68 = vector.load %arg8[%c0_31, %c0_32, %c0_33] : memref<4x1x128xf32, #tpu.memory_space<vmem>>, vector<1x1x128xf32>
    %69 = vector.shape_cast %68 : vector<1x1x128xf32> to vector<1x128xf32>
    %70 = vector.broadcast %69 : vector<1x128xf32> to vector<32x128xf32>
    %71 = arith.addf %67, %70 : vector<32x128xf32>
    %72 = arith.addf %6, %71 : vector<32x128xf32>
    %cst_34 = arith.constant dense<0.000000e+00> : vector<32xf32>
    %73 = vector.multi_reduction <add>, %72, %cst_34 [1] : vector<32x128xf32> to vector<32xf32>
    %74 = vector.shape_cast %73 : vector<32xf32> to vector<32x1xf32>
    %cst_35 = arith.constant 1.280000e+02 : f32
    %75 = vector.broadcast %cst_35 : f32 to vector<32x1xf32>
    %76 = arith.divf %74, %75 : vector<32x1xf32>
    %77 = vector.broadcast %76 : vector<32x1xf32> to vector<32x128xf32>
    %78 = arith.subf %72, %77 : vector<32x128xf32>
    %79 = arith.mulf %78, %78 : vector<32x128xf32>
    %cst_36 = arith.constant dense<0.000000e+00> : vector<32xf32>
    %80 = vector.multi_reduction <add>, %79, %cst_36 [1] : vector<32x128xf32> to vector<32xf32>
    %81 = vector.shape_cast %80 : vector<32xf32> to vector<32x1xf32>
    %cst_37 = arith.constant 1.280000e+02 : f32
    %82 = vector.broadcast %cst_37 : f32 to vector<32x1xf32>
    %83 = arith.divf %81, %82 : vector<32x1xf32>
    %84 = vector.broadcast %76 : vector<32x1xf32> to vector<32x128xf32>
    %85 = arith.subf %72, %84 : vector<32x128xf32>
    %cst_38 = arith.constant 9.99999974E-6 : f32
    %86 = vector.broadcast %cst_38 : f32 to vector<32x1xf32>
    %87 = arith.addf %83, %86 : vector<32x1xf32>
    %88 = math.rsqrt %87 : vector<32x1xf32>
    %89 = vector.broadcast %88 : vector<32x1xf32> to vector<32x128xf32>
    %90 = arith.mulf %85, %89 : vector<32x128xf32>
    %91 = vector.broadcast %8 : vector<1x128xf32> to vector<32x128xf32>
    %92 = arith.mulf %90, %91 : vector<32x128xf32>
    %93 = vector.broadcast %10 : vector<1x128xf32> to vector<32x128xf32>
    %94 = arith.addf %92, %93 : vector<32x128xf32>
    %95 = arith.truncf %94 : vector<32x128xf32> to vector<32x128xbf16>
    %c0_39 = arith.constant 0 : index
    %c0_40 = arith.constant 0 : index
    %c0_41 = arith.constant 0 : index
    %96 = vector.load %arg9[%c0_39, %c0_40, %c0_41] : memref<4x128x256xbf16, #tpu.memory_space<vmem>>, vector<1x128x256xbf16>
    %97 = vector.shape_cast %96 : vector<1x128x256xbf16> to vector<128x256xbf16>
    %cst_42 = arith.constant dense<0.000000e+00> : vector<32x256xf32>
    %98 = tpu.matmul %95, %97, %cst_42 {dimension_numbers = #tpu.dot_dimension_numbers<[1], [0], [0], [1], [0, 0, 1, 1], [], []>} : vector<32x128xbf16>, vector<128x256xbf16>, vector<32x256xf32> -> vector<32x256xf32>
    %c0_43 = arith.constant 0 : index
    %c0_44 = arith.constant 0 : index
    %c0_45 = arith.constant 0 : index
    %99 = vector.load %arg10[%c0_43, %c0_44, %c0_45] : memref<4x1x256xf32, #tpu.memory_space<vmem>>, vector<1x1x256xf32>
    %100 = vector.shape_cast %99 : vector<1x1x256xf32> to vector<1x256xf32>
    %101 = vector.broadcast %100 : vector<1x256xf32> to vector<32x256xf32>
    %102 = arith.addf %98, %101 : vector<32x256xf32>
    %cst_46 = arith.constant 5.000000e-01 : f32
    %103 = vector.broadcast %cst_46 : f32 to vector<32x256xf32>
    %104 = arith.mulf %103, %102 : vector<32x256xf32>
    %cst_47 = arith.constant 4.471500e-02 : f32
    %105 = vector.broadcast %cst_47 : f32 to vector<32x256xf32>
    %106 = arith.mulf %105, %102 : vector<32x256xf32>
    %107 = arith.mulf %106, %102 : vector<32x256xf32>
    %108 = arith.mulf %107, %102 : vector<32x256xf32>
    %109 = arith.addf %102, %108 : vector<32x256xf32>
    %cst_48 = arith.constant 0.797884583 : f32
    %110 = vector.broadcast %cst_48 : f32 to vector<32x256xf32>
    %111 = arith.mulf %110, %109 : vector<32x256xf32>
    %112 = math.tanh %111 : vector<32x256xf32>
    %cst_49 = arith.constant 1.000000e+00 : f32
    %113 = vector.broadcast %cst_49 : f32 to vector<32x256xf32>
    %114 = arith.addf %113, %112 : vector<32x256xf32>
    %115 = arith.mulf %104, %114 : vector<32x256xf32>
    %116 = arith.truncf %115 : vector<32x256xf32> to vector<32x256xbf16>
    %c0_50 = arith.constant 0 : index
    %c0_51 = arith.constant 0 : index
    %c0_52 = arith.constant 0 : index
    %117 = vector.load %arg11[%c0_50, %c0_51, %c0_52] : memref<4x256x128xbf16, #tpu.memory_space<vmem>>, vector<1x256x128xbf16>
    %118 = vector.shape_cast %117 : vector<1x256x128xbf16> to vector<256x128xbf16>
    %cst_53 = arith.constant dense<0.000000e+00> : vector<32x128xf32>
    %119 = tpu.matmul %116, %118, %cst_53 {dimension_numbers = #tpu.dot_dimension_numbers<[1], [0], [0], [1], [0, 0, 1, 1], [], []>} : vector<32x256xbf16>, vector<256x128xbf16>, vector<32x128xf32> -> vector<32x128xf32>
    %c0_54 = arith.constant 0 : index
    %c0_55 = arith.constant 0 : index
    %c0_56 = arith.constant 0 : index
    %120 = vector.load %arg12[%c0_54, %c0_55, %c0_56] : memref<4x1x128xf32, #tpu.memory_space<vmem>>, vector<1x1x128xf32>
    %121 = vector.shape_cast %120 : vector<1x1x128xf32> to vector<1x128xf32>
    %122 = vector.broadcast %121 : vector<1x128xf32> to vector<32x128xf32>
    %123 = arith.addf %119, %122 : vector<32x128xf32>
    %124 = arith.addf %72, %123 : vector<32x128xf32>
    %c1 = arith.constant 1 : index
    %c0_57 = arith.constant 0 : index
    %c0_58 = arith.constant 0 : index
    %125 = vector.load %arg3[%c1, %c0_57, %c0_58] : memref<4x1x128xf32, #tpu.memory_space<vmem>>, vector<1x1x128xf32>
    %126 = vector.shape_cast %125 : vector<1x1x128xf32> to vector<1x128xf32>
    %c1_59 = arith.constant 1 : index
    %c0_60 = arith.constant 0 : index
    %c0_61 = arith.constant 0 : index
    %127 = vector.load %arg4[%c1_59, %c0_60, %c0_61] : memref<4x1x128xf32, #tpu.memory_space<vmem>>, vector<1x1x128xf32>
    %128 = vector.shape_cast %127 : vector<1x1x128xf32> to vector<1x128xf32>
    %cst_62 = arith.constant dense<0.000000e+00> : vector<32xf32>
    %129 = vector.multi_reduction <add>, %124, %cst_62 [1] : vector<32x128xf32> to vector<32xf32>
    %130 = vector.shape_cast %129 : vector<32xf32> to vector<32x1xf32>
    %cst_63 = arith.constant 1.280000e+02 : f32
    %131 = vector.broadcast %cst_63 : f32 to vector<32x1xf32>
    %132 = arith.divf %130, %131 : vector<32x1xf32>
    %133 = vector.broadcast %132 : vector<32x1xf32> to vector<32x128xf32>
    %134 = arith.subf %124, %133 : vector<32x128xf32>
    %135 = arith.mulf %134, %134 : vector<32x128xf32>
    %cst_64 = arith.constant dense<0.000000e+00> : vector<32xf32>
    %136 = vector.multi_reduction <add>, %135, %cst_64 [1] : vector<32x128xf32> to vector<32xf32>
    %137 = vector.shape_cast %136 : vector<32xf32> to vector<32x1xf32>
    %cst_65 = arith.constant 1.280000e+02 : f32
    %138 = vector.broadcast %cst_65 : f32 to vector<32x1xf32>
    %139 = arith.divf %137, %138 : vector<32x1xf32>
    %140 = vector.broadcast %132 : vector<32x1xf32> to vector<32x128xf32>
    %141 = arith.subf %124, %140 : vector<32x128xf32>
    %cst_66 = arith.constant 9.99999974E-6 : f32
    %142 = vector.broadcast %cst_66 : f32 to vector<32x1xf32>
    %143 = arith.addf %139, %142 : vector<32x1xf32>
    %144 = math.rsqrt %143 : vector<32x1xf32>
    %145 = vector.broadcast %144 : vector<32x1xf32> to vector<32x128xf32>
    %146 = arith.mulf %141, %145 : vector<32x128xf32>
    %147 = vector.broadcast %126 : vector<1x128xf32> to vector<32x128xf32>
    %148 = arith.mulf %146, %147 : vector<32x128xf32>
    %149 = vector.broadcast %128 : vector<1x128xf32> to vector<32x128xf32>
    %150 = arith.addf %148, %149 : vector<32x128xf32>
    %151 = arith.truncf %150 : vector<32x128xf32> to vector<32x128xbf16>
    %c1_67 = arith.constant 1 : index
    %c0_68 = arith.constant 0 : index
    %c0_69 = arith.constant 0 : index
    %152 = vector.load %arg5[%c1_67, %c0_68, %c0_69] : memref<4x128x384xbf16, #tpu.memory_space<vmem>>, vector<1x128x384xbf16>
    %153 = vector.shape_cast %152 : vector<1x128x384xbf16> to vector<128x384xbf16>
    %cst_70 = arith.constant dense<0.000000e+00> : vector<32x384xf32>
    %154 = tpu.matmul %151, %153, %cst_70 {dimension_numbers = #tpu.dot_dimension_numbers<[1], [0], [0], [1], [0, 0, 1, 1], [], []>} : vector<32x128xbf16>, vector<128x384xbf16>, vector<32x384xf32> -> vector<32x384xf32>
    %c1_71 = arith.constant 1 : index
    %c0_72 = arith.constant 0 : index
    %c0_73 = arith.constant 0 : index
    %155 = vector.load %arg6[%c1_71, %c0_72, %c0_73] : memref<4x1x384xf32, #tpu.memory_space<vmem>>, vector<1x1x384xf32>
    %156 = vector.shape_cast %155 : vector<1x1x384xf32> to vector<1x384xf32>
    %157 = vector.broadcast %156 : vector<1x384xf32> to vector<32x384xf32>
    %158 = arith.addf %154, %157 : vector<32x384xf32>
    %159 = vector.extract_strided_slice %158 {offsets = [0, 0], sizes = [32, 128], strides = [1, 1]} : vector<32x384xf32> to vector<32x128xf32>
    %160 = arith.truncf %159 : vector<32x128xf32> to vector<32x128xbf16>
    %161 = vector.shape_cast %160 : vector<32x128xbf16> to vector<2x16x128xbf16>
    %162 = vector.extract_strided_slice %158 {offsets = [0, 128], sizes = [32, 128], strides = [1, 1]} : vector<32x384xf32> to vector<32x128xf32>
    %163 = arith.truncf %162 : vector<32x128xf32> to vector<32x128xbf16>
    %164 = vector.shape_cast %163 : vector<32x128xbf16> to vector<2x16x128xbf16>
    %165 = vector.extract_strided_slice %158 {offsets = [0, 256], sizes = [32, 128], strides = [1, 1]} : vector<32x384xf32> to vector<32x128xf32>
    %166 = arith.truncf %165 : vector<32x128xf32> to vector<32x128xbf16>
    %167 = vector.shape_cast %166 : vector<32x128xbf16> to vector<2x16x128xbf16>
    "tpu.trace_start"() <{level = 10 : i32, message = "bqd,bkd->bqk"}> : () -> ()
    %cst_74 = arith.constant dense<0.000000e+00> : vector<2x16x16xf32>
    %168 = tpu.matmul %161, %164, %cst_74 {dimension_numbers = #tpu.dot_dimension_numbers<[2], [2], [1], [1], [0, 0, 0, 1, 1, 1], [0], [0]>} : vector<2x16x128xbf16>, vector<2x16x128xbf16>, vector<2x16x16xf32> -> vector<2x16x16xf32>
    "tpu.trace_stop"() : () -> ()
    %cst_75 = arith.constant dense<0xFF800000> : vector<2x16xf32>
    %169 = vector.multi_reduction <maximumf>, %168, %cst_75 [2] : vector<2x16x16xf32> to vector<2x16xf32>
    %170 = vector.shape_cast %169 : vector<2x16xf32> to vector<2x16x1xf32>
    %171 = vector.broadcast %170 : vector<2x16x1xf32> to vector<2x16x16xf32>
    %172 = arith.subf %168, %171 : vector<2x16x16xf32>
    %173 = math.exp %172 : vector<2x16x16xf32>
    %cst_76 = arith.constant dense<0.000000e+00> : vector<2x16xf32>
    %174 = vector.multi_reduction <add>, %173, %cst_76 [2] : vector<2x16x16xf32> to vector<2x16xf32>
    %175 = vector.shape_cast %174 : vector<2x16xf32> to vector<2x16x1xf32>
    %176 = tpu.reciprocal %175 {approx = true} : vector<2x16x1xf32> -> vector<2x16x1xf32>
    %177 = vector.broadcast %176 : vector<2x16x1xf32> to vector<2x16x16xf32>
    %178 = arith.mulf %173, %177 : vector<2x16x16xf32>
    %179 = arith.truncf %178 : vector<2x16x16xf32> to vector<2x16x16xbf16>
    "tpu.trace_start"() <{level = 10 : i32, message = "bqk,bkd->bqd"}> : () -> ()
    %cst_77 = arith.constant dense<0.000000e+00> : vector<2x16x128xf32>
    %180 = tpu.matmul %179, %167, %cst_77 {dimension_numbers = #tpu.dot_dimension_numbers<[2], [1], [1], [2], [0, 0, 0, 1, 1, 2], [0], [0]>} : vector<2x16x16xbf16>, vector<2x16x128xbf16>, vector<2x16x128xf32> -> vector<2x16x128xf32>
    "tpu.trace_stop"() : () -> ()
    %181 = vector.shape_cast %180 : vector<2x16x128xf32> to vector<32x128xf32>
    %182 = arith.truncf %181 : vector<32x128xf32> to vector<32x128xbf16>
    %c1_78 = arith.constant 1 : index
    %c0_79 = arith.constant 0 : index
    %c0_80 = arith.constant 0 : index
    %183 = vector.load %arg7[%c1_78, %c0_79, %c0_80] : memref<4x128x128xbf16, #tpu.memory_space<vmem>>, vector<1x128x128xbf16>
    %184 = vector.shape_cast %183 : vector<1x128x128xbf16> to vector<128x128xbf16>
    %cst_81 = arith.constant dense<0.000000e+00> : vector<32x128xf32>
    %185 = tpu.matmul %182, %184, %cst_81 {dimension_numbers = #tpu.dot_dimension_numbers<[1], [0], [0], [1], [0, 0, 1, 1], [], []>} : vector<32x128xbf16>, vector<128x128xbf16>, vector<32x128xf32> -> vector<32x128xf32>
    %c1_82 = arith.constant 1 : index
    %c0_83 = arith.constant 0 : index
    %c0_84 = arith.constant 0 : index
    %186 = vector.load %arg8[%c1_82, %c0_83, %c0_84] : memref<4x1x128xf32, #tpu.memory_space<vmem>>, vector<1x1x128xf32>
    %187 = vector.shape_cast %186 : vector<1x1x128xf32> to vector<1x128xf32>
    %188 = vector.broadcast %187 : vector<1x128xf32> to vector<32x128xf32>
    %189 = arith.addf %185, %188 : vector<32x128xf32>
    %190 = arith.addf %124, %189 : vector<32x128xf32>
    %cst_85 = arith.constant dense<0.000000e+00> : vector<32xf32>
    %191 = vector.multi_reduction <add>, %190, %cst_85 [1] : vector<32x128xf32> to vector<32xf32>
    %192 = vector.shape_cast %191 : vector<32xf32> to vector<32x1xf32>
    %cst_86 = arith.constant 1.280000e+02 : f32
    %193 = vector.broadcast %cst_86 : f32 to vector<32x1xf32>
    %194 = arith.divf %192, %193 : vector<32x1xf32>
    %195 = vector.broadcast %194 : vector<32x1xf32> to vector<32x128xf32>
    %196 = arith.subf %190, %195 : vector<32x128xf32>
    %197 = arith.mulf %196, %196 : vector<32x128xf32>
    %cst_87 = arith.constant dense<0.000000e+00> : vector<32xf32>
    %198 = vector.multi_reduction <add>, %197, %cst_87 [1] : vector<32x128xf32> to vector<32xf32>
    %199 = vector.shape_cast %198 : vector<32xf32> to vector<32x1xf32>
    %cst_88 = arith.constant 1.280000e+02 : f32
    %200 = vector.broadcast %cst_88 : f32 to vector<32x1xf32>
    %201 = arith.divf %199, %200 : vector<32x1xf32>
    %202 = vector.broadcast %194 : vector<32x1xf32> to vector<32x128xf32>
    %203 = arith.subf %190, %202 : vector<32x128xf32>
    %cst_89 = arith.constant 9.99999974E-6 : f32
    %204 = vector.broadcast %cst_89 : f32 to vector<32x1xf32>
    %205 = arith.addf %201, %204 : vector<32x1xf32>
    %206 = math.rsqrt %205 : vector<32x1xf32>
    %207 = vector.broadcast %206 : vector<32x1xf32> to vector<32x128xf32>
    %208 = arith.mulf %203, %207 : vector<32x128xf32>
    %209 = vector.broadcast %126 : vector<1x128xf32> to vector<32x128xf32>
    %210 = arith.mulf %208, %209 : vector<32x128xf32>
    %211 = vector.broadcast %128 : vector<1x128xf32> to vector<32x128xf32>
    %212 = arith.addf %210, %211 : vector<32x128xf32>
    %213 = arith.truncf %212 : vector<32x128xf32> to vector<32x128xbf16>
    %c1_90 = arith.constant 1 : index
    %c0_91 = arith.constant 0 : index
    %c0_92 = arith.constant 0 : index
    %214 = vector.load %arg9[%c1_90, %c0_91, %c0_92] : memref<4x128x256xbf16, #tpu.memory_space<vmem>>, vector<1x128x256xbf16>
    %215 = vector.shape_cast %214 : vector<1x128x256xbf16> to vector<128x256xbf16>
    %cst_93 = arith.constant dense<0.000000e+00> : vector<32x256xf32>
    %216 = tpu.matmul %213, %215, %cst_93 {dimension_numbers = #tpu.dot_dimension_numbers<[1], [0], [0], [1], [0, 0, 1, 1], [], []>} : vector<32x128xbf16>, vector<128x256xbf16>, vector<32x256xf32> -> vector<32x256xf32>
    %c1_94 = arith.constant 1 : index
    %c0_95 = arith.constant 0 : index
    %c0_96 = arith.constant 0 : index
    %217 = vector.load %arg10[%c1_94, %c0_95, %c0_96] : memref<4x1x256xf32, #tpu.memory_space<vmem>>, vector<1x1x256xf32>
    %218 = vector.shape_cast %217 : vector<1x1x256xf32> to vector<1x256xf32>
    %219 = vector.broadcast %218 : vector<1x256xf32> to vector<32x256xf32>
    %220 = arith.addf %216, %219 : vector<32x256xf32>
    %cst_97 = arith.constant 5.000000e-01 : f32
    %221 = vector.broadcast %cst_97 : f32 to vector<32x256xf32>
    %222 = arith.mulf %221, %220 : vector<32x256xf32>
    %cst_98 = arith.constant 4.471500e-02 : f32
    %223 = vector.broadcast %cst_98 : f32 to vector<32x256xf32>
    %224 = arith.mulf %223, %220 : vector<32x256xf32>
    %225 = arith.mulf %224, %220 : vector<32x256xf32>
    %226 = arith.mulf %225, %220 : vector<32x256xf32>
    %227 = arith.addf %220, %226 : vector<32x256xf32>
    %cst_99 = arith.constant 0.797884583 : f32
    %228 = vector.broadcast %cst_99 : f32 to vector<32x256xf32>
    %229 = arith.mulf %228, %227 : vector<32x256xf32>
    %230 = math.tanh %229 : vector<32x256xf32>
    %cst_100 = arith.constant 1.000000e+00 : f32
    %231 = vector.broadcast %cst_100 : f32 to vector<32x256xf32>
    %232 = arith.addf %231, %230 : vector<32x256xf32>
    %233 = arith.mulf %222, %232 : vector<32x256xf32>
    %234 = arith.truncf %233 : vector<32x256xf32> to vector<32x256xbf16>
    %c1_101 = arith.constant 1 : index
    %c0_102 = arith.constant 0 : index
    %c0_103 = arith.constant 0 : index
    %235 = vector.load %arg11[%c1_101, %c0_102, %c0_103] : memref<4x256x128xbf16, #tpu.memory_space<vmem>>, vector<1x256x128xbf16>
    %236 = vector.shape_cast %235 : vector<1x256x128xbf16> to vector<256x128xbf16>
    %cst_104 = arith.constant dense<0.000000e+00> : vector<32x128xf32>
    %237 = tpu.matmul %234, %236, %cst_104 {dimension_numbers = #tpu.dot_dimension_numbers<[1], [0], [0], [1], [0, 0, 1, 1], [], []>} : vector<32x256xbf16>, vector<256x128xbf16>, vector<32x128xf32> -> vector<32x128xf32>
    %c1_105 = arith.constant 1 : index
    %c0_106 = arith.constant 0 : index
    %c0_107 = arith.constant 0 : index
    %238 = vector.load %arg12[%c1_105, %c0_106, %c0_107] : memref<4x1x128xf32, #tpu.memory_space<vmem>>, vector<1x1x128xf32>
    %239 = vector.shape_cast %238 : vector<1x1x128xf32> to vector<1x128xf32>
    %240 = vector.broadcast %239 : vector<1x128xf32> to vector<32x128xf32>
    %241 = arith.addf %237, %240 : vector<32x128xf32>
    %242 = arith.addf %190, %241 : vector<32x128xf32>
    %c2 = arith.constant 2 : index
    %c0_108 = arith.constant 0 : index
    %c0_109 = arith.constant 0 : index
    %243 = vector.load %arg3[%c2, %c0_108, %c0_109] : memref<4x1x128xf32, #tpu.memory_space<vmem>>, vector<1x1x128xf32>
    %244 = vector.shape_cast %243 : vector<1x1x128xf32> to vector<1x128xf32>
    %c2_110 = arith.constant 2 : index
    %c0_111 = arith.constant 0 : index
    %c0_112 = arith.constant 0 : index
    %245 = vector.load %arg4[%c2_110, %c0_111, %c0_112] : memref<4x1x128xf32, #tpu.memory_space<vmem>>, vector<1x1x128xf32>
    %246 = vector.shape_cast %245 : vector<1x1x128xf32> to vector<1x128xf32>
    %cst_113 = arith.constant dense<0.000000e+00> : vector<32xf32>
    %247 = vector.multi_reduction <add>, %242, %cst_113 [1] : vector<32x128xf32> to vector<32xf32>
    %248 = vector.shape_cast %247 : vector<32xf32> to vector<32x1xf32>
    %cst_114 = arith.constant 1.280000e+02 : f32
    %249 = vector.broadcast %cst_114 : f32 to vector<32x1xf32>
    %250 = arith.divf %248, %249 : vector<32x1xf32>
    %251 = vector.broadcast %250 : vector<32x1xf32> to vector<32x128xf32>
    %252 = arith.subf %242, %251 : vector<32x128xf32>
    %253 = arith.mulf %252, %252 : vector<32x128xf32>
    %cst_115 = arith.constant dense<0.000000e+00> : vector<32xf32>
    %254 = vector.multi_reduction <add>, %253, %cst_115 [1] : vector<32x128xf32> to vector<32xf32>
    %255 = vector.shape_cast %254 : vector<32xf32> to vector<32x1xf32>
    %cst_116 = arith.constant 1.280000e+02 : f32
    %256 = vector.broadcast %cst_116 : f32 to vector<32x1xf32>
    %257 = arith.divf %255, %256 : vector<32x1xf32>
    %258 = vector.broadcast %250 : vector<32x1xf32> to vector<32x128xf32>
    %259 = arith.subf %242, %258 : vector<32x128xf32>
    %cst_117 = arith.constant 9.99999974E-6 : f32
    %260 = vector.broadcast %cst_117 : f32 to vector<32x1xf32>
    %261 = arith.addf %257, %260 : vector<32x1xf32>
    %262 = math.rsqrt %261 : vector<32x1xf32>
    %263 = vector.broadcast %262 : vector<32x1xf32> to vector<32x128xf32>
    %264 = arith.mulf %259, %263 : vector<32x128xf32>
    %265 = vector.broadcast %244 : vector<1x128xf32> to vector<32x128xf32>
    %266 = arith.mulf %264, %265 : vector<32x128xf32>
    %267 = vector.broadcast %246 : vector<1x128xf32> to vector<32x128xf32>
    %268 = arith.addf %266, %267 : vector<32x128xf32>
    %269 = arith.truncf %268 : vector<32x128xf32> to vector<32x128xbf16>
    %c2_118 = arith.constant 2 : index
    %c0_119 = arith.constant 0 : index
    %c0_120 = arith.constant 0 : index
    %270 = vector.load %arg5[%c2_118, %c0_119, %c0_120] : memref<4x128x384xbf16, #tpu.memory_space<vmem>>, vector<1x128x384xbf16>
    %271 = vector.shape_cast %270 : vector<1x128x384xbf16> to vector<128x384xbf16>
    %cst_121 = arith.constant dense<0.000000e+00> : vector<32x384xf32>
    %272 = tpu.matmul %269, %271, %cst_121 {dimension_numbers = #tpu.dot_dimension_numbers<[1], [0], [0], [1], [0, 0, 1, 1], [], []>} : vector<32x128xbf16>, vector<128x384xbf16>, vector<32x384xf32> -> vector<32x384xf32>
    %c2_122 = arith.constant 2 : index
    %c0_123 = arith.constant 0 : index
    %c0_124 = arith.constant 0 : index
    %273 = vector.load %arg6[%c2_122, %c0_123, %c0_124] : memref<4x1x384xf32, #tpu.memory_space<vmem>>, vector<1x1x384xf32>
    %274 = vector.shape_cast %273 : vector<1x1x384xf32> to vector<1x384xf32>
    %275 = vector.broadcast %274 : vector<1x384xf32> to vector<32x384xf32>
    %276 = arith.addf %272, %275 : vector<32x384xf32>
    %277 = vector.extract_strided_slice %276 {offsets = [0, 0], sizes = [32, 128], strides = [1, 1]} : vector<32x384xf32> to vector<32x128xf32>
    %278 = arith.truncf %277 : vector<32x128xf32> to vector<32x128xbf16>
    %279 = vector.shape_cast %278 : vector<32x128xbf16> to vector<2x16x128xbf16>
    %280 = vector.extract_strided_slice %276 {offsets = [0, 128], sizes = [32, 128], strides = [1, 1]} : vector<32x384xf32> to vector<32x128xf32>
    %281 = arith.truncf %280 : vector<32x128xf32> to vector<32x128xbf16>
    %282 = vector.shape_cast %281 : vector<32x128xbf16> to vector<2x16x128xbf16>
    %283 = vector.extract_strided_slice %276 {offsets = [0, 256], sizes = [32, 128], strides = [1, 1]} : vector<32x384xf32> to vector<32x128xf32>
    %284 = arith.truncf %283 : vector<32x128xf32> to vector<32x128xbf16>
    %285 = vector.shape_cast %284 : vector<32x128xbf16> to vector<2x16x128xbf16>
    "tpu.trace_start"() <{level = 10 : i32, message = "bqd,bkd->bqk"}> : () -> ()
    %cst_125 = arith.constant dense<0.000000e+00> : vector<2x16x16xf32>
    %286 = tpu.matmul %279, %282, %cst_125 {dimension_numbers = #tpu.dot_dimension_numbers<[2], [2], [1], [1], [0, 0, 0, 1, 1, 1], [0], [0]>} : vector<2x16x128xbf16>, vector<2x16x128xbf16>, vector<2x16x16xf32> -> vector<2x16x16xf32>
    "tpu.trace_stop"() : () -> ()
    %cst_126 = arith.constant dense<0xFF800000> : vector<2x16xf32>
    %287 = vector.multi_reduction <maximumf>, %286, %cst_126 [2] : vector<2x16x16xf32> to vector<2x16xf32>
    %288 = vector.shape_cast %287 : vector<2x16xf32> to vector<2x16x1xf32>
    %289 = vector.broadcast %288 : vector<2x16x1xf32> to vector<2x16x16xf32>
    %290 = arith.subf %286, %289 : vector<2x16x16xf32>
    %291 = math.exp %290 : vector<2x16x16xf32>
    %cst_127 = arith.constant dense<0.000000e+00> : vector<2x16xf32>
    %292 = vector.multi_reduction <add>, %291, %cst_127 [2] : vector<2x16x16xf32> to vector<2x16xf32>
    %293 = vector.shape_cast %292 : vector<2x16xf32> to vector<2x16x1xf32>
    %294 = tpu.reciprocal %293 {approx = true} : vector<2x16x1xf32> -> vector<2x16x1xf32>
    %295 = vector.broadcast %294 : vector<2x16x1xf32> to vector<2x16x16xf32>
    %296 = arith.mulf %291, %295 : vector<2x16x16xf32>
    %297 = arith.truncf %296 : vector<2x16x16xf32> to vector<2x16x16xbf16>
    "tpu.trace_start"() <{level = 10 : i32, message = "bqk,bkd->bqd"}> : () -> ()
    %cst_128 = arith.constant dense<0.000000e+00> : vector<2x16x128xf32>
    %298 = tpu.matmul %297, %285, %cst_128 {dimension_numbers = #tpu.dot_dimension_numbers<[2], [1], [1], [2], [0, 0, 0, 1, 1, 2], [0], [0]>} : vector<2x16x16xbf16>, vector<2x16x128xbf16>, vector<2x16x128xf32> -> vector<2x16x128xf32>
    "tpu.trace_stop"() : () -> ()
    %299 = vector.shape_cast %298 : vector<2x16x128xf32> to vector<32x128xf32>
    %300 = arith.truncf %299 : vector<32x128xf32> to vector<32x128xbf16>
    %c2_129 = arith.constant 2 : index
    %c0_130 = arith.constant 0 : index
    %c0_131 = arith.constant 0 : index
    %301 = vector.load %arg7[%c2_129, %c0_130, %c0_131] : memref<4x128x128xbf16, #tpu.memory_space<vmem>>, vector<1x128x128xbf16>
    %302 = vector.shape_cast %301 : vector<1x128x128xbf16> to vector<128x128xbf16>
    %cst_132 = arith.constant dense<0.000000e+00> : vector<32x128xf32>
    %303 = tpu.matmul %300, %302, %cst_132 {dimension_numbers = #tpu.dot_dimension_numbers<[1], [0], [0], [1], [0, 0, 1, 1], [], []>} : vector<32x128xbf16>, vector<128x128xbf16>, vector<32x128xf32> -> vector<32x128xf32>
    %c2_133 = arith.constant 2 : index
    %c0_134 = arith.constant 0 : index
    %c0_135 = arith.constant 0 : index
    %304 = vector.load %arg8[%c2_133, %c0_134, %c0_135] : memref<4x1x128xf32, #tpu.memory_space<vmem>>, vector<1x1x128xf32>
    %305 = vector.shape_cast %304 : vector<1x1x128xf32> to vector<1x128xf32>
    %306 = vector.broadcast %305 : vector<1x128xf32> to vector<32x128xf32>
    %307 = arith.addf %303, %306 : vector<32x128xf32>
    %308 = arith.addf %242, %307 : vector<32x128xf32>
    %cst_136 = arith.constant dense<0.000000e+00> : vector<32xf32>
    %309 = vector.multi_reduction <add>, %308, %cst_136 [1] : vector<32x128xf32> to vector<32xf32>
    %310 = vector.shape_cast %309 : vector<32xf32> to vector<32x1xf32>
    %cst_137 = arith.constant 1.280000e+02 : f32
    %311 = vector.broadcast %cst_137 : f32 to vector<32x1xf32>
    %312 = arith.divf %310, %311 : vector<32x1xf32>
    %313 = vector.broadcast %312 : vector<32x1xf32> to vector<32x128xf32>
    %314 = arith.subf %308, %313 : vector<32x128xf32>
    %315 = arith.mulf %314, %314 : vector<32x128xf32>
    %cst_138 = arith.constant dense<0.000000e+00> : vector<32xf32>
    %316 = vector.multi_reduction <add>, %315, %cst_138 [1] : vector<32x128xf32> to vector<32xf32>
    %317 = vector.shape_cast %316 : vector<32xf32> to vector<32x1xf32>
    %cst_139 = arith.constant 1.280000e+02 : f32
    %318 = vector.broadcast %cst_139 : f32 to vector<32x1xf32>
    %319 = arith.divf %317, %318 : vector<32x1xf32>
    %320 = vector.broadcast %312 : vector<32x1xf32> to vector<32x128xf32>
    %321 = arith.subf %308, %320 : vector<32x128xf32>
    %cst_140 = arith.constant 9.99999974E-6 : f32
    %322 = vector.broadcast %cst_140 : f32 to vector<32x1xf32>
    %323 = arith.addf %319, %322 : vector<32x1xf32>
    %324 = math.rsqrt %323 : vector<32x1xf32>
    %325 = vector.broadcast %324 : vector<32x1xf32> to vector<32x128xf32>
    %326 = arith.mulf %321, %325 : vector<32x128xf32>
    %327 = vector.broadcast %244 : vector<1x128xf32> to vector<32x128xf32>
    %328 = arith.mulf %326, %327 : vector<32x128xf32>
    %329 = vector.broadcast %246 : vector<1x128xf32> to vector<32x128xf32>
    %330 = arith.addf %328, %329 : vector<32x128xf32>
    %331 = arith.truncf %330 : vector<32x128xf32> to vector<32x128xbf16>
    %c2_141 = arith.constant 2 : index
    %c0_142 = arith.constant 0 : index
    %c0_143 = arith.constant 0 : index
    %332 = vector.load %arg9[%c2_141, %c0_142, %c0_143] : memref<4x128x256xbf16, #tpu.memory_space<vmem>>, vector<1x128x256xbf16>
    %333 = vector.shape_cast %332 : vector<1x128x256xbf16> to vector<128x256xbf16>
    %cst_144 = arith.constant dense<0.000000e+00> : vector<32x256xf32>
    %334 = tpu.matmul %331, %333, %cst_144 {dimension_numbers = #tpu.dot_dimension_numbers<[1], [0], [0], [1], [0, 0, 1, 1], [], []>} : vector<32x128xbf16>, vector<128x256xbf16>, vector<32x256xf32> -> vector<32x256xf32>
    %c2_145 = arith.constant 2 : index
    %c0_146 = arith.constant 0 : index
    %c0_147 = arith.constant 0 : index
    %335 = vector.load %arg10[%c2_145, %c0_146, %c0_147] : memref<4x1x256xf32, #tpu.memory_space<vmem>>, vector<1x1x256xf32>
    %336 = vector.shape_cast %335 : vector<1x1x256xf32> to vector<1x256xf32>
    %337 = vector.broadcast %336 : vector<1x256xf32> to vector<32x256xf32>
    %338 = arith.addf %334, %337 : vector<32x256xf32>
    %cst_148 = arith.constant 5.000000e-01 : f32
    %339 = vector.broadcast %cst_148 : f32 to vector<32x256xf32>
    %340 = arith.mulf %339, %338 : vector<32x256xf32>
    %cst_149 = arith.constant 4.471500e-02 : f32
    %341 = vector.broadcast %cst_149 : f32 to vector<32x256xf32>
    %342 = arith.mulf %341, %338 : vector<32x256xf32>
    %343 = arith.mulf %342, %338 : vector<32x256xf32>
    %344 = arith.mulf %343, %338 : vector<32x256xf32>
    %345 = arith.addf %338, %344 : vector<32x256xf32>
    %cst_150 = arith.constant 0.797884583 : f32
    %346 = vector.broadcast %cst_150 : f32 to vector<32x256xf32>
    %347 = arith.mulf %346, %345 : vector<32x256xf32>
    %348 = math.tanh %347 : vector<32x256xf32>
    %cst_151 = arith.constant 1.000000e+00 : f32
    %349 = vector.broadcast %cst_151 : f32 to vector<32x256xf32>
    %350 = arith.addf %349, %348 : vector<32x256xf32>
    %351 = arith.mulf %340, %350 : vector<32x256xf32>
    %352 = arith.truncf %351 : vector<32x256xf32> to vector<32x256xbf16>
    %c2_152 = arith.constant 2 : index
    %c0_153 = arith.constant 0 : index
    %c0_154 = arith.constant 0 : index
    %353 = vector.load %arg11[%c2_152, %c0_153, %c0_154] : memref<4x256x128xbf16, #tpu.memory_space<vmem>>, vector<1x256x128xbf16>
    %354 = vector.shape_cast %353 : vector<1x256x128xbf16> to vector<256x128xbf16>
    %cst_155 = arith.constant dense<0.000000e+00> : vector<32x128xf32>
    %355 = tpu.matmul %352, %354, %cst_155 {dimension_numbers = #tpu.dot_dimension_numbers<[1], [0], [0], [1], [0, 0, 1, 1], [], []>} : vector<32x256xbf16>, vector<256x128xbf16>, vector<32x128xf32> -> vector<32x128xf32>
    %c2_156 = arith.constant 2 : index
    %c0_157 = arith.constant 0 : index
    %c0_158 = arith.constant 0 : index
    %356 = vector.load %arg12[%c2_156, %c0_157, %c0_158] : memref<4x1x128xf32, #tpu.memory_space<vmem>>, vector<1x1x128xf32>
    %357 = vector.shape_cast %356 : vector<1x1x128xf32> to vector<1x128xf32>
    %358 = vector.broadcast %357 : vector<1x128xf32> to vector<32x128xf32>
    %359 = arith.addf %355, %358 : vector<32x128xf32>
    %360 = arith.addf %308, %359 : vector<32x128xf32>
    %c3 = arith.constant 3 : index
    %c0_159 = arith.constant 0 : index
    %c0_160 = arith.constant 0 : index
    %361 = vector.load %arg3[%c3, %c0_159, %c0_160] : memref<4x1x128xf32, #tpu.memory_space<vmem>>, vector<1x1x128xf32>
    %362 = vector.shape_cast %361 : vector<1x1x128xf32> to vector<1x128xf32>
    %c3_161 = arith.constant 3 : index
    %c0_162 = arith.constant 0 : index
    %c0_163 = arith.constant 0 : index
    %363 = vector.load %arg4[%c3_161, %c0_162, %c0_163] : memref<4x1x128xf32, #tpu.memory_space<vmem>>, vector<1x1x128xf32>
    %364 = vector.shape_cast %363 : vector<1x1x128xf32> to vector<1x128xf32>
    %cst_164 = arith.constant dense<0.000000e+00> : vector<32xf32>
    %365 = vector.multi_reduction <add>, %360, %cst_164 [1] : vector<32x128xf32> to vector<32xf32>
    %366 = vector.shape_cast %365 : vector<32xf32> to vector<32x1xf32>
    %cst_165 = arith.constant 1.280000e+02 : f32
    %367 = vector.broadcast %cst_165 : f32 to vector<32x1xf32>
    %368 = arith.divf %366, %367 : vector<32x1xf32>
    %369 = vector.broadcast %368 : vector<32x1xf32> to vector<32x128xf32>
    %370 = arith.subf %360, %369 : vector<32x128xf32>
    %371 = arith.mulf %370, %370 : vector<32x128xf32>
    %cst_166 = arith.constant dense<0.000000e+00> : vector<32xf32>
    %372 = vector.multi_reduction <add>, %371, %cst_166 [1] : vector<32x128xf32> to vector<32xf32>
    %373 = vector.shape_cast %372 : vector<32xf32> to vector<32x1xf32>
    %cst_167 = arith.constant 1.280000e+02 : f32
    %374 = vector.broadcast %cst_167 : f32 to vector<32x1xf32>
    %375 = arith.divf %373, %374 : vector<32x1xf32>
    %376 = vector.broadcast %368 : vector<32x1xf32> to vector<32x128xf32>
    %377 = arith.subf %360, %376 : vector<32x128xf32>
    %cst_168 = arith.constant 9.99999974E-6 : f32
    %378 = vector.broadcast %cst_168 : f32 to vector<32x1xf32>
    %379 = arith.addf %375, %378 : vector<32x1xf32>
    %380 = math.rsqrt %379 : vector<32x1xf32>
    %381 = vector.broadcast %380 : vector<32x1xf32> to vector<32x128xf32>
    %382 = arith.mulf %377, %381 : vector<32x128xf32>
    %383 = vector.broadcast %362 : vector<1x128xf32> to vector<32x128xf32>
    %384 = arith.mulf %382, %383 : vector<32x128xf32>
    %385 = vector.broadcast %364 : vector<1x128xf32> to vector<32x128xf32>
    %386 = arith.addf %384, %385 : vector<32x128xf32>
    %387 = arith.truncf %386 : vector<32x128xf32> to vector<32x128xbf16>
    %c3_169 = arith.constant 3 : index
    %c0_170 = arith.constant 0 : index
    %c0_171 = arith.constant 0 : index
    %388 = vector.load %arg5[%c3_169, %c0_170, %c0_171] : memref<4x128x384xbf16, #tpu.memory_space<vmem>>, vector<1x128x384xbf16>
    %389 = vector.shape_cast %388 : vector<1x128x384xbf16> to vector<128x384xbf16>
    %cst_172 = arith.constant dense<0.000000e+00> : vector<32x384xf32>
    %390 = tpu.matmul %387, %389, %cst_172 {dimension_numbers = #tpu.dot_dimension_numbers<[1], [0], [0], [1], [0, 0, 1, 1], [], []>} : vector<32x128xbf16>, vector<128x384xbf16>, vector<32x384xf32> -> vector<32x384xf32>
    %c3_173 = arith.constant 3 : index
    %c0_174 = arith.constant 0 : index
    %c0_175 = arith.constant 0 : index
    %391 = vector.load %arg6[%c3_173, %c0_174, %c0_175] : memref<4x1x384xf32, #tpu.memory_space<vmem>>, vector<1x1x384xf32>
    %392 = vector.shape_cast %391 : vector<1x1x384xf32> to vector<1x384xf32>
    %393 = vector.broadcast %392 : vector<1x384xf32> to vector<32x384xf32>
    %394 = arith.addf %390, %393 : vector<32x384xf32>
    %395 = vector.extract_strided_slice %394 {offsets = [0, 0], sizes = [32, 128], strides = [1, 1]} : vector<32x384xf32> to vector<32x128xf32>
    %396 = arith.truncf %395 : vector<32x128xf32> to vector<32x128xbf16>
    %397 = vector.shape_cast %396 : vector<32x128xbf16> to vector<2x16x128xbf16>
    %398 = vector.extract_strided_slice %394 {offsets = [0, 128], sizes = [32, 128], strides = [1, 1]} : vector<32x384xf32> to vector<32x128xf32>
    %399 = arith.truncf %398 : vector<32x128xf32> to vector<32x128xbf16>
    %400 = vector.shape_cast %399 : vector<32x128xbf16> to vector<2x16x128xbf16>
    %401 = vector.extract_strided_slice %394 {offsets = [0, 256], sizes = [32, 128], strides = [1, 1]} : vector<32x384xf32> to vector<32x128xf32>
    %402 = arith.truncf %401 : vector<32x128xf32> to vector<32x128xbf16>
    %403 = vector.shape_cast %402 : vector<32x128xbf16> to vector<2x16x128xbf16>
    "tpu.trace_start"() <{level = 10 : i32, message = "bqd,bkd->bqk"}> : () -> ()
    %cst_176 = arith.constant dense<0.000000e+00> : vector<2x16x16xf32>
    %404 = tpu.matmul %397, %400, %cst_176 {dimension_numbers = #tpu.dot_dimension_numbers<[2], [2], [1], [1], [0, 0, 0, 1, 1, 1], [0], [0]>} : vector<2x16x128xbf16>, vector<2x16x128xbf16>, vector<2x16x16xf32> -> vector<2x16x16xf32>
    "tpu.trace_stop"() : () -> ()
    %cst_177 = arith.constant dense<0xFF800000> : vector<2x16xf32>
    %405 = vector.multi_reduction <maximumf>, %404, %cst_177 [2] : vector<2x16x16xf32> to vector<2x16xf32>
    %406 = vector.shape_cast %405 : vector<2x16xf32> to vector<2x16x1xf32>
    %407 = vector.broadcast %406 : vector<2x16x1xf32> to vector<2x16x16xf32>
    %408 = arith.subf %404, %407 : vector<2x16x16xf32>
    %409 = math.exp %408 : vector<2x16x16xf32>
    %cst_178 = arith.constant dense<0.000000e+00> : vector<2x16xf32>
    %410 = vector.multi_reduction <add>, %409, %cst_178 [2] : vector<2x16x16xf32> to vector<2x16xf32>
    %411 = vector.shape_cast %410 : vector<2x16xf32> to vector<2x16x1xf32>
    %412 = tpu.reciprocal %411 {approx = true} : vector<2x16x1xf32> -> vector<2x16x1xf32>
    %413 = vector.broadcast %412 : vector<2x16x1xf32> to vector<2x16x16xf32>
    %414 = arith.mulf %409, %413 : vector<2x16x16xf32>
    %415 = arith.truncf %414 : vector<2x16x16xf32> to vector<2x16x16xbf16>
    "tpu.trace_start"() <{level = 10 : i32, message = "bqk,bkd->bqd"}> : () -> ()
    %cst_179 = arith.constant dense<0.000000e+00> : vector<2x16x128xf32>
    %416 = tpu.matmul %415, %403, %cst_179 {dimension_numbers = #tpu.dot_dimension_numbers<[2], [1], [1], [2], [0, 0, 0, 1, 1, 2], [0], [0]>} : vector<2x16x16xbf16>, vector<2x16x128xbf16>, vector<2x16x128xf32> -> vector<2x16x128xf32>
    "tpu.trace_stop"() : () -> ()
    %417 = vector.shape_cast %416 : vector<2x16x128xf32> to vector<32x128xf32>
    %418 = arith.truncf %417 : vector<32x128xf32> to vector<32x128xbf16>
    %c3_180 = arith.constant 3 : index
    %c0_181 = arith.constant 0 : index
    %c0_182 = arith.constant 0 : index
    %419 = vector.load %arg7[%c3_180, %c0_181, %c0_182] : memref<4x128x128xbf16, #tpu.memory_space<vmem>>, vector<1x128x128xbf16>
    %420 = vector.shape_cast %419 : vector<1x128x128xbf16> to vector<128x128xbf16>
    %cst_183 = arith.constant dense<0.000000e+00> : vector<32x128xf32>
    %421 = tpu.matmul %418, %420, %cst_183 {dimension_numbers = #tpu.dot_dimension_numbers<[1], [0], [0], [1], [0, 0, 1, 1], [], []>} : vector<32x128xbf16>, vector<128x128xbf16>, vector<32x128xf32> -> vector<32x128xf32>
    %c3_184 = arith.constant 3 : index
    %c0_185 = arith.constant 0 : index
    %c0_186 = arith.constant 0 : index
    %422 = vector.load %arg8[%c3_184, %c0_185, %c0_186] : memref<4x1x128xf32, #tpu.memory_space<vmem>>, vector<1x1x128xf32>
    %423 = vector.shape_cast %422 : vector<1x1x128xf32> to vector<1x128xf32>
    %424 = vector.broadcast %423 : vector<1x128xf32> to vector<32x128xf32>
    %425 = arith.addf %421, %424 : vector<32x128xf32>
    %426 = arith.addf %360, %425 : vector<32x128xf32>
    %cst_187 = arith.constant dense<0.000000e+00> : vector<32xf32>
    %427 = vector.multi_reduction <add>, %426, %cst_187 [1] : vector<32x128xf32> to vector<32xf32>
    %428 = vector.shape_cast %427 : vector<32xf32> to vector<32x1xf32>
    %cst_188 = arith.constant 1.280000e+02 : f32
    %429 = vector.broadcast %cst_188 : f32 to vector<32x1xf32>
    %430 = arith.divf %428, %429 : vector<32x1xf32>
    %431 = vector.broadcast %430 : vector<32x1xf32> to vector<32x128xf32>
    %432 = arith.subf %426, %431 : vector<32x128xf32>
    %433 = arith.mulf %432, %432 : vector<32x128xf32>
    %cst_189 = arith.constant dense<0.000000e+00> : vector<32xf32>
    %434 = vector.multi_reduction <add>, %433, %cst_189 [1] : vector<32x128xf32> to vector<32xf32>
    %435 = vector.shape_cast %434 : vector<32xf32> to vector<32x1xf32>
    %cst_190 = arith.constant 1.280000e+02 : f32
    %436 = vector.broadcast %cst_190 : f32 to vector<32x1xf32>
    %437 = arith.divf %435, %436 : vector<32x1xf32>
    %438 = vector.broadcast %430 : vector<32x1xf32> to vector<32x128xf32>
    %439 = arith.subf %426, %438 : vector<32x128xf32>
    %cst_191 = arith.constant 9.99999974E-6 : f32
    %440 = vector.broadcast %cst_191 : f32 to vector<32x1xf32>
    %441 = arith.addf %437, %440 : vector<32x1xf32>
    %442 = math.rsqrt %441 : vector<32x1xf32>
    %443 = vector.broadcast %442 : vector<32x1xf32> to vector<32x128xf32>
    %444 = arith.mulf %439, %443 : vector<32x128xf32>
    %445 = vector.broadcast %362 : vector<1x128xf32> to vector<32x128xf32>
    %446 = arith.mulf %444, %445 : vector<32x128xf32>
    %447 = vector.broadcast %364 : vector<1x128xf32> to vector<32x128xf32>
    %448 = arith.addf %446, %447 : vector<32x128xf32>
    %449 = arith.truncf %448 : vector<32x128xf32> to vector<32x128xbf16>
    %c3_192 = arith.constant 3 : index
    %c0_193 = arith.constant 0 : index
    %c0_194 = arith.constant 0 : index
    %450 = vector.load %arg9[%c3_192, %c0_193, %c0_194] : memref<4x128x256xbf16, #tpu.memory_space<vmem>>, vector<1x128x256xbf16>
    %451 = vector.shape_cast %450 : vector<1x128x256xbf16> to vector<128x256xbf16>
    %cst_195 = arith.constant dense<0.000000e+00> : vector<32x256xf32>
    %452 = tpu.matmul %449, %451, %cst_195 {dimension_numbers = #tpu.dot_dimension_numbers<[1], [0], [0], [1], [0, 0, 1, 1], [], []>} : vector<32x128xbf16>, vector<128x256xbf16>, vector<32x256xf32> -> vector<32x256xf32>
    %c3_196 = arith.constant 3 : index
    %c0_197 = arith.constant 0 : index
    %c0_198 = arith.constant 0 : index
    %453 = vector.load %arg10[%c3_196, %c0_197, %c0_198] : memref<4x1x256xf32, #tpu.memory_space<vmem>>, vector<1x1x256xf32>
    %454 = vector.shape_cast %453 : vector<1x1x256xf32> to vector<1x256xf32>
    %455 = vector.broadcast %454 : vector<1x256xf32> to vector<32x256xf32>
    %456 = arith.addf %452, %455 : vector<32x256xf32>
    %cst_199 = arith.constant 5.000000e-01 : f32
    %457 = vector.broadcast %cst_199 : f32 to vector<32x256xf32>
    %458 = arith.mulf %457, %456 : vector<32x256xf32>
    %cst_200 = arith.constant 4.471500e-02 : f32
    %459 = vector.broadcast %cst_200 : f32 to vector<32x256xf32>
    %460 = arith.mulf %459, %456 : vector<32x256xf32>
    %461 = arith.mulf %460, %456 : vector<32x256xf32>
    %462 = arith.mulf %461, %456 : vector<32x256xf32>
    %463 = arith.addf %456, %462 : vector<32x256xf32>
    %cst_201 = arith.constant 0.797884583 : f32
    %464 = vector.broadcast %cst_201 : f32 to vector<32x256xf32>
    %465 = arith.mulf %464, %463 : vector<32x256xf32>
    %466 = math.tanh %465 : vector<32x256xf32>
    %cst_202 = arith.constant 1.000000e+00 : f32
    %467 = vector.broadcast %cst_202 : f32 to vector<32x256xf32>
    %468 = arith.addf %467, %466 : vector<32x256xf32>
    %469 = arith.mulf %458, %468 : vector<32x256xf32>
    %470 = arith.truncf %469 : vector<32x256xf32> to vector<32x256xbf16>
    %c3_203 = arith.constant 3 : index
    %c0_204 = arith.constant 0 : index
    %c0_205 = arith.constant 0 : index
    %471 = vector.load %arg11[%c3_203, %c0_204, %c0_205] : memref<4x256x128xbf16, #tpu.memory_space<vmem>>, vector<1x256x128xbf16>
    %472 = vector.shape_cast %471 : vector<1x256x128xbf16> to vector<256x128xbf16>
    %cst_206 = arith.constant dense<0.000000e+00> : vector<32x128xf32>
    %473 = tpu.matmul %470, %472, %cst_206 {dimension_numbers = #tpu.dot_dimension_numbers<[1], [0], [0], [1], [0, 0, 1, 1], [], []>} : vector<32x256xbf16>, vector<256x128xbf16>, vector<32x128xf32> -> vector<32x128xf32>
    %c3_207 = arith.constant 3 : index
    %c0_208 = arith.constant 0 : index
    %c0_209 = arith.constant 0 : index
    %474 = vector.load %arg12[%c3_207, %c0_208, %c0_209] : memref<4x1x128xf32, #tpu.memory_space<vmem>>, vector<1x1x128xf32>
    %475 = vector.shape_cast %474 : vector<1x1x128xf32> to vector<1x128xf32>
    %476 = vector.broadcast %475 : vector<1x128xf32> to vector<32x128xf32>
    %477 = arith.addf %473, %476 : vector<32x128xf32>
    %478 = arith.addf %426, %477 : vector<32x128xf32>
    %c0_210 = arith.constant 0 : index
    %c0_211 = arith.constant 0 : index
    %479 = vector.load %arg13[%c0_210, %c0_211] : memref<1x128xf32, #tpu.memory_space<vmem>>, vector<1x128xf32>
    %c0_212 = arith.constant 0 : index
    %c0_213 = arith.constant 0 : index
    %480 = vector.load %arg14[%c0_212, %c0_213] : memref<1x128xf32, #tpu.memory_space<vmem>>, vector<1x128xf32>
    %cst_214 = arith.constant dense<0.000000e+00> : vector<32xf32>
    %481 = vector.multi_reduction <add>, %478, %cst_214 [1] : vector<32x128xf32> to vector<32xf32>
    %482 = vector.shape_cast %481 : vector<32xf32> to vector<32x1xf32>
    %cst_215 = arith.constant 1.280000e+02 : f32
    %483 = vector.broadcast %cst_215 : f32 to vector<32x1xf32>
    %484 = arith.divf %482, %483 : vector<32x1xf32>
    %485 = vector.broadcast %484 : vector<32x1xf32> to vector<32x128xf32>
    %486 = arith.subf %478, %485 : vector<32x128xf32>
    %487 = arith.mulf %486, %486 : vector<32x128xf32>
    %cst_216 = arith.constant dense<0.000000e+00> : vector<32xf32>
    %488 = vector.multi_reduction <add>, %487, %cst_216 [1] : vector<32x128xf32> to vector<32xf32>
    %489 = vector.shape_cast %488 : vector<32xf32> to vector<32x1xf32>
    %cst_217 = arith.constant 1.280000e+02 : f32
    %490 = vector.broadcast %cst_217 : f32 to vector<32x1xf32>
    %491 = arith.divf %489, %490 : vector<32x1xf32>
    %492 = vector.broadcast %484 : vector<32x1xf32> to vector<32x128xf32>
    %493 = arith.subf %478, %492 : vector<32x128xf32>
    %cst_218 = arith.constant 9.99999974E-6 : f32
    %494 = vector.broadcast %cst_218 : f32 to vector<32x1xf32>
    %495 = arith.addf %491, %494 : vector<32x1xf32>
    %496 = math.rsqrt %495 : vector<32x1xf32>
    %497 = vector.broadcast %496 : vector<32x1xf32> to vector<32x128xf32>
    %498 = arith.mulf %493, %497 : vector<32x128xf32>
    %499 = vector.broadcast %479 : vector<1x128xf32> to vector<32x128xf32>
    %500 = arith.mulf %498, %499 : vector<32x128xf32>
    %501 = vector.broadcast %480 : vector<1x128xf32> to vector<32x128xf32>
    %502 = arith.addf %500, %501 : vector<32x128xf32>
    %503 = vector.shape_cast %502 : vector<32x128xf32> to vector<2x16x128xf32>
    %cst_219 = arith.constant dense<0xFF800000> : vector<2x128xf32>
    %504 = vector.multi_reduction <maximumf>, %503, %cst_219 [1] : vector<2x16x128xf32> to vector<2x128xf32>
    %505 = arith.truncf %504 : vector<2x128xf32> to vector<2x128xbf16>
    %c0_220 = arith.constant 0 : index
    %c0_221 = arith.constant 0 : index
    %506 = vector.load %arg15[%c0_220, %c0_221] : memref<128x128xbf16, #tpu.memory_space<vmem>>, vector<128x128xbf16>
    %cst_222 = arith.constant dense<0.000000e+00> : vector<2x128xf32>
    %507 = tpu.matmul %505, %506, %cst_222 {dimension_numbers = #tpu.dot_dimension_numbers<[1], [0], [0], [1], [0, 0, 1, 1], [], []>} : vector<2x128xbf16>, vector<128x128xbf16>, vector<2x128xf32> -> vector<2x128xf32>
    %c0_223 = arith.constant 0 : index
    %c0_224 = arith.constant 0 : index
    %508 = vector.load %arg16[%c0_223, %c0_224] : memref<1x128xf32, #tpu.memory_space<vmem>>, vector<1x128xf32>
    %509 = vector.broadcast %508 : vector<1x128xf32> to vector<2x128xf32>
    %510 = arith.addf %507, %509 : vector<2x128xf32>
    %c0_225 = arith.constant 0 : index
    %c0_226 = arith.constant 0 : index
    %511 = vector.load %arg17[%c0_225, %c0_226] : memref<2x128xf32, #tpu.memory_space<vmem>>, vector<2x128xf32>
    tpu.vector_store %arg17[%c0_225, %c0_226], %510 {strides = array<i32>} : memref<2x128xf32, #tpu.memory_space<vmem>>, vector<2x128xf32>,
    return
  }
}

</mosaic_0001>

<llo_original>
// kernel: _lambda_.1
$region0: #{_lambda_.1}
  #allocation0 [shape = 'u32[]', space=smem, size = 0x4, offset = 0x4, fixed_abs, tag = 'smem constant byte address 0x4 - core index']
  #allocation1 [shape = 'u32[144,128]{1,0:T(1,128)}', space=vmem, size = 0x12000, scoped, tag = 'internal scratch']
  %s0 = inlined_call_operand.vmem [shape: f32[32,32], index: 0, kind: input, shape index: {}]
  %s1 = inlined_call_operand.vmem [shape: bf16[32,128], index: 1, kind: input, shape index: {}]
  %s2 = inlined_call_operand.vmem [shape: f32[1,128], index: 2, kind: input, shape index: {}]
  %s3 = inlined_call_operand.vmem [shape: f32[4,1,128], index: 3, kind: input, shape index: {}]
  %s4 = inlined_call_operand.vmem [shape: f32[4,1,128], index: 4, kind: input, shape index: {}]
  %s5 = inlined_call_operand.vmem [shape: bf16[4,128,384], index: 5, kind: input, shape index: {}]
  %s6 = inlined_call_operand.vmem [shape: f32[4,1,384], index: 6, kind: input, shape index: {}]
  %s7 = inlined_call_operand.vmem [shape: bf16[4,128,128], index: 7, kind: input, shape index: {}]
  %s8 = inlined_call_operand.vmem [shape: f32[4,1,128], index: 8, kind: input, shape index: {}]
  %s9 = inlined_call_operand.vmem [shape: bf16[4,128,256], index: 9, kind: input, shape index: {}]
  %s10 = inlined_call_operand.vmem [shape: f32[4,1,256], index: 10, kind: input, shape index: {}]
  %s11 = inlined_call_operand.vmem [shape: bf16[4,256,128], index: 11, kind: input, shape index: {}]
  %s12 = inlined_call_operand.vmem [shape: f32[4,1,128], index: 12, kind: input, shape index: {}]
  %s13 = inlined_call_operand.vmem [shape: f32[1,128], index: 13, kind: input, shape index: {}]
  %s14 = inlined_call_operand.vmem [shape: f32[1,128], index: 14, kind: input, shape index: {}]
  %s15 = inlined_call_operand.vmem [shape: bf16[128,128], index: 15, kind: input, shape index: {}]
  %s16 = inlined_call_operand.vmem [shape: f32[1,128], index: 16, kind: input, shape index: {}]
  %s17 = inlined_call_operand.hbm [shape: f32[2,128], index: 17, kind: output, shape index: {}]
  %s18 = sld [smem:[#allocation0]]
  $region78: #{_lambda_.1} parent=0
    _
  %s20 = ssub.s32 1, %s18
  %s21 = scalar_select 0, %s20, %s18
  $region1: #{_lambda_.1} parent=0
    #allocation2 [shape = 'u8[1024]{0}', space=vmem, size = 0x400, scoped, tag = 'output window, operand 0, single buffered']
    #allocation3 [shape = 's32[1]{0}', space=sflag, size = 0x4, scoped, tag = 'scoped memory for _lambda_.1']
    %22 = vsyncpa [#allocation3], 0
    // Predicated region
    $region2: #{_lambda_.1} parent=1 // pred_check
      _
    $region3: #{_lambda_.1} parent=1 // pred_check_branch
      %24 = sbr.rel (0) target = $region5
    $region4: #{_lambda_.1} parent=1 // pred_region
      _
    $region5: #{_lambda_.1} parent=1 // pred_fallthru
      _
    // Predicated region
    $region6: #{_lambda_.1} parent=1 // pred_check
      _
    $region7: #{_lambda_.1} parent=1 // pred_check_branch
      %26 = sbr.rel (0) target = $region9
    $region8: #{_lambda_.1} parent=1 // pred_region
      _
    $region9: #{_lambda_.1} parent=1 // pred_fallthru
      _
    // Predicated region
    $region10: #{_lambda_.1} parent=1 // pred_check
      _
    $region11: #{_lambda_.1} parent=1 // pred_check_branch
      %28 = sbr.rel (0) target = $region13
    $region12: #{_lambda_.1} parent=1 // pred_region
      _
    $region13: #{_lambda_.1} parent=1 // pred_fallthru
      _
    // Predicated region
    $region14: #{_lambda_.1} parent=1 // pred_check
      _
    $region15: #{_lambda_.1} parent=1 // pred_check_branch
      %30 = sbr.rel (0) target = $region17
    $region16: #{_lambda_.1} parent=1 // pred_region
      _
    $region17: #{_lambda_.1} parent=1 // pred_fallthru
      _
    // Predicated region
    $region18: #{_lambda_.1} parent=1 // pred_check
      _
    $region19: #{_lambda_.1} parent=1 // pred_check_branch
      %32 = sbr.rel (0) target = $region21
    $region20: #{_lambda_.1} parent=1 // pred_region
      _
    $region21: #{_lambda_.1} parent=1 // pred_fallthru
      _
    // Predicated region
    $region22: #{_lambda_.1} parent=1 // pred_check
      _
    $region23: #{_lambda_.1} parent=1 // pred_check_branch
      %34 = sbr.rel (0) target = $region25
    $region24: #{_lambda_.1} parent=1 // pred_region
      _
    $region25: #{_lambda_.1} parent=1 // pred_fallthru
      _
    // Predicated region
    $region26: #{_lambda_.1} parent=1 // pred_check
      _
    $region27: #{_lambda_.1} parent=1 // pred_check_branch
      %36 = sbr.rel (0) target = $region29
    $region28: #{_lambda_.1} parent=1 // pred_region
      _
    $region29: #{_lambda_.1} parent=1 // pred_fallthru
      _
    // Predicated region
    $region30: #{_lambda_.1} parent=1 // pred_check
      _
    $region31: #{_lambda_.1} parent=1 // pred_check_branch
      %38 = sbr.rel (0) target = $region33
    $region32: #{_lambda_.1} parent=1 // pred_region
      _
    $region33: #{_lambda_.1} parent=1 // pred_fallthru
      _
    // Predicated region
    $region34: #{_lambda_.1} parent=1 // pred_check
      _
    $region35: #{_lambda_.1} parent=1 // pred_check_branch
      %40 = sbr.rel (0) target = $region37
    $region36: #{_lambda_.1} parent=1 // pred_region
      _
    $region37: #{_lambda_.1} parent=1 // pred_fallthru
      _
    // Predicated region
    $region38: #{_lambda_.1} parent=1 // pred_check
      _
    $region39: #{_lambda_.1} parent=1 // pred_check_branch
      %42 = sbr.rel (0) target = $region41
    $region40: #{_lambda_.1} parent=1 // pred_region
      _
    $region41: #{_lambda_.1} parent=1 // pred_fallthru
      _
    // Predicated region
    $region42: #{_lambda_.1} parent=1 // pred_check
      _
    $region43: #{_lambda_.1} parent=1 // pred_check_branch
      %44 = sbr.rel (0) target = $region45
    $region44: #{_lambda_.1} parent=1 // pred_region
      _
    $region45: #{_lambda_.1} parent=1 // pred_fallthru
      _
    // Predicated region
    $region46: #{_lambda_.1} parent=1 // pred_check
      _
    $region47: #{_lambda_.1} parent=1 // pred_check_branch
      %46 = sbr.rel (0) target = $region49
    $region48: #{_lambda_.1} parent=1 // pred_region
      _
    $region49: #{_lambda_.1} parent=1 // pred_fallthru
      _
    // Predicated region
    $region50: #{_lambda_.1} parent=1 // pred_check
      _
    $region51: #{_lambda_.1} parent=1 // pred_check_branch
      %48 = sbr.rel (0) target = $region53
    $region52: #{_lambda_.1} parent=1 // pred_region
      _
    $region53: #{_lambda_.1} parent=1 // pred_fallthru
      _
    // Predicated region
    $region54: #{_lambda_.1} parent=1 // pred_check
      _
    $region55: #{_lambda_.1} parent=1 // pred_check_branch
      %50 = sbr.rel (0) target = $region57
    $region56: #{_lambda_.1} parent=1 // pred_region
      _
    $region57: #{_lambda_.1} parent=1 // pred_fallthru
      _
    // Predicated region
    $region58: #{_lambda_.1} parent=1 // pred_check
      _
    $region59: #{_lambda_.1} parent=1 // pred_check_branch
      %52 = sbr.rel (0) target = $region61
    $region60: #{_lambda_.1} parent=1 // pred_region
      _
    $region61: #{_lambda_.1} parent=1 // pred_fallthru
      _
    // Predicated region
    $region62: #{_lambda_.1} parent=1 // pred_check
      _
    $region63: #{_lambda_.1} parent=1 // pred_check_branch
      %54 = sbr.rel (0) target = $region65
    $region64: #{_lambda_.1} parent=1 // pred_region
      _
    $region65: #{_lambda_.1} parent=1 // pred_fallthru
      _
    // Predicated region
    $region66: #{_lambda_.1} parent=1 // pred_check
      _
    $region67: #{_lambda_.1} parent=1 // pred_check_branch
      %56 = sbr.rel (0) target = $region69
    $region68: #{_lambda_.1} parent=1 // pred_region
      _
    $region69: #{_lambda_.1} parent=1 // pred_fallthru
      _
    %v58 = vld [vmem:[%s0] sm:$0xff]
    %v59 = vld [vmem:[%s0 + $0x8] sm:$0xff]
    %v60 = vld [vmem:[%s0 + $0x10] sm:$0xff]
    %v61 = vld [vmem:[%s0 + $0x18] sm:$0xff]
    %v62 = vpack.c.bf16 %v59, %v58
    %v63 = vpack.c.bf16 %v61, %v60
    %v64 = vld [vmem:[%s1] sm:$0xf]
    %v65 = vld [vmem:[%s1 + $0x4] sm:$0xf]
    %v66 = vld [vmem:[%s1 + $0x8] sm:$0xf]
    %v67 = vld [vmem:[%s1 + $0xc] sm:$0xf]
    %v68 = vld [vmem:[%s2] sm:$0x1]
    %v70 = vlaneseq
    %v71 = vshrl.u32 %v70, 7
    %v72 = vsub.s32 0, %v71
    %v73 = vrot.slane %v68, %v72
    %v79 = vunpack.c.l.b16 %v64
    %v80 = vunpack.c.l.b16 %v65
    %v81 = vunpack.c.l.b16 %v66
    %v82 = vunpack.c.l.b16 %v67
    %v83 = vpack.c.b16 %v80, %v79
    %v84 = vpack.c.b16 %v82, %v81
    %vm87 = vcmask 261120
    %v89 = vsel %vm87, %v62, 0
    %v92 = vsel %vm87, %v63, 0
    %94 = vmatprep.subr.bf16.mxu0 0
    %95 = vmatpush1.bf16.msra.mxu0 %v83
    %96 = vmatprep.subr.bf16.mxu0 0
    %97 = vmatpush1.bf16.msra.mxu0 %v84
    %98 = vmatprep.subr.bf16.mxu0 0
    %99 = vmatpush1.bf16.msra.mxu0 0
    %100 = vmatprep.subr.bf16.mxu0 0
    %101 = vmatpush1.bf16.msra.mxu0 0
    %102 = vmatprep.subr.bf16.mxu0 0
    %103 = vmatpush1.bf16.msra.mxu0 0
    %104 = vmatprep.subr.bf16.mxu0 0
    %105 = vmatpush1.bf16.msra.mxu0 0
    %106 = vmatprep.subr.bf16.mxu0 0
    %107 = vmatpush1.bf16.msra.mxu0 0
    %108 = vmatprep.subr.bf16.mxu0 0
    %109 = vmatpush1.bf16.msra.mxu0 0
    %110 = vmatprep.subr.bf16.mxu0 0
    %111 = vmatpush1.bf16.msra.mxu0 0
    %112 = vmatprep.subr.bf16.mxu0 0
    %113 = vmatpush1.bf16.msra.mxu0 0
    %114 = vmatprep.subr.bf16.mxu0 0
    %115 = vmatpush1.bf16.msra.mxu0 0
    %116 = vmatprep.subr.bf16.mxu0 0
    %117 = vmatpush1.bf16.msra.mxu0 0
    %118 = vmatprep.subr.bf16.mxu0 0
    %119 = vmatpush1.bf16.msra.mxu0 0
    %120 = vmatprep.subr.bf16.mxu0 0
    %121 = vmatpush1.bf16.msra.mxu0 0
    %122 = vmatprep.subr.bf16.mxu0 0
    %123 = vmatpush1.bf16.msra.mxu0 0
    %124 = vmatprep.subr.bf16.mxu0 0
    %125 = vmatpush1.bf16.msra.mxu0 0
    %126 = vmatprep.mubr.bf16.mxu0 0
    %127 = vmatmul.mubr.bf16.gmra.mrb[0].mxu0 %v89
    %v128 = vpop.f32.mrb[0].mxu0
    %v129 = vadd.f32 %v73, %v128
    %v130 = vpop.f32.mrb[0].mxu0
    %v131 = vpop.f32.mrb[0].mxu0
    %v132 = vadd.f32 %v73, %v131
    %v133 = vpop.f32.mrb[0].mxu0
    %134 = vmatprep.mubr.bf16.mxu0 0
    %135 = vmatmul.mubr.bf16.gmra.mrb[0].mxu0 %v92
    %v136 = vpop.f32.mrb[0].mxu0
    %v137 = vadd.f32 %v73, %v136
    %v138 = vpop.f32.mrb[0].mxu0
    %v139 = vpop.f32.mrb[0].mxu0
    %v140 = vadd.f32 %v73, %v139
    %v141 = vpop.f32.mrb[0].mxu0
    %142 = vdwg.mxu0
    %v143 = vld [vmem:[%s3] sm:$0x1]
    %v144 = vld [vmem:[%s4] sm:$0x1]
    %145 = vadd.xlane.f32.xlu0 %v129
    %v146 = vpop.xlane.xlu0 %145
    %147 = vadd.xlane.f32.xlu0 %v132
    %v148 = vpop.xlane.xlu0 %147
    %149 = vadd.xlane.f32.xlu0 %v137
    %v150 = vpop.xlane.xlu0 %149
    %151 = vadd.xlane.f32.xlu0 %v140
    %v152 = vpop.xlane.xlu0 %151
    %v153 = vrcp.pop 128.0
    %v154 = vmul.f32 %v146, %v153
    %v155 = vmul.f32 %v148, %v153
    %v156 = vmul.f32 %v150, %v153
    %v157 = vmul.f32 %v152, %v153
    %v158 = vsub.f32 %v129, %v154
    %v159 = vsub.f32 %v132, %v155
    %v160 = vsub.f32 %v137, %v156
    %v161 = vsub.f32 %v140, %v157
    %v162 = vmul.f32 %v158, %v158
    %v163 = vmul.f32 %v159, %v159
    %v164 = vmul.f32 %v160, %v160
    %v165 = vmul.f32 %v161, %v161
    %166 = vadd.xlane.f32.xlu0 %v162
    %v167 = vpop.xlane.xlu0 %166
    %168 = vadd.xlane.f32.xlu0 %v163
    %v169 = vpop.xlane.xlu0 %168
    %170 = vadd.xlane.f32.xlu0 %v164
    %v171 = vpop.xlane.xlu0 %170
    %172 = vadd.xlane.f32.xlu0 %v165
    %v173 = vpop.xlane.xlu0 %172
    %v174 = vmul.f32 %v167, %v153
    %v175 = vmul.f32 %v169, %v153
    %v176 = vmul.f32 %v171, %v153
    %v177 = vmul.f32 %v173, %v153
    %v178 = vadd.f32 %v174, 1e-05
    %v179 = vadd.f32 %v175, 1e-05
    %v180 = vadd.f32 %v176, 1e-05
    %v181 = vadd.f32 %v177, 1e-05
    %v182 = vrsqrt.pop %v178
    %v183 = vrsqrt.pop %v179
    %v184 = vrsqrt.pop %v180
    %v185 = vrsqrt.pop %v181
    %v186 = vmul.f32 %v158, %v182
    %v187 = vmul.f32 %v159, %v183
    %v188 = vmul.f32 %v160, %v184
    %v189 = vmul.f32 %v161, %v185
    %v191 = vlaneseq
    %v192 = vshrl.u32 %v191, 7
    %v193 = vsub.s32 0, %v192
    %v194 = vrot.slane %v143, %v193
    %v196 = vmul.f32 %v186, %v194
    %v197 = vmul.f32 %v187, %v194
    %v198 = vmul.f32 %v188, %v194
    %v199 = vmul.f32 %v189, %v194
    %v201 = vlaneseq
    %v202 = vshrl.u32 %v201, 7
    %v203 = vsub.s32 0, %v202
    %v204 = vrot.slane %v144, %v203
    %v206 = vadd.f32 %v196, %v204
    %v207 = vadd.f32 %v197, %v204
    %v208 = vadd.f32 %v198, %v204
    %v209 = vadd.f32 %v199, %v204
    %v210 = vpack.c.bf16 %v207, %v206
    %v211 = vpack.c.bf16 %v209, %v208
    %v212 = vld [vmem:[%s5] sm:$0xff]
    %v213 = vld [vmem:[%s5 + $0x8] sm:$0xf]
    %v214 = vld [vmem:[%s5 + $0xc] sm:$0xff]
    %v215 = vld [vmem:[%s5 + $0x14] sm:$0xf]
    %v216 = vld [vmem:[%s5 + $0x18] sm:$0xff]
    %v217 = vld [vmem:[%s5 + $0x20] sm:$0xf]
    %v218 = vld [vmem:[%s5 + $0x24] sm:$0xff]
    %v219 = vld [vmem:[%s5 + $0x2c] sm:$0xf]
    %v220 = vld [vmem:[%s5 + $0x30] sm:$0xff]
    %v221 = vld [vmem:[%s5 + $0x38] sm:$0xf]
    %v222 = vld [vmem:[%s5 + $0x3c] sm:$0xff]
    %v223 = vld [vmem:[%s5 + $0x44] sm:$0xf]
    %v224 = vld [vmem:[%s5 + $0x48] sm:$0xff]
    %v225 = vld [vmem:[%s5 + $0x50] sm:$0xf]
    %v226 = vld [vmem:[%s5 + $0x54] sm:$0xff]
    %v227 = vld [vmem:[%s5 + $0x5c] sm:$0xf]
    %v228 = vld [vmem:[%s5 + $0x60] sm:$0xff]
    %v229 = vld [vmem:[%s5 + $0x68] sm:$0xf]
    %v230 = vld [vmem:[%s5 + $0x6c] sm:$0xff]
    %v231 = vld [vmem:[%s5 + $0x74] sm:$0xf]
    %v232 = vld [vmem:[%s5 + $0x78] sm:$0xff]
    %v233 = vld [vmem:[%s5 + $0x80] sm:$0xf]
    %v234 = vld [vmem:[%s5 + $0x84] sm:$0xff]
    %v235 = vld [vmem:[%s5 + $0x8c] sm:$0xf]
    %v236 = vld [vmem:[%s5 + $0x90] sm:$0xff]
    %v237 = vld [vmem:[%s5 + $0x98] sm:$0xf]
    %v238 = vld [vmem:[%s5 + $0x9c] sm:$0xff]
    %v239 = vld [vmem:[%s5 + $0xa4] sm:$0xf]
    %v240 = vld [vmem:[%s5 + $0xa8] sm:$0xff]
    %v241 = vld [vmem:[%s5 + $0xb0] sm:$0xf]
    %v242 = vld [vmem:[%s5 + $0xb4] sm:$0xff]
    %v243 = vld [vmem:[%s5 + $0xbc] sm:$0xf]
    %v244 = vld [vmem:[%s6] sm:$0x7]
    %v246 = vlaneseq
    %v247 = vshrl.u32 %v246, 7
    %v248 = vsub.s32 0, %v247
    %v249 = vrot.slane %v244, %v248
    %v250 = vlaneseq
    %v251 = vshrl.u32 %v250, 7
    %v252 = vsub.s32 1, %v251
    %v253 = vrot.slane %v244, %v252
    %v254 = vlaneseq
    %v255 = vshrl.u32 %v254, 7
    %v256 = vsub.s32 2, %v255
    %v257 = vrot.slane %v244, %v256
    %v293 = vunpack.c.l.b16 %v212
    %v294 = vunpack.c.h.b16 %v212
    %v295 = vunpack.c.l.b16 %v213
    %v296 = vunpack.c.l.b16 %v214
    %v297 = vunpack.c.h.b16 %v214
    %v298 = vunpack.c.l.b16 %v215
    %v299 = vunpack.c.l.b16 %v216
    %v300 = vunpack.c.h.b16 %v216
    %v301 = vunpack.c.l.b16 %v217
    %v302 = vunpack.c.l.b16 %v218
    %v303 = vunpack.c.h.b16 %v218
    %v304 = vunpack.c.l.b16 %v219
    %v305 = vunpack.c.l.b16 %v220
    %v306 = vunpack.c.h.b16 %v220
    %v307 = vunpack.c.l.b16 %v221
    %v308 = vunpack.c.l.b16 %v222
    %v309 = vunpack.c.h.b16 %v222
    %v310 = vunpack.c.l.b16 %v223
    %v311 = vunpack.c.l.b16 %v224
    %v312 = vunpack.c.h.b16 %v224
    %v313 = vunpack.c.l.b16 %v225
    %v314 = vunpack.c.l.b16 %v226
    %v315 = vunpack.c.h.b16 %v226
    %v316 = vunpack.c.l.b16 %v227
    %v317 = vunpack.c.l.b16 %v228
    %v318 = vunpack.c.h.b16 %v228
    %v319 = vunpack.c.l.b16 %v229
    %v320 = vunpack.c.l.b16 %v230
    %v321 = vunpack.c.h.b16 %v230
    %v322 = vunpack.c.l.b16 %v231
    %v323 = vunpack.c.l.b16 %v232
    %v324 = vunpack.c.h.b16 %v232
    %v325 = vunpack.c.l.b16 %v233
    %v326 = vunpack.c.l.b16 %v234
    %v327 = vunpack.c.h.b16 %v234
    %v328 = vunpack.c.l.b16 %v235
    %v329 = vunpack.c.l.b16 %v236
    %v330 = vunpack.c.h.b16 %v236
    %v331 = vunpack.c.l.b16 %v237
    %v332 = vunpack.c.l.b16 %v238
    %v333 = vunpack.c.h.b16 %v238
    %v334 = vunpack.c.l.b16 %v239
    %v335 = vunpack.c.l.b16 %v240
    %v336 = vunpack.c.h.b16 %v240
    %v337 = vunpack.c.l.b16 %v241
    %v338 = vunpack.c.l.b16 %v242
    %v339 = vunpack.c.h.b16 %v242
    %v340 = vunpack.c.l.b16 %v243
    %v341 = vpack.c.b16 %v296, %v293
    %v342 = vpack.c.b16 %v297, %v294
    %v343 = vpack.c.b16 %v298, %v295
    %v344 = vpack.c.b16 %v302, %v299
    %v345 = vpack.c.b16 %v303, %v300
    %v346 = vpack.c.b16 %v304, %v301
    %v347 = vpack.c.b16 %v308, %v305
    %v348 = vpack.c.b16 %v309, %v306
    %v349 = vpack.c.b16 %v310, %v307
    %v350 = vpack.c.b16 %v314, %v311
    %v351 = vpack.c.b16 %v315, %v312
    %v352 = vpack.c.b16 %v316, %v313
    %v353 = vpack.c.b16 %v320, %v317
    %v354 = vpack.c.b16 %v321, %v318
    %v355 = vpack.c.b16 %v322, %v319
    %v356 = vpack.c.b16 %v326, %v323
    %v357 = vpack.c.b16 %v327, %v324
    %v358 = vpack.c.b16 %v328, %v325
    %v359 = vpack.c.b16 %v332, %v329
    %v360 = vpack.c.b16 %v333, %v330
    %v361 = vpack.c.b16 %v334, %v331
    %v362 = vpack.c.b16 %v338, %v335
    %v363 = vpack.c.b16 %v339, %v336
    %v364 = vpack.c.b16 %v340, %v337
    %389 = vmatprep.subr.bf16.mxu0 %v342
    %390 = vmatpush1.bf16.msra.mxu0 %v341
    %391 = vmatprep.subr.bf16.mxu0 %v345
    %392 = vmatpush1.bf16.msra.mxu0 %v344
    %393 = vmatprep.subr.bf16.mxu0 %v348
    %394 = vmatpush1.bf16.msra.mxu0 %v347
    %395 = vmatprep.subr.bf16.mxu0 %v351
    %396 = vmatpush1.bf16.msra.mxu0 %v350
    %397 = vmatprep.subr.bf16.mxu0 %v354
    %398 = vmatpush1.bf16.msra.mxu0 %v353
    %399 = vmatprep.subr.bf16.mxu0 %v357
    %400 = vmatpush1.bf16.msra.mxu0 %v356
    %401 = vmatprep.subr.bf16.mxu0 %v360
    %402 = vmatpush1.bf16.msra.mxu0 %v359
    %403 = vmatprep.subr.bf16.mxu0 %v363
    %404 = vmatpush1.bf16.msra.mxu0 %v362
    %405 = vmatprep.subr.bf16.mxu0 0
    %406 = vmatpush1.bf16.msra.mxu0 0
    %407 = vmatprep.subr.bf16.mxu0 0
    %408 = vmatpush1.bf16.msra.mxu0 0
    %409 = vmatprep.subr.bf16.mxu0 0
    %410 = vmatpush1.bf16.msra.mxu0 0
    %411 = vmatprep.subr.bf16.mxu0 0
    %412 = vmatpush1.bf16.msra.mxu0 0
    %413 = vmatprep.subr.bf16.mxu0 0
    %414 = vmatpush1.bf16.msra.mxu0 0
    %415 = vmatprep.subr.bf16.mxu0 0
    %416 = vmatpush1.bf16.msra.mxu0 0
    %417 = vmatprep.subr.bf16.mxu0 0
    %418 = vmatpush1.bf16.msra.mxu0 0
    %419 = vmatprep.subr.bf16.mxu0 0
    %420 = vmatpush1.bf16.msra.mxu0 0
    %421 = vmatprep.mubr.bf16.mxu0 0
    %422 = vmatmul.mubr.bf16.gmra.mrb[0].mxu0 %v210
    %v423 = vpop.f32.mrb[0].mxu0
    %v424 = vadd.f32 %v249, %v423
    %v425 = vpop.f32.mrb[0].mxu0
    %v426 = vadd.f32 %v253, %v425
    %v427 = vpop.f32.mrb[0].mxu0
    %v428 = vadd.f32 %v249, %v427
    %v429 = vpop.f32.mrb[0].mxu0
    %v430 = vadd.f32 %v253, %v429
    %431 = vmatprep.mubr.bf16.mxu0 0
    %432 = vmatmul.mubr.bf16.gmra.mrb[0].mxu0 %v211
    %v433 = vpop.f32.mrb[0].mxu0
    %v434 = vadd.f32 %v249, %v433
    %v435 = vpop.f32.mrb[0].mxu0
    %v436 = vadd.f32 %v253, %v435
    %v437 = vpop.f32.mrb[0].mxu0
    %v438 = vadd.f32 %v249, %v437
    %v439 = vpop.f32.mrb[0].mxu0
    %v440 = vadd.f32 %v253, %v439
    %441 = vdwg.mxu0
    %442 = vmatprep.subr.bf16.mxu0 0
    %443 = vmatpush1.bf16.msra.mxu0 %v343
    %444 = vmatprep.subr.bf16.mxu0 0
    %445 = vmatpush1.bf16.msra.mxu0 %v346
    %446 = vmatprep.subr.bf16.mxu0 0
    %447 = vmatpush1.bf16.msra.mxu0 %v349
    %448 = vmatprep.subr.bf16.mxu0 0
    %449 = vmatpush1.bf16.msra.mxu0 %v352
    %450 = vmatprep.subr.bf16.mxu0 0
    %451 = vmatpush1.bf16.msra.mxu0 %v355
    %452 = vmatprep.subr.bf16.mxu0 0
    %453 = vmatpush1.bf16.msra.mxu0 %v358
    %454 = vmatprep.subr.bf16.mxu0 0
    %455 = vmatpush1.bf16.msra.mxu0 %v361
    %456 = vmatprep.subr.bf16.mxu0 0
    %457 = vmatpush1.bf16.msra.mxu0 %v364
    %458 = vmatprep.subr.bf16.mxu0 0
    %459 = vmatpush1.bf16.msra.mxu0 0
    %460 = vmatprep.subr.bf16.mxu0 0
    %461 = vmatpush1.bf16.msra.mxu0 0
    %462 = vmatprep.subr.bf16.mxu0 0
    %463 = vmatpush1.bf16.msra.mxu0 0
    %464 = vmatprep.subr.bf16.mxu0 0
    %465 = vmatpush1.bf16.msra.mxu0 0
    %466 = vmatprep.subr.bf16.mxu0 0
    %467 = vmatpush1.bf16.msra.mxu0 0
    %468 = vmatprep.subr.bf16.mxu0 0
    %469 = vmatpush1.bf16.msra.mxu0 0
    %470 = vmatprep.subr.bf16.mxu0 0
    %471 = vmatpush1.bf16.msra.mxu0 0
    %472 = vmatprep.subr.bf16.mxu0 0
    %473 = vmatpush1.bf16.msra.mxu0 0
    %474 = vmatprep.mubr.bf16.mxu0 0
    %475 = vmatmul.mubr.bf16.gmra.mrb[0].mxu0 %v210
    %v476 = vpop.f32.mrb[0].mxu0
    %v477 = vadd.f32 %v257, %v476
    %v478 = vpop.f32.mrb[0].mxu0
    %v479 = vpop.f32.mrb[0].mxu0
    %v480 = vadd.f32 %v257, %v479
    %v481 = vpop.f32.mrb[0].mxu0
    %482 = vmatprep.mubr.bf16.mxu0 0
    %483 = vmatmul.mubr.bf16.gmra.mrb[0].mxu0 %v211
    %v484 = vpop.f32.mrb[0].mxu0
    %v485 = vadd.f32 %v257, %v484
    %v486 = vpop.f32.mrb[0].mxu0
    %v487 = vpop.f32.mrb[0].mxu0
    %v488 = vadd.f32 %v257, %v487
    %v489 = vpop.f32.mrb[0].mxu0
    %490 = vdwg.mxu0
    %v491 = vpack.c.bf16 %v428, %v424
    %v492 = vpack.c.bf16 %v438, %v434
    %v493 = vpack.c.bf16 %v430, %v426
    %v494 = vpack.c.bf16 %v440, %v436
    %v495 = vpack.c.bf16 %v480, %v477
    %v496 = vpack.c.bf16 %v488, %v485
    %497 = vmatprep.subr.bf16.mxu0 0
    %498 = vmatpush1.bf16.xpose.msra.mxu0 %v493
    %499 = vmatprep.subr.bf16.mxu0 0
    %500 = vmatpush1.bf16.xpose.msra.mxu0 0
    %501 = vmatprep.subr.bf16.mxu0 0
    %502 = vmatpush1.bf16.xpose.msra.mxu0 0
    %503 = vmatprep.subr.bf16.mxu0 0
    %504 = vmatpush1.bf16.xpose.msra.mxu0 0
    %505 = vmatprep.subr.bf16.mxu0 0
    %506 = vmatpush1.bf16.xpose.msra.mxu0 0
    %507 = vmatprep.subr.bf16.mxu0 0
    %508 = vmatpush1.bf16.xpose.msra.mxu0 0
    %509 = vmatprep.subr.bf16.mxu0 0
    %510 = vmatpush1.bf16.xpose.msra.mxu0 0
    %511 = vmatprep.subr.bf16.mxu0 0
    %512 = vmatpush1.bf16.xpose.msra.mxu0 0
    %513 = vmatprep.subr.bf16.mxu0 0
    %514 = vmatpush1.bf16.xpose.msra.mxu0 0
    %515 = vmatprep.subr.bf16.mxu0 0
    %516 = vmatpush1.bf16.xpose.msra.mxu0 0
    %517 = vmatprep.subr.bf16.mxu0 0
    %518 = vmatpush1.bf16.xpose.msra.mxu0 0
    %519 = vmatprep.subr.bf16.mxu0 0
    %520 = vmatpush1.bf16.xpose.msra.mxu0 0
    %521 = vmatprep.subr.bf16.mxu0 0
    %522 = vmatpush1.bf16.xpose.msra.mxu0 0
    %523 = vmatprep.subr.bf16.mxu0 0
    %524 = vmatpush1.bf16.xpose.msra.mxu0 0
    %525 = vmatprep.subr.bf16.mxu0 0
    %526 = vmatpush1.bf16.xpose.msra.mxu0 0
    %527 = vmatprep.subr.bf16.mxu0 0
    %528 = vmatpush1.bf16.xpose.msra.mxu0 0
    %529 = vmatprep.mubr.bf16.mxu0 0
    %530 = vmatmul.mubr.bf16.gmra.mrb[0].mxu0 %v491
    %v531 = vpop.f32.mrb[0].mxu0
    %v532 = vadd.f32 0.0, %v531
    %v533 = vpop.f32.mrb[0].mxu0
    %v534 = vpop.f32.mrb[0].mxu0
    %v535 = vadd.f32 0.0, %v534
    %v536 = vpop.f32.mrb[0].mxu0
    %537 = vdwg.mxu0
    %538 = vmatprep.subr.bf16.mxu0 0
    %539 = vmatpush1.bf16.xpose.msra.mxu0 %v494
    %540 = vmatprep.subr.bf16.mxu0 0
    %541 = vmatpush1.bf16.xpose.msra.mxu0 0
    %542 = vmatprep.subr.bf16.mxu0 0
    %543 = vmatpush1.bf16.xpose.msra.mxu0 0
    %544 = vmatprep.subr.bf16.mxu0 0
    %545 = vmatpush1.bf16.xpose.msra.mxu0 0
    %546 = vmatprep.subr.bf16.mxu0 0
    %547 = vmatpush1.bf16.xpose.msra.mxu0 0
    %548 = vmatprep.subr.bf16.mxu0 0
    %549 = vmatpush1.bf16.xpose.msra.mxu0 0
    %550 = vmatprep.subr.bf16.mxu0 0
    %551 = vmatpush1.bf16.xpose.msra.mxu0 0
    %552 = vmatprep.subr.bf16.mxu0 0
    %553 = vmatpush1.bf16.xpose.msra.mxu0 0
    %554 = vmatprep.subr.bf16.mxu0 0
    %555 = vmatpush1.bf16.xpose.msra.mxu0 0
    %556 = vmatprep.subr.bf16.mxu0 0
    %557 = vmatpush1.bf16.xpose.msra.mxu0 0
    %558 = vmatprep.subr.bf16.mxu0 0
    %559 = vmatpush1.bf16.xpose.msra.mxu0 0
    %560 = vmatprep.subr.bf16.mxu0 0
    %561 = vmatpush1.bf16.xpose.msra.mxu0 0
    %562 = vmatprep.subr.bf16.mxu0 0
    %563 = vmatpush1.bf16.xpose.msra.mxu0 0
    %564 = vmatprep.subr.bf16.mxu0 0
    %565 = vmatpush1.bf16.xpose.msra.mxu0 0
    %566 = vmatprep.subr.bf16.mxu0 0
    %567 = vmatpush1.bf16.xpose.msra.mxu0 0
    %568 = vmatprep.subr.bf16.mxu0 0
    %569 = vmatpush1.bf16.xpose.msra.mxu0 0
    %570 = vmatprep.mubr.bf16.mxu0 0
    %571 = vmatmul.mubr.bf16.gmra.mrb[0].mxu0 %v492
    %v572 = vpop.f32.mrb[0].mxu0
    %v573 = vadd.f32 0.0, %v572
    %v574 = vpop.f32.mrb[0].mxu0
    %v575 = vpop.f32.mrb[0].mxu0
    %v576 = vadd.f32 0.0, %v575
    %v577 = vpop.f32.mrb[0].mxu0
    %578 = vdwg.mxu0
    %vm579 = vcmask 130048
    %v580 = vsel %vm579, %v532, -inf
    %581 = vmax.xlane.f32.xlu0 %v580
    %v582 = vpop.xlane.xlu0 %581
    %v583 = vsel %vm579, %v535, -inf
    %584 = vmax.xlane.f32.xlu0 %v583
    %v585 = vpop.xlane.xlu0 %584
    %v586 = vsel %vm579, %v573, -inf
    %587 = vmax.xlane.f32.xlu0 %v586
    %v588 = vpop.xlane.xlu0 %587
    %v589 = vsel %vm579, %v576, -inf
    %590 = vmax.xlane.f32.xlu0 %v589
    %v591 = vpop.xlane.xlu0 %590
    %v592 = vsub.f32 %v532, %v582
    %v593 = vsub.f32 %v535, %v585
    %v594 = vsub.f32 %v573, %v588
    %v595 = vsub.f32 %v576, %v591
    %v596 = vmul.f32 %v592, 1.442695
    %v597 = vpow.pop %v596
    %v598 = vmul.f32 %v593, 1.442695
    %v599 = vpow.pop %v598
    %v600 = vmul.f32 %v594, 1.442695
    %v601 = vpow.pop %v600
    %v602 = vmul.f32 %v595, 1.442695
    %v603 = vpow.pop %v602
    %v604 = vsel %vm579, %v597, 0.0
    %605 = vadd.xlane.f32.xlu0 %v604
    %v606 = vpop.xlane.xlu0 %605
    %v607 = vsel %vm579, %v599, 0.0
    %608 = vadd.xlane.f32.xlu0 %v607
    %v609 = vpop.xlane.xlu0 %608
    %v610 = vsel %vm579, %v601, 0.0
    %611 = vadd.xlane.f32.xlu0 %v610
    %v612 = vpop.xlane.xlu0 %611
    %v613 = vsel %vm579, %v603, 0.0
    %614 = vadd.xlane.f32.xlu0 %v613
    %v615 = vpop.xlane.xlu0 %614
    %v616 = vrcp.pop %v606
    %v617 = vrcp.pop %v609
    %v618 = vrcp.pop %v612
    %v619 = vrcp.pop %v615
    %v620 = vmul.f32 %v597, %v616
    %v621 = vmul.f32 %v599, %v617
    %v622 = vmul.f32 %v601, %v618
    %v623 = vmul.f32 %v603, %v619
    %v624 = vpack.c.bf16 %v621, %v620
    %v625 = vpack.c.bf16 %v623, %v622
    %v627 = vsel %vm579, %v624, 0
    %629 = vmatprep.subr.bf16.mxu0 0
    %630 = vmatpush1.bf16.msra.mxu0 %v495
    %631 = vmatprep.subr.bf16.mxu0 0
    %632 = vmatpush1.bf16.msra.mxu0 0
    %633 = vmatprep.subr.bf16.mxu0 0
    %634 = vmatpush1.bf16.msra.mxu0 0
    %635 = vmatprep.subr.bf16.mxu0 0
    %636 = vmatpush1.bf16.msra.mxu0 0
    %637 = vmatprep.subr.bf16.mxu0 0
    %638 = vmatpush1.bf16.msra.mxu0 0
    %639 = vmatprep.subr.bf16.mxu0 0
    %640 = vmatpush1.bf16.msra.mxu0 0
    %641 = vmatprep.subr.bf16.mxu0 0
    %642 = vmatpush1.bf16.msra.mxu0 0
    %643 = vmatprep.subr.bf16.mxu0 0
    %644 = vmatpush1.bf16.msra.mxu0 0
    %645 = vmatprep.subr.bf16.mxu0 0
    %646 = vmatpush1.bf16.msra.mxu0 0
    %647 = vmatprep.subr.bf16.mxu0 0
    %648 = vmatpush1.bf16.msra.mxu0 0
    %649 = vmatprep.subr.bf16.mxu0 0
    %650 = vmatpush1.bf16.msra.mxu0 0
    %651 = vmatprep.subr.bf16.mxu0 0
    %652 = vmatpush1.bf16.msra.mxu0 0
    %653 = vmatprep.subr.bf16.mxu0 0
    %654 = vmatpush1.bf16.msra.mxu0 0
    %655 = vmatprep.subr.bf16.mxu0 0
    %656 = vmatpush1.bf16.msra.mxu0 0
    %657 = vmatprep.subr.bf16.mxu0 0
    %658 = vmatpush1.bf16.msra.mxu0 0
    %659 = vmatprep.subr.bf16.mxu0 0
    %660 = vmatpush1.bf16.msra.mxu0 0
    %661 = vmatprep.mubr.bf16.mxu0 0
    %662 = vmatmul.mubr.bf16.gmra.mrb[0].mxu0 %v627
    %v663 = vpop.f32.mrb[0].mxu0
    %v664 = vadd.f32 0.0, %v663
    %v665 = vpop.f32.mrb[0].mxu0
    %v666 = vpop.f32.mrb[0].mxu0
    %v667 = vadd.f32 0.0, %v666
    %v668 = vpop.f32.mrb[0].mxu0
    %669 = vdwg.mxu0
    %v671 = vsel %vm579, %v625, 0
    %673 = vmatprep.subr.bf16.mxu0 0
    %674 = vmatpush1.bf16.msra.mxu0 %v496
    %675 = vmatprep.subr.bf16.mxu0 0
    %676 = vmatpush1.bf16.msra.mxu0 0
    %677 = vmatprep.subr.bf16.mxu0 0
    %678 = vmatpush1.bf16.msra.mxu0 0
    %679 = vmatprep.subr.bf16.mxu0 0
    %680 = vmatpush1.bf16.msra.mxu0 0
    %681 = vmatprep.subr.bf16.mxu0 0
    %682 = vmatpush1.bf16.msra.mxu0 0
    %683 = vmatprep.subr.bf16.mxu0 0
    %684 = vmatpush1.bf16.msra.mxu0 0
    %685 = vmatprep.subr.bf16.mxu0 0
    %686 = vmatpush1.bf16.msra.mxu0 0
    %687 = vmatprep.subr.bf16.mxu0 0
    %688 = vmatpush1.bf16.msra.mxu0 0
    %689 = vmatprep.subr.bf16.mxu0 0
    %690 = vmatpush1.bf16.msra.mxu0 0
    %691 = vmatprep.subr.bf16.mxu0 0
    %692 = vmatpush1.bf16.msra.mxu0 0
    %693 = vmatprep.subr.bf16.mxu0 0
    %694 = vmatpush1.bf16.msra.mxu0 0
    %695 = vmatprep.subr.bf16.mxu0 0
    %696 = vmatpush1.bf16.msra.mxu0 0
    %697 = vmatprep.subr.bf16.mxu0 0
    %698 = vmatpush1.bf16.msra.mxu0 0
    %699 = vmatprep.subr.bf16.mxu0 0
    %700 = vmatpush1.bf16.msra.mxu0 0
    %701 = vmatprep.subr.bf16.mxu0 0
    %702 = vmatpush1.bf16.msra.mxu0 0
    %703 = vmatprep.subr.bf16.mxu0 0
    %704 = vmatpush1.bf16.msra.mxu0 0
    %705 = vmatprep.mubr.bf16.mxu0 0
    %706 = vmatmul.mubr.bf16.gmra.mrb[0].mxu0 %v671
    %v707 = vpop.f32.mrb[0].mxu0
    %v708 = vadd.f32 0.0, %v707
    %v709 = vpop.f32.mrb[0].mxu0
    %v710 = vpop.f32.mrb[0].mxu0
    %v711 = vadd.f32 0.0, %v710
    %v712 = vpop.f32.mrb[0].mxu0
    %713 = vdwg.mxu0
    %v714 = vpack.c.bf16 %v667, %v664
    %v715 = vpack.c.bf16 %v711, %v708
    %v716 = vld [vmem:[%s7] sm:$0xf]
    %v717 = vld [vmem:[%s7 + $0x4] sm:$0xf]
    %v718 = vld [vmem:[%s7 + $0x8] sm:$0xf]
    %v719 = vld [vmem:[%s7 + $0xc] sm:$0xf]
    %v720 = vld [vmem:[%s7 + $0x10] sm:$0xf]
    %v721 = vld [vmem:[%s7 + $0x14] sm:$0xf]
    %v722 = vld [vmem:[%s7 + $0x18] sm:$0xf]
    %v723 = vld [vmem:[%s7 + $0x1c] sm:$0xf]
    %v724 = vld [vmem:[%s7 + $0x20] sm:$0xf]
    %v725 = vld [vmem:[%s7 + $0x24] sm:$0xf]
    %v726 = vld [vmem:[%s7 + $0x28] sm:$0xf]
    %v727 = vld [vmem:[%s7 + $0x2c] sm:$0xf]
    %v728 = vld [vmem:[%s7 + $0x30] sm:$0xf]
    %v729 = vld [vmem:[%s7 + $0x34] sm:$0xf]
    %v730 = vld [vmem:[%s7 + $0x38] sm:$0xf]
    %v731 = vld [vmem:[%s7 + $0x3c] sm:$0xf]
    %v732 = vld [vmem:[%s8] sm:$0x1]
    %v734 = vlaneseq
    %v735 = vshrl.u32 %v734, 7
    %v736 = vsub.s32 0, %v735
    %v737 = vrot.slane %v732, %v736
    %v755 = vunpack.c.l.b16 %v716
    %v756 = vunpack.c.l.b16 %v717
    %v757 = vunpack.c.l.b16 %v718
    %v758 = vunpack.c.l.b16 %v719
    %v759 = vunpack.c.l.b16 %v720
    %v760 = vunpack.c.l.b16 %v721
    %v761 = vunpack.c.l.b16 %v722
    %v762 = vunpack.c.l.b16 %v723
    %v763 = vunpack.c.l.b16 %v724
    %v764 = vunpack.c.l.b16 %v725
    %v765 = vunpack.c.l.b16 %v726
    %v766 = vunpack.c.l.b16 %v727
    %v767 = vunpack.c.l.b16 %v728
    %v768 = vunpack.c.l.b16 %v729
    %v769 = vunpack.c.l.b16 %v730
    %v770 = vunpack.c.l.b16 %v731
    %v771 = vpack.c.b16 %v756, %v755
    %v772 = vpack.c.b16 %v758, %v757
    %v773 = vpack.c.b16 %v760, %v759
    %v774 = vpack.c.b16 %v762, %v761
    %v775 = vpack.c.b16 %v764, %v763
    %v776 = vpack.c.b16 %v766, %v765
    %v777 = vpack.c.b16 %v768, %v767
    %v778 = vpack.c.b16 %v770, %v769
    %787 = vmatprep.subr.bf16.mxu0 0
    %788 = vmatpush1.bf16.msra.mxu0 %v771
    %789 = vmatprep.subr.bf16.mxu0 0
    %790 = vmatpush1.bf16.msra.mxu0 %v772
    %791 = vmatprep.subr.bf16.mxu0 0
    %792 = vmatpush1.bf16.msra.mxu0 %v773
    %793 = vmatprep.subr.bf16.mxu0 0
    %794 = vmatpush1.bf16.msra.mxu0 %v774
    %795 = vmatprep.subr.bf16.mxu0 0
    %796 = vmatpush1.bf16.msra.mxu0 %v775
    %797 = vmatprep.subr.bf16.mxu0 0
    %798 = vmatpush1.bf16.msra.mxu0 %v776
    %799 = vmatprep.subr.bf16.mxu0 0
    %800 = vmatpush1.bf16.msra.mxu0 %v777
    %801 = vmatprep.subr.bf16.mxu0 0
    %802 = vmatpush1.bf16.msra.mxu0 %v778
    %803 = vmatprep.subr.bf16.mxu0 0
    %804 = vmatpush1.bf16.msra.mxu0 0
    %805 = vmatprep.subr.bf16.mxu0 0
    %806 = vmatpush1.bf16.msra.mxu0 0
    %807 = vmatprep.subr.bf16.mxu0 0
    %808 = vmatpush1.bf16.msra.mxu0 0
    %809 = vmatprep.subr.bf16.mxu0 0
    %810 = vmatpush1.bf16.msra.mxu0 0
    %811 = vmatprep.subr.bf16.mxu0 0
    %812 = vmatpush1.bf16.msra.mxu0 0
    %813 = vmatprep.subr.bf16.mxu0 0
    %814 = vmatpush1.bf16.msra.mxu0 0
    %815 = vmatprep.subr.bf16.mxu0 0
    %816 = vmatpush1.bf16.msra.mxu0 0
    %817 = vmatprep.subr.bf16.mxu0 0
    %818 = vmatpush1.bf16.msra.mxu0 0
    %819 = vmatprep.mubr.bf16.mxu0 0
    %820 = vmatmul.mubr.bf16.gmra.mrb[0].mxu0 %v714
    %v821 = vpop.f32.mrb[0].mxu0
    %v822 = vadd.f32 %v737, %v821
    %v823 = vpop.f32.mrb[0].mxu0
    %v824 = vpop.f32.mrb[0].mxu0
    %v825 = vadd.f32 %v737, %v824
    %v826 = vpop.f32.mrb[0].mxu0
    %827 = vmatprep.mubr.bf16.mxu0 0
    %828 = vmatmul.mubr.bf16.gmra.mrb[0].mxu0 %v715
    %v829 = vpop.f32.mrb[0].mxu0
    %v830 = vadd.f32 %v737, %v829
    %v831 = vpop.f32.mrb[0].mxu0
    %v832 = vpop.f32.mrb[0].mxu0
    %v833 = vadd.f32 %v737, %v832
    %v834 = vpop.f32.mrb[0].mxu0
    %835 = vdwg.mxu0
    %v836 = vadd.f32 %v129, %v822
    %v837 = vadd.f32 %v132, %v825
    %v838 = vadd.f32 %v137, %v830
    %v839 = vadd.f32 %v140, %v833
    %840 = vadd.xlane.f32.xlu0 %v836
    %v841 = vpop.xlane.xlu0 %840
    %842 = vadd.xlane.f32.xlu0 %v837
    %v843 = vpop.xlane.xlu0 %842
    %844 = vadd.xlane.f32.xlu0 %v838
    %v845 = vpop.xlane.xlu0 %844
    %846 = vadd.xlane.f32.xlu0 %v839
    %v847 = vpop.xlane.xlu0 %846
    %v848 = vmul.f32 %v841, %v153
    %v849 = vmul.f32 %v843, %v153
    %v850 = vmul.f32 %v845, %v153
    %v851 = vmul.f32 %v847, %v153
    %v852 = vsub.f32 %v836, %v848
    %v853 = vsub.f32 %v837, %v849
    %v854 = vsub.f32 %v838, %v850
    %v855 = vsub.f32 %v839, %v851
    %v856 = vmul.f32 %v852, %v852
    %v857 = vmul.f32 %v853, %v853
    %v858 = vmul.f32 %v854, %v854
    %v859 = vmul.f32 %v855, %v855
    %860 = vadd.xlane.f32.xlu0 %v856
    %v861 = vpop.xlane.xlu0 %860
    %862 = vadd.xlane.f32.xlu0 %v857
    %v863 = vpop.xlane.xlu0 %862
    %864 = vadd.xlane.f32.xlu0 %v858
    %v865 = vpop.xlane.xlu0 %864
    %866 = vadd.xlane.f32.xlu0 %v859
    %v867 = vpop.xlane.xlu0 %866
    %v868 = vmul.f32 %v861, %v153
    %v869 = vmul.f32 %v863, %v153
    %v870 = vmul.f32 %v865, %v153
    %v871 = vmul.f32 %v867, %v153
    %v872 = vadd.f32 %v868, 1e-05
    %v873 = vadd.f32 %v869, 1e-05
    %v874 = vadd.f32 %v870, 1e-05
    %v875 = vadd.f32 %v871, 1e-05
    %v876 = vrsqrt.pop %v872
    %v877 = vrsqrt.pop %v873
    %v878 = vrsqrt.pop %v874
    %v879 = vrsqrt.pop %v875
    %v880 = vmul.f32 %v852, %v876
    %v881 = vmul.f32 %v853, %v877
    %v882 = vmul.f32 %v854, %v878
    %v883 = vmul.f32 %v855, %v879
    %v884 = vmul.f32 %v880, %v194
    %v885 = vmul.f32 %v881, %v194
    %v886 = vmul.f32 %v882, %v194
    %v887 = vmul.f32 %v883, %v194
    %v888 = vadd.f32 %v884, %v204
    %v889 = vadd.f32 %v885, %v204
    %v890 = vadd.f32 %v886, %v204
    %v891 = vadd.f32 %v887, %v204
    %v892 = vpack.c.bf16 %v889, %v888
    %v893 = vpack.c.bf16 %v891, %v890
    %v894 = vld [vmem:[%s9] sm:$0xff]
    %v895 = vld [vmem:[%s9 + $0x8] sm:$0xff]
    %v896 = vld [vmem:[%s9 + $0x10] sm:$0xff]
    %v897 = vld [vmem:[%s9 + $0x18] sm:$0xff]
    %v898 = vld [vmem:[%s9 + $0x20] sm:$0xff]
    %v899 = vld [vmem:[%s9 + $0x28] sm:$0xff]
    %v900 = vld [vmem:[%s9 + $0x30] sm:$0xff]
    %v901 = vld [vmem:[%s9 + $0x38] sm:$0xff]
    %v902 = vld [vmem:[%s9 + $0x40] sm:$0xff]
    %v903 = vld [vmem:[%s9 + $0x48] sm:$0xff]
    %v904 = vld [vmem:[%s9 + $0x50] sm:$0xff]
    %v905 = vld [vmem:[%s9 + $0x58] sm:$0xff]
    %v906 = vld [vmem:[%s9 + $0x60] sm:$0xff]
    %v907 = vld [vmem:[%s9 + $0x68] sm:$0xff]
    %v908 = vld [vmem:[%s9 + $0x70] sm:$0xff]
    %v909 = vld [vmem:[%s9 + $0x78] sm:$0xff]
    %v910 = vld [vmem:[%s10] sm:$0x3]
    %v912 = vlaneseq
    %v913 = vshrl.u32 %v912, 7
    %v914 = vsub.s32 0, %v913
    %v915 = vrot.slane %v910, %v914
    %v916 = vlaneseq
    %v917 = vshrl.u32 %v916, 7
    %v918 = vsub.s32 1, %v917
    %v919 = vrot.slane %v910, %v918
    %v938 = vunpack.c.l.b16 %v894
    %v939 = vunpack.c.h.b16 %v894
    %v940 = vunpack.c.l.b16 %v895
    %v941 = vunpack.c.h.b16 %v895
    %v942 = vunpack.c.l.b16 %v896
    %v943 = vunpack.c.h.b16 %v896
    %v944 = vunpack.c.l.b16 %v897
    %v945 = vunpack.c.h.b16 %v897
    %v946 = vunpack.c.l.b16 %v898
    %v947 = vunpack.c.h.b16 %v898
    %v948 = vunpack.c.l.b16 %v899
    %v949 = vunpack.c.h.b16 %v899
    %v950 = vunpack.c.l.b16 %v900
    %v951 = vunpack.c.h.b16 %v900
    %v952 = vunpack.c.l.b16 %v901
    %v953 = vunpack.c.h.b16 %v901
    %v954 = vunpack.c.l.b16 %v902
    %v955 = vunpack.c.h.b16 %v902
    %v956 = vunpack.c.l.b16 %v903
    %v957 = vunpack.c.h.b16 %v903
    %v958 = vunpack.c.l.b16 %v904
    %v959 = vunpack.c.h.b16 %v904
    %v960 = vunpack.c.l.b16 %v905
    %v961 = vunpack.c.h.b16 %v905
    %v962 = vunpack.c.l.b16 %v906
    %v963 = vunpack.c.h.b16 %v906
    %v964 = vunpack.c.l.b16 %v907
    %v965 = vunpack.c.h.b16 %v907
    %v966 = vunpack.c.l.b16 %v908
    %v967 = vunpack.c.h.b16 %v908
    %v968 = vunpack.c.l.b16 %v909
    %v969 = vunpack.c.h.b16 %v909
    %v970 = vpack.c.b16 %v940, %v938
    %v971 = vpack.c.b16 %v941, %v939
    %v972 = vpack.c.b16 %v944, %v942
    %v973 = vpack.c.b16 %v945, %v943
    %v974 = vpack.c.b16 %v948, %v946
    %v975 = vpack.c.b16 %v949, %v947
    %v976 = vpack.c.b16 %v952, %v950
    %v977 = vpack.c.b16 %v953, %v951
    %v978 = vpack.c.b16 %v956, %v954
    %v979 = vpack.c.b16 %v957, %v955
    %v980 = vpack.c.b16 %v960, %v958
    %v981 = vpack.c.b16 %v961, %v959
    %v982 = vpack.c.b16 %v964, %v962
    %v983 = vpack.c.b16 %v965, %v963
    %v984 = vpack.c.b16 %v968, %v966
    %v985 = vpack.c.b16 %v969, %v967
    %1002 = vmatprep.subr.bf16.mxu0 %v971
    %1003 = vmatpush1.bf16.msra.mxu0 %v970
    %1004 = vmatprep.subr.bf16.mxu0 %v973
    %1005 = vmatpush1.bf16.msra.mxu0 %v972
    %1006 = vmatprep.subr.bf16.mxu0 %v975
    %1007 = vmatpush1.bf16.msra.mxu0 %v974
    %1008 = vmatprep.subr.bf16.mxu0 %v977
    %1009 = vmatpush1.bf16.msra.mxu0 %v976
    %1010 = vmatprep.subr.bf16.mxu0 %v979
    %1011 = vmatpush1.bf16.msra.mxu0 %v978
    %1012 = vmatprep.subr.bf16.mxu0 %v981
    %1013 = vmatpush1.bf16.msra.mxu0 %v980
    %1014 = vmatprep.subr.bf16.mxu0 %v983
    %1015 = vmatpush1.bf16.msra.mxu0 %v982
    %1016 = vmatprep.subr.bf16.mxu0 %v985
    %1017 = vmatpush1.bf16.msra.mxu0 %v984
    %1018 = vmatprep.subr.bf16.mxu0 0
    %1019 = vmatpush1.bf16.msra.mxu0 0
    %1020 = vmatprep.subr.bf16.mxu0 0
    %1021 = vmatpush1.bf16.msra.mxu0 0
    %1022 = vmatprep.subr.bf16.mxu0 0
    %1023 = vmatpush1.bf16.msra.mxu0 0
    %1024 = vmatprep.subr.bf16.mxu0 0
    %1025 = vmatpush1.bf16.msra.mxu0 0
    %1026 = vmatprep.subr.bf16.mxu0 0
    %1027 = vmatpush1.bf16.msra.mxu0 0
    %1028 = vmatprep.subr.bf16.mxu0 0
    %1029 = vmatpush1.bf16.msra.mxu0 0
    %1030 = vmatprep.subr.bf16.mxu0 0
    %1031 = vmatpush1.bf16.msra.mxu0 0
    %1032 = vmatprep.subr.bf16.mxu0 0
    %1033 = vmatpush1.bf16.msra.mxu0 0
    %1034 = vmatprep.mubr.bf16.mxu0 0
    %1035 = vmatmul.mubr.bf16.gmra.mrb[0].mxu0 %v892
    %v1036 = vpop.f32.mrb[0].mxu0
    %v1037 = vadd.f32 %v915, %v1036
    %v1038 = vpop.f32.mrb[0].mxu0
    %v1039 = vadd.f32 %v919, %v1038
    %v1040 = vpop.f32.mrb[0].mxu0
    %v1041 = vadd.f32 %v915, %v1040
    %v1042 = vpop.f32.mrb[0].mxu0
    %v1043 = vadd.f32 %v919, %v1042
    %1044 = vmatprep.mubr.bf16.mxu0 0
    %1045 = vmatmul.mubr.bf16.gmra.mrb[0].mxu0 %v893
    %v1046 = vpop.f32.mrb[0].mxu0
    %v1047 = vadd.f32 %v915, %v1046
    %v1048 = vpop.f32.mrb[0].mxu0
    %v1049 = vadd.f32 %v919, %v1048
    %v1050 = vpop.f32.mrb[0].mxu0
    %v1051 = vadd.f32 %v915, %v1050
    %v1052 = vpop.f32.mrb[0].mxu0
    %v1053 = vadd.f32 %v919, %v1052
    %1054 = vdwg.mxu0
    %v1055 = vmul.f32 %v1037, 0.5
    %v1056 = vmul.f32 %v1039, 0.5
    %v1057 = vmul.f32 %v1041, 0.5
    %v1058 = vmul.f32 %v1043, 0.5
    %v1059 = vmul.f32 %v1047, 0.5
    %v1060 = vmul.f32 %v1049, 0.5
    %v1061 = vmul.f32 %v1051, 0.5
    %v1062 = vmul.f32 %v1053, 0.5
    %v1063 = vmul.f32 %v1037, 0.044715
    %v1064 = vmul.f32 %v1039, 0.044715
    %v1065 = vmul.f32 %v1041, 0.044715
    %v1066 = vmul.f32 %v1043, 0.044715
    %v1067 = vmul.f32 %v1047, 0.044715
    %v1068 = vmul.f32 %v1049, 0.044715
    %v1069 = vmul.f32 %v1051, 0.044715
    %v1070 = vmul.f32 %v1053, 0.044715
    %v1071 = vmul.f32 %v1063, %v1037
    %v1072 = vmul.f32 %v1064, %v1039
    %v1073 = vmul.f32 %v1065, %v1041
    %v1074 = vmul.f32 %v1066, %v1043
    %v1075 = vmul.f32 %v1067, %v1047
    %v1076 = vmul.f32 %v1068, %v1049
    %v1077 = vmul.f32 %v1069, %v1051
    %v1078 = vmul.f32 %v1070, %v1053
    %v1079 = vmul.f32 %v1071, %v1037
    %v1080 = vmul.f32 %v1072, %v1039
    %v1081 = vmul.f32 %v1073, %v1041
    %v1082 = vmul.f32 %v1074, %v1043
    %v1083 = vmul.f32 %v1075, %v1047
    %v1084 = vmul.f32 %v1076, %v1049
    %v1085 = vmul.f32 %v1077, %v1051
    %v1086 = vmul.f32 %v1078, %v1053
    %v1087 = vadd.f32 %v1037, %v1079
    %v1088 = vadd.f32 %v1039, %v1080
    %v1089 = vadd.f32 %v1041, %v1081
    %v1090 = vadd.f32 %v1043, %v1082
    %v1091 = vadd.f32 %v1047, %v1083
    %v1092 = vadd.f32 %v1049, %v1084
    %v1093 = vadd.f32 %v1051, %v1085
    %v1094 = vadd.f32 %v1053, %v1086
    %v1095 = vmul.f32 %v1087, 0.7978846
    %v1096 = vmul.f32 %v1088, 0.7978846
    %v1097 = vmul.f32 %v1089, 0.7978846
    %v1098 = vmul.f32 %v1090, 0.7978846
    %v1099 = vmul.f32 %v1091, 0.7978846
    %v1100 = vmul.f32 %v1092, 0.7978846
    %v1101 = vmul.f32 %v1093, 0.7978846
    %v1102 = vmul.f32 %v1094, 0.7978846
    %v1103 = vtanh.pop %v1095
    %v1104 = vtanh.pop %v1096
    %v1105 = vtanh.pop %v1097
    %v1106 = vtanh.pop %v1098
    %v1107 = vtanh.pop %v1099
    %v1108 = vtanh.pop %v1100
    %v1109 = vtanh.pop %v1101
    %v1110 = vtanh.pop %v1102
    %v1111 = vadd.f32 %v1103, 1.0
    %v1112 = vadd.f32 %v1104, 1.0
    %v1113 = vadd.f32 %v1105, 1.0
    %v1114 = vadd.f32 %v1106, 1.0
    %v1115 = vadd.f32 %v1107, 1.0
    %v1116 = vadd.f32 %v1108, 1.0
    %v1117 = vadd.f32 %v1109, 1.0
    %v1118 = vadd.f32 %v1110, 1.0
    %v1119 = vmul.f32 %v1055, %v1111
    %v1120 = vmul.f32 %v1056, %v1112
    %v1121 = vmul.f32 %v1057, %v1113
    %v1122 = vmul.f32 %v1058, %v1114
    %v1123 = vmul.f32 %v1059, %v1115
    %v1124 = vmul.f32 %v1060, %v1116
    %v1125 = vmul.f32 %v1061, %v1117
    %v1126 = vmul.f32 %v1062, %v1118
    %v1127 = vpack.c.bf16 %v1121, %v1119
    %v1128 = vpack.c.bf16 %v1122, %v1120
    %v1129 = vpack.c.bf16 %v1125, %v1123
    %v1130 = vpack.c.bf16 %v1126, %v1124
    %v1131 = vld [vmem:[%s11] sm:$0xf]
    %v1132 = vld [vmem:[%s11 + $0x4] sm:$0xf]
    %v1133 = vld [vmem:[%s11 + $0x8] sm:$0xf]
    %v1134 = vld [vmem:[%s11 + $0xc] sm:$0xf]
    %v1135 = vld [vmem:[%s11 + $0x10] sm:$0xf]
    %v1136 = vld [vmem:[%s11 + $0x14] sm:$0xf]
    %v1137 = vld [vmem:[%s11 + $0x18] sm:$0xf]
    %v1138 = vld [vmem:[%s11 + $0x1c] sm:$0xf]
    %v1139 = vld [vmem:[%s11 + $0x20] sm:$0xf]
    %v1140 = vld [vmem:[%s11 + $0x24] sm:$0xf]
    %v1141 = vld [vmem:[%s11 + $0x28] sm:$0xf]
    %v1142 = vld [vmem:[%s11 + $0x2c] sm:$0xf]
    %v1143 = vld [vmem:[%s11 + $0x30] sm:$0xf]
    %v1144 = vld [vmem:[%s11 + $0x34] sm:$0xf]
    %v1145 = vld [vmem:[%s11 + $0x38] sm:$0xf]
    %v1146 = vld [vmem:[%s11 + $0x3c] sm:$0xf]
    %v1147 = vld [vmem:[%s11 + $0x40] sm:$0xf]
    %v1148 = vld [vmem:[%s11 + $0x44] sm:$0xf]
    %v1149 = vld [vmem:[%s11 + $0x48] sm:$0xf]
    %v1150 = vld [vmem:[%s11 + $0x4c] sm:$0xf]
    %v1151 = vld [vmem:[%s11 + $0x50] sm:$0xf]
    %v1152 = vld [vmem:[%s11 + $0x54] sm:$0xf]
    %v1153 = vld [vmem:[%s11 + $0x58] sm:$0xf]
    %v1154 = vld [vmem:[%s11 + $0x5c] sm:$0xf]
    %v1155 = vld [vmem:[%s11 + $0x60] sm:$0xf]
    %v1156 = vld [vmem:[%s11 + $0x64] sm:$0xf]
    %v1157 = vld [vmem:[%s11 + $0x68] sm:$0xf]
    %v1158 = vld [vmem:[%s11 + $0x6c] sm:$0xf]
    %v1159 = vld [vmem:[%s11 + $0x70] sm:$0xf]
    %v1160 = vld [vmem:[%s11 + $0x74] sm:$0xf]
    %v1161 = vld [vmem:[%s11 + $0x78] sm:$0xf]
    %v1162 = vld [vmem:[%s11 + $0x7c] sm:$0xf]
    %v1163 = vld [vmem:[%s12] sm:$0x1]
    %v1165 = vlaneseq
    %v1166 = vshrl.u32 %v1165, 7
    %v1167 = vsub.s32 0, %v1166
    %v1168 = vrot.slane %v1163, %v1167
    %v1202 = vunpack.c.l.b16 %v1131
    %v1203 = vunpack.c.l.b16 %v1132
    %v1204 = vunpack.c.l.b16 %v1133
    %v1205 = vunpack.c.l.b16 %v1134
    %v1206 = vunpack.c.l.b16 %v1135
    %v1207 = vunpack.c.l.b16 %v1136
    %v1208 = vunpack.c.l.b16 %v1137
    %v1209 = vunpack.c.l.b16 %v1138
    %v1210 = vunpack.c.l.b16 %v1139
    %v1211 = vunpack.c.l.b16 %v1140
    %v1212 = vunpack.c.l.b16 %v1141
    %v1213 = vunpack.c.l.b16 %v1142
    %v1214 = vunpack.c.l.b16 %v1143
    %v1215 = vunpack.c.l.b16 %v1144
    %v1216 = vunpack.c.l.b16 %v1145
    %v1217 = vunpack.c.l.b16 %v1146
    %v1218 = vunpack.c.l.b16 %v1147
    %v1219 = vunpack.c.l.b16 %v1148
    %v1220 = vunpack.c.l.b16 %v1149
    %v1221 = vunpack.c.l.b16 %v1150
    %v1222 = vunpack.c.l.b16 %v1151
    %v1223 = vunpack.c.l.b16 %v1152
    %v1224 = vunpack.c.l.b16 %v1153
    %v1225 = vunpack.c.l.b16 %v1154
    %v1226 = vunpack.c.l.b16 %v1155
    %v1227 = vunpack.c.l.b16 %v1156
    %v1228 = vunpack.c.l.b16 %v1157
    %v1229 = vunpack.c.l.b16 %v1158
    %v1230 = vunpack.c.l.b16 %v1159
    %v1231 = vunpack.c.l.b16 %v1160
    %v1232 = vunpack.c.l.b16 %v1161
    %v1233 = vunpack.c.l.b16 %v1162
    %v1234 = vpack.c.b16 %v1203, %v1202
    %v1235 = vpack.c.b16 %v1205, %v1204
    %v1236 = vpack.c.b16 %v1207, %v1206
    %v1237 = vpack.c.b16 %v1209, %v1208
    %v1238 = vpack.c.b16 %v1211, %v1210
    %v1239 = vpack.c.b16 %v1213, %v1212
    %v1240 = vpack.c.b16 %v1215, %v1214
    %v1241 = vpack.c.b16 %v1217, %v1216
    %v1242 = vpack.c.b16 %v1219, %v1218
    %v1243 = vpack.c.b16 %v1221, %v1220
    %v1244 = vpack.c.b16 %v1223, %v1222
    %v1245 = vpack.c.b16 %v1225, %v1224
    %v1246 = vpack.c.b16 %v1227, %v1226
    %v1247 = vpack.c.b16 %v1229, %v1228
    %v1248 = vpack.c.b16 %v1231, %v1230
    %v1249 = vpack.c.b16 %v1233, %v1232
    %1266 = vmatprep.subr.bf16.mxu0 0
    %1267 = vmatpush1.bf16.msra.mxu0 %v1234
    %1268 = vmatprep.subr.bf16.mxu0 0
    %1269 = vmatpush1.bf16.msra.mxu0 %v1235
    %1270 = vmatprep.subr.bf16.mxu0 0
    %1271 = vmatpush1.bf16.msra.mxu0 %v1236
    %1272 = vmatprep.subr.bf16.mxu0 0
    %1273 = vmatpush1.bf16.msra.mxu0 %v1237
    %1274 = vmatprep.subr.bf16.mxu0 0
    %1275 = vmatpush1.bf16.msra.mxu0 %v1238
    %1276 = vmatprep.subr.bf16.mxu0 0
    %1277 = vmatpush1.bf16.msra.mxu0 %v1239
    %1278 = vmatprep.subr.bf16.mxu0 0
    %1279 = vmatpush1.bf16.msra.mxu0 %v1240
    %1280 = vmatprep.subr.bf16.mxu0 0
    %1281 = vmatpush1.bf16.msra.mxu0 %v1241
    %1282 = vmatprep.subr.bf16.mxu0 0
    %1283 = vmatpush1.bf16.msra.mxu0 %v1242
    %1284 = vmatprep.subr.bf16.mxu0 0
    %1285 = vmatpush1.bf16.msra.mxu0 %v1243
    %1286 = vmatprep.subr.bf16.mxu0 0
    %1287 = vmatpush1.bf16.msra.mxu0 %v1244
    %1288 = vmatprep.subr.bf16.mxu0 0
    %1289 = vmatpush1.bf16.msra.mxu0 %v1245
    %1290 = vmatprep.subr.bf16.mxu0 0
    %1291 = vmatpush1.bf16.msra.mxu0 %v1246
    %1292 = vmatprep.subr.bf16.mxu0 0
    %1293 = vmatpush1.bf16.msra.mxu0 %v1247
    %1294 = vmatprep.subr.bf16.mxu0 0
    %1295 = vmatpush1.bf16.msra.mxu0 %v1248
    %1296 = vmatprep.subr.bf16.mxu0 0
    %1297 = vmatpush1.bf16.msra.mxu0 %v1249
    %1298 = vmatprep.mubr.bf16.mxu0 %v1128
    %1299 = vmatmul.mubr.bf16.gmra.mrb[0].mxu0 %v1127
    %v1300 = vpop.f32.mrb[0].mxu0
    %v1301 = vadd.f32 %v1168, %v1300
    %v1302 = vpop.f32.mrb[0].mxu0
    %v1303 = vpop.f32.mrb[0].mxu0
    %v1304 = vadd.f32 %v1168, %v1303
    %v1305 = vpop.f32.mrb[0].mxu0
    %1306 = vmatprep.mubr.bf16.mxu0 %v1130
    %1307 = vmatmul.mubr.bf16.gmra.mrb[0].mxu0 %v1129
    %v1308 = vpop.f32.mrb[0].mxu0
    %v1309 = vadd.f32 %v1168, %v1308
    %v1310 = vpop.f32.mrb[0].mxu0
    %v1311 = vpop.f32.mrb[0].mxu0
    %v1312 = vadd.f32 %v1168, %v1311
    %v1313 = vpop.f32.mrb[0].mxu0
    %1314 = vdwg.mxu0
    %v1315 = vadd.f32 %v836, %v1301
    %v1316 = vadd.f32 %v837, %v1304
    %v1317 = vadd.f32 %v838, %v1309
    %v1318 = vadd.f32 %v839, %v1312
    %s1319 = scalar_lea.vmem %s3, 1
    %v1320 = vld [vmem:[%s1319] sm:$0x1]
    %s1321 = scalar_lea.vmem %s4, 1
    %v1322 = vld [vmem:[%s1321] sm:$0x1]
    %1323 = vadd.xlane.f32.xlu0 %v1315
    %v1324 = vpop.xlane.xlu0 %1323
    %1325 = vadd.xlane.f32.xlu0 %v1316
    %v1326 = vpop.xlane.xlu0 %1325
    %1327 = vadd.xlane.f32.xlu0 %v1317
    %v1328 = vpop.xlane.xlu0 %1327
    %1329 = vadd.xlane.f32.xlu0 %v1318
    %v1330 = vpop.xlane.xlu0 %1329
    %v1331 = vmul.f32 %v1324, %v153
    %v1332 = vmul.f32 %v1326, %v153
    %v1333 = vmul.f32 %v1328, %v153
    %v1334 = vmul.f32 %v1330, %v153
    %v1335 = vsub.f32 %v1315, %v1331
    %v1336 = vsub.f32 %v1316, %v1332
    %v1337 = vsub.f32 %v1317, %v1333
    %v1338 = vsub.f32 %v1318, %v1334
    %v1339 = vmul.f32 %v1335, %v1335
    %v1340 = vmul.f32 %v1336, %v1336
    %v1341 = vmul.f32 %v1337, %v1337
    %v1342 = vmul.f32 %v1338, %v1338
    %1343 = vadd.xlane.f32.xlu0 %v1339
    %v1344 = vpop.xlane.xlu0 %1343
    %1345 = vadd.xlane.f32.xlu0 %v1340
    %v1346 = vpop.xlane.xlu0 %1345
    %1347 = vadd.xlane.f32.xlu0 %v1341
    %v1348 = vpop.xlane.xlu0 %1347
    %1349 = vadd.xlane.f32.xlu0 %v1342
    %v1350 = vpop.xlane.xlu0 %1349
    %v1351 = vmul.f32 %v1344, %v153
    %v1352 = vmul.f32 %v1346, %v153
    %v1353 = vmul.f32 %v1348, %v153
    %v1354 = vmul.f32 %v1350, %v153
    %v1355 = vadd.f32 %v1351, 1e-05
    %v1356 = vadd.f32 %v1352, 1e-05
    %v1357 = vadd.f32 %v1353, 1e-05
    %v1358 = vadd.f32 %v1354, 1e-05
    %v1359 = vrsqrt.pop %v1355
    %v1360 = vrsqrt.pop %v1356
    %v1361 = vrsqrt.pop %v1357
    %v1362 = vrsqrt.pop %v1358
    %v1363 = vmul.f32 %v1335, %v1359
    %v1364 = vmul.f32 %v1336, %v1360
    %v1365 = vmul.f32 %v1337, %v1361
    %v1366 = vmul.f32 %v1338, %v1362
    %v1368 = vlaneseq
    %v1369 = vshrl.u32 %v1368, 7
    %v1370 = vsub.s32 0, %v1369
    %v1371 = vrot.slane %v1320, %v1370
    %v1373 = vmul.f32 %v1363, %v1371
    %v1374 = vmul.f32 %v1364, %v1371
    %v1375 = vmul.f32 %v1365, %v1371
    %v1376 = vmul.f32 %v1366, %v1371
    %v1378 = vlaneseq
    %v1379 = vshrl.u32 %v1378, 7
    %v1380 = vsub.s32 0, %v1379
    %v1381 = vrot.slane %v1322, %v1380
    %v1383 = vadd.f32 %v1373, %v1381
    %v1384 = vadd.f32 %v1374, %v1381
    %v1385 = vadd.f32 %v1375, %v1381
    %v1386 = vadd.f32 %v1376, %v1381
    %v1387 = vpack.c.bf16 %v1384, %v1383
    %v1388 = vpack.c.bf16 %v1386, %v1385
    %s1389 = scalar_lea.vmem %s5, 192
    %v1390 = vld [vmem:[%s1389] sm:$0xff]
    %v1391 = vld [vmem:[%s1389 + $0x8] sm:$0xf]
    %v1392 = vld [vmem:[%s1389 + $0xc] sm:$0xff]
    %v1393 = vld [vmem:[%s1389 + $0x14] sm:$0xf]
    %v1394 = vld [vmem:[%s1389 + $0x18] sm:$0xff]
    %v1395 = vld [vmem:[%s1389 + $0x20] sm:$0xf]
    %v1396 = vld [vmem:[%s1389 + $0x24] sm:$0xff]
    %v1397 = vld [vmem:[%s1389 + $0x2c] sm:$0xf]
    %v1398 = vld [vmem:[%s1389 + $0x30] sm:$0xff]
    %v1399 = vld [vmem:[%s1389 + $0x38] sm:$0xf]
    %v1400 = vld [vmem:[%s1389 + $0x3c] sm:$0xff]
    %v1401 = vld [vmem:[%s1389 + $0x44] sm:$0xf]
    %v1402 = vld [vmem:[%s1389 + $0x48] sm:$0xff]
    %v1403 = vld [vmem:[%s1389 + $0x50] sm:$0xf]
    %v1404 = vld [vmem:[%s1389 + $0x54] sm:$0xff]
    %v1405 = vld [vmem:[%s1389 + $0x5c] sm:$0xf]
    %v1406 = vld [vmem:[%s1389 + $0x60] sm:$0xff]
    %v1407 = vld [vmem:[%s1389 + $0x68] sm:$0xf]
    %v1408 = vld [vmem:[%s1389 + $0x6c] sm:$0xff]
    %v1409 = vld [vmem:[%s1389 + $0x74] sm:$0xf]
    %v1410 = vld [vmem:[%s1389 + $0x78] sm:$0xff]
    %v1411 = vld [vmem:[%s1389 + $0x80] sm:$0xf]
    %v1412 = vld [vmem:[%s1389 + $0x84] sm:$0xff]
    %v1413 = vld [vmem:[%s1389 + $0x8c] sm:$0xf]
    %v1414 = vld [vmem:[%s1389 + $0x90] sm:$0xff]
    %v1415 = vld [vmem:[%s1389 + $0x98] sm:$0xf]
    %v1416 = vld [vmem:[%s1389 + $0x9c] sm:$0xff]
    %v1417 = vld [vmem:[%s1389 + $0xa4] sm:$0xf]
    %v1418 = vld [vmem:[%s1389 + $0xa8] sm:$0xff]
    %v1419 = vld [vmem:[%s1389 + $0xb0] sm:$0xf]
    %v1420 = vld [vmem:[%s1389 + $0xb4] sm:$0xff]
    %v1421 = vld [vmem:[%s1389 + $0xbc] sm:$0xf]
    %s1422 = scalar_lea.vmem %s6, 3
    %v1423 = vld [vmem:[%s1422] sm:$0x7]
    %v1425 = vlaneseq
    %v1426 = vshrl.u32 %v1425, 7
    %v1427 = vsub.s32 0, %v1426
    %v1428 = vrot.slane %v1423, %v1427
    %v1429 = vlaneseq
    %v1430 = vshrl.u32 %v1429, 7
    %v1431 = vsub.s32 1, %v1430
    %v1432 = vrot.slane %v1423, %v1431
    %v1433 = vlaneseq
    %v1434 = vshrl.u32 %v1433, 7
    %v1435 = vsub.s32 2, %v1434
    %v1436 = vrot.slane %v1423, %v1435
    %v1472 = vunpack.c.l.b16 %v1390
    %v1473 = vunpack.c.h.b16 %v1390
    %v1474 = vunpack.c.l.b16 %v1391
    %v1475 = vunpack.c.l.b16 %v1392
    %v1476 = vunpack.c.h.b16 %v1392
    %v1477 = vunpack.c.l.b16 %v1393
    %v1478 = vunpack.c.l.b16 %v1394
    %v1479 = vunpack.c.h.b16 %v1394
    %v1480 = vunpack.c.l.b16 %v1395
    %v1481 = vunpack.c.l.b16 %v1396
    %v1482 = vunpack.c.h.b16 %v1396
    %v1483 = vunpack.c.l.b16 %v1397
    %v1484 = vunpack.c.l.b16 %v1398
    %v1485 = vunpack.c.h.b16 %v1398
    %v1486 = vunpack.c.l.b16 %v1399
    %v1487 = vunpack.c.l.b16 %v1400
    %v1488 = vunpack.c.h.b16 %v1400
    %v1489 = vunpack.c.l.b16 %v1401
    %v1490 = vunpack.c.l.b16 %v1402
    %v1491 = vunpack.c.h.b16 %v1402
    %v1492 = vunpack.c.l.b16 %v1403
    %v1493 = vunpack.c.l.b16 %v1404
    %v1494 = vunpack.c.h.b16 %v1404
    %v1495 = vunpack.c.l.b16 %v1405
    %v1496 = vunpack.c.l.b16 %v1406
    %v1497 = vunpack.c.h.b16 %v1406
    %v1498 = vunpack.c.l.b16 %v1407
    %v1499 = vunpack.c.l.b16 %v1408
    %v1500 = vunpack.c.h.b16 %v1408
    %v1501 = vunpack.c.l.b16 %v1409
    %v1502 = vunpack.c.l.b16 %v1410
    %v1503 = vunpack.c.h.b16 %v1410
    %v1504 = vunpack.c.l.b16 %v1411
    %v1505 = vunpack.c.l.b16 %v1412
    %v1506 = vunpack.c.h.b16 %v1412
    %v1507 = vunpack.c.l.b16 %v1413
    %v1508 = vunpack.c.l.b16 %v1414
    %v1509 = vunpack.c.h.b16 %v1414
    %v1510 = vunpack.c.l.b16 %v1415
    %v1511 = vunpack.c.l.b16 %v1416
    %v1512 = vunpack.c.h.b16 %v1416
    %v1513 = vunpack.c.l.b16 %v1417
    %v1514 = vunpack.c.l.b16 %v1418
    %v1515 = vunpack.c.h.b16 %v1418
    %v1516 = vunpack.c.l.b16 %v1419
    %v1517 = vunpack.c.l.b16 %v1420
    %v1518 = vunpack.c.h.b16 %v1420
    %v1519 = vunpack.c.l.b16 %v1421
    %v1520 = vpack.c.b16 %v1475, %v1472
    %v1521 = vpack.c.b16 %v1476, %v1473
    %v1522 = vpack.c.b16 %v1477, %v1474
    %v1523 = vpack.c.b16 %v1481, %v1478
    %v1524 = vpack.c.b16 %v1482, %v1479
    %v1525 = vpack.c.b16 %v1483, %v1480
    %v1526 = vpack.c.b16 %v1487, %v1484
    %v1527 = vpack.c.b16 %v1488, %v1485
    %v1528 = vpack.c.b16 %v1489, %v1486
    %v1529 = vpack.c.b16 %v1493, %v1490
    %v1530 = vpack.c.b16 %v1494, %v1491
    %v1531 = vpack.c.b16 %v1495, %v1492
    %v1532 = vpack.c.b16 %v1499, %v1496
    %v1533 = vpack.c.b16 %v1500, %v1497
    %v1534 = vpack.c.b16 %v1501, %v1498
    %v1535 = vpack.c.b16 %v1505, %v1502
    %v1536 = vpack.c.b16 %v1506, %v1503
    %v1537 = vpack.c.b16 %v1507, %v1504
    %v1538 = vpack.c.b16 %v1511, %v1508
    %v1539 = vpack.c.b16 %v1512, %v1509
    %v1540 = vpack.c.b16 %v1513, %v1510
    %v1541 = vpack.c.b16 %v1517, %v1514
    %v1542 = vpack.c.b16 %v1518, %v1515
    %v1543 = vpack.c.b16 %v1519, %v1516
    %1568 = vmatprep.subr.bf16.mxu0 %v1521
    %1569 = vmatpush1.bf16.msra.mxu0 %v1520
    %1570 = vmatprep.subr.bf16.mxu0 %v1524
    %1571 = vmatpush1.bf16.msra.mxu0 %v1523
    %1572 = vmatprep.subr.bf16.mxu0 %v1527
    %1573 = vmatpush1.bf16.msra.mxu0 %v1526
    %1574 = vmatprep.subr.bf16.mxu0 %v1530
    %1575 = vmatpush1.bf16.msra.mxu0 %v1529
    %1576 = vmatprep.subr.bf16.mxu0 %v1533
    %1577 = vmatpush1.bf16.msra.mxu0 %v1532
    %1578 = vmatprep.subr.bf16.mxu0 %v1536
    %1579 = vmatpush1.bf16.msra.mxu0 %v1535
    %1580 = vmatprep.subr.bf16.mxu0 %v1539
    %1581 = vmatpush1.bf16.msra.mxu0 %v1538
    %1582 = vmatprep.subr.bf16.mxu0 %v1542
    %1583 = vmatpush1.bf16.msra.mxu0 %v1541
    %1584 = vmatprep.subr.bf16.mxu0 0
    %1585 = vmatpush1.bf16.msra.mxu0 0
    %1586 = vmatprep.subr.bf16.mxu0 0
    %1587 = vmatpush1.bf16.msra.mxu0 0
    %1588 = vmatprep.subr.bf16.mxu0 0
    %1589 = vmatpush1.bf16.msra.mxu0 0
    %1590 = vmatprep.subr.bf16.mxu0 0
    %1591 = vmatpush1.bf16.msra.mxu0 0
    %1592 = vmatprep.subr.bf16.mxu0 0
    %1593 = vmatpush1.bf16.msra.mxu0 0
    %1594 = vmatprep.subr.bf16.mxu0 0
    %1595 = vmatpush1.bf16.msra.mxu0 0
    %1596 = vmatprep.subr.bf16.mxu0 0
    %1597 = vmatpush1.bf16.msra.mxu0 0
    %1598 = vmatprep.subr.bf16.mxu0 0
    %1599 = vmatpush1.bf16.msra.mxu0 0
    %1600 = vmatprep.mubr.bf16.mxu0 0
    %1601 = vmatmul.mubr.bf16.gmra.mrb[0].mxu0 %v1387
    %v1602 = vpop.f32.mrb[0].mxu0
    %v1603 = vadd.f32 %v1428, %v1602
    %v1604 = vpop.f32.mrb[0].mxu0
    %v1605 = vadd.f32 %v1432, %v1604
    %v1606 = vpop.f32.mrb[0].mxu0
    %v1607 = vadd.f32 %v1428, %v1606
    %v1608 = vpop.f32.mrb[0].mxu0
    %v1609 = vadd.f32 %v1432, %v1608
    %1610 = vmatprep.mubr.bf16.mxu0 0
    %1611 = vmatmul.mubr.bf16.gmra.mrb[0].mxu0 %v1388
    %v1612 = vpop.f32.mrb[0].mxu0
    %v1613 = vadd.f32 %v1428, %v1612
    %v1614 = vpop.f32.mrb[0].mxu0
    %v1615 = vadd.f32 %v1432, %v1614
    %v1616 = vpop.f32.mrb[0].mxu0
    %v1617 = vadd.f32 %v1428, %v1616
    %v1618 = vpop.f32.mrb[0].mxu0
    %v1619 = vadd.f32 %v1432, %v1618
    %1620 = vdwg.mxu0
    %1621 = vmatprep.subr.bf16.mxu0 0
    %1622 = vmatpush1.bf16.msra.mxu0 %v1522
    %1623 = vmatprep.subr.bf16.mxu0 0
    %1624 = vmatpush1.bf16.msra.mxu0 %v1525
    %1625 = vmatprep.subr.bf16.mxu0 0
    %1626 = vmatpush1.bf16.msra.mxu0 %v1528
    %1627 = vmatprep.subr.bf16.mxu0 0
    %1628 = vmatpush1.bf16.msra.mxu0 %v1531
    %1629 = vmatprep.subr.bf16.mxu0 0
    %1630 = vmatpush1.bf16.msra.mxu0 %v1534
    %1631 = vmatprep.subr.bf16.mxu0 0
    %1632 = vmatpush1.bf16.msra.mxu0 %v1537
    %1633 = vmatprep.subr.bf16.mxu0 0
    %1634 = vmatpush1.bf16.msra.mxu0 %v1540
    %1635 = vmatprep.subr.bf16.mxu0 0
    %1636 = vmatpush1.bf16.msra.mxu0 %v1543
    %1637 = vmatprep.subr.bf16.mxu0 0
    %1638 = vmatpush1.bf16.msra.mxu0 0
    %1639 = vmatprep.subr.bf16.mxu0 0
    %1640 = vmatpush1.bf16.msra.mxu0 0
    %1641 = vmatprep.subr.bf16.mxu0 0
    %1642 = vmatpush1.bf16.msra.mxu0 0
    %1643 = vmatprep.subr.bf16.mxu0 0
    %1644 = vmatpush1.bf16.msra.mxu0 0
    %1645 = vmatprep.subr.bf16.mxu0 0
    %1646 = vmatpush1.bf16.msra.mxu0 0
    %1647 = vmatprep.subr.bf16.mxu0 0
    %1648 = vmatpush1.bf16.msra.mxu0 0
    %1649 = vmatprep.subr.bf16.mxu0 0
    %1650 = vmatpush1.bf16.msra.mxu0 0
    %1651 = vmatprep.subr.bf16.mxu0 0
    %1652 = vmatpush1.bf16.msra.mxu0 0
    %1653 = vmatprep.mubr.bf16.mxu0 0
    %1654 = vmatmul.mubr.bf16.gmra.mrb[0].mxu0 %v1387
    %v1655 = vpop.f32.mrb[0].mxu0
    %v1656 = vadd.f32 %v1436, %v1655
    %v1657 = vpop.f32.mrb[0].mxu0
    %v1658 = vpop.f32.mrb[0].mxu0
    %v1659 = vadd.f32 %v1436, %v1658
    %v1660 = vpop.f32.mrb[0].mxu0
    %1661 = vmatprep.mubr.bf16.mxu0 0
    %1662 = vmatmul.mubr.bf16.gmra.mrb[0].mxu0 %v1388
    %v1663 = vpop.f32.mrb[0].mxu0
    %v1664 = vadd.f32 %v1436, %v1663
    %v1665 = vpop.f32.mrb[0].mxu0
    %v1666 = vpop.f32.mrb[0].mxu0
    %v1667 = vadd.f32 %v1436, %v1666
    %v1668 = vpop.f32.mrb[0].mxu0
    %1669 = vdwg.mxu0
    %v1670 = vpack.c.bf16 %v1607, %v1603
    %v1671 = vpack.c.bf16 %v1617, %v1613
    %v1672 = vpack.c.bf16 %v1609, %v1605
    %v1673 = vpack.c.bf16 %v1619, %v1615
    %v1674 = vpack.c.bf16 %v1659, %v1656
    %v1675 = vpack.c.bf16 %v1667, %v1664
    %1676 = vmatprep.subr.bf16.mxu0 0
    %1677 = vmatpush1.bf16.xpose.msra.mxu0 %v1672
    %1678 = vmatprep.subr.bf16.mxu0 0
    %1679 = vmatpush1.bf16.xpose.msra.mxu0 0
    %1680 = vmatprep.subr.bf16.mxu0 0
    %1681 = vmatpush1.bf16.xpose.msra.mxu0 0
    %1682 = vmatprep.subr.bf16.mxu0 0
    %1683 = vmatpush1.bf16.xpose.msra.mxu0 0
    %1684 = vmatprep.subr.bf16.mxu0 0
    %1685 = vmatpush1.bf16.xpose.msra.mxu0 0
    %1686 = vmatprep.subr.bf16.mxu0 0
    %1687 = vmatpush1.bf16.xpose.msra.mxu0 0
    %1688 = vmatprep.subr.bf16.mxu0 0
    %1689 = vmatpush1.bf16.xpose.msra.mxu0 0
    %1690 = vmatprep.subr.bf16.mxu0 0
    %1691 = vmatpush1.bf16.xpose.msra.mxu0 0
    %1692 = vmatprep.subr.bf16.mxu0 0
    %1693 = vmatpush1.bf16.xpose.msra.mxu0 0
    %1694 = vmatprep.subr.bf16.mxu0 0
    %1695 = vmatpush1.bf16.xpose.msra.mxu0 0
    %1696 = vmatprep.subr.bf16.mxu0 0
    %1697 = vmatpush1.bf16.xpose.msra.mxu0 0
    %1698 = vmatprep.subr.bf16.mxu0 0
    %1699 = vmatpush1.bf16.xpose.msra.mxu0 0
    %1700 = vmatprep.subr.bf16.mxu0 0
    %1701 = vmatpush1.bf16.xpose.msra.mxu0 0
    %1702 = vmatprep.subr.bf16.mxu0 0
    %1703 = vmatpush1.bf16.xpose.msra.mxu0 0
    %1704 = vmatprep.subr.bf16.mxu0 0
    %1705 = vmatpush1.bf16.xpose.msra.mxu0 0
    %1706 = vmatprep.subr.bf16.mxu0 0
    %1707 = vmatpush1.bf16.xpose.msra.mxu0 0
    %1708 = vmatprep.mubr.bf16.mxu0 0
    %1709 = vmatmul.mubr.bf16.gmra.mrb[0].mxu0 %v1670
    %v1710 = vpop.f32.mrb[0].mxu0
    %v1711 = vadd.f32 0.0, %v1710
    %v1712 = vpop.f32.mrb[0].mxu0
    %v1713 = vpop.f32.mrb[0].mxu0
    %v1714 = vadd.f32 0.0, %v1713
    %v1715 = vpop.f32.mrb[0].mxu0
    %1716 = vdwg.mxu0
    %1717 = vmatprep.subr.bf16.mxu0 0
    %1718 = vmatpush1.bf16.xpose.msra.mxu0 %v1673
    %1719 = vmatprep.subr.bf16.mxu0 0
    %1720 = vmatpush1.bf16.xpose.msra.mxu0 0
    %1721 = vmatprep.subr.bf16.mxu0 0
    %1722 = vmatpush1.bf16.xpose.msra.mxu0 0
    %1723 = vmatprep.subr.bf16.mxu0 0
    %1724 = vmatpush1.bf16.xpose.msra.mxu0 0
    %1725 = vmatprep.subr.bf16.mxu0 0
    %1726 = vmatpush1.bf16.xpose.msra.mxu0 0
    %1727 = vmatprep.subr.bf16.mxu0 0
    %1728 = vmatpush1.bf16.xpose.msra.mxu0 0
    %1729 = vmatprep.subr.bf16.mxu0 0
    %1730 = vmatpush1.bf16.xpose.msra.mxu0 0
    %1731 = vmatprep.subr.bf16.mxu0 0
    %1732 = vmatpush1.bf16.xpose.msra.mxu0 0
    %1733 = vmatprep.subr.bf16.mxu0 0
    %1734 = vmatpush1.bf16.xpose.msra.mxu0 0
    %1735 = vmatprep.subr.bf16.mxu0 0
    %1736 = vmatpush1.bf16.xpose.msra.mxu0 0
    %1737 = vmatprep.subr.bf16.mxu0 0
    %1738 = vmatpush1.bf16.xpose.msra.mxu0 0
    %1739 = vmatprep.subr.bf16.mxu0 0
    %1740 = vmatpush1.bf16.xpose.msra.mxu0 0
    %1741 = vmatprep.subr.bf16.mxu0 0
    %1742 = vmatpush1.bf16.xpose.msra.mxu0 0
    %1743 = vmatprep.subr.bf16.mxu0 0
    %1744 = vmatpush1.bf16.xpose.msra.mxu0 0
    %1745 = vmatprep.subr.bf16.mxu0 0
    %1746 = vmatpush1.bf16.xpose.msra.mxu0 0
    %1747 = vmatprep.subr.bf16.mxu0 0
    %1748 = vmatpush1.bf16.xpose.msra.mxu0 0
    %1749 = vmatprep.mubr.bf16.mxu0 0
    %1750 = vmatmul.mubr.bf16.gmra.mrb[0].mxu0 %v1671
    %v1751 = vpop.f32.mrb[0].mxu0
    %v1752 = vadd.f32 0.0, %v1751
    %v1753 = vpop.f32.mrb[0].mxu0
    %v1754 = vpop.f32.mrb[0].mxu0
    %v1755 = vadd.f32 0.0, %v1754
    %v1756 = vpop.f32.mrb[0].mxu0
    %1757 = vdwg.mxu0
    %v1758 = vsel %vm579, %v1711, -inf
    %1759 = vmax.xlane.f32.xlu0 %v1758
    %v1760 = vpop.xlane.xlu0 %1759
    %v1761 = vsel %vm579, %v1714, -inf
    %1762 = vmax.xlane.f32.xlu0 %v1761
    %v1763 = vpop.xlane.xlu0 %1762
    %v1764 = vsel %vm579, %v1752, -inf
    %1765 = vmax.xlane.f32.xlu0 %v1764
    %v1766 = vpop.xlane.xlu0 %1765
    %v1767 = vsel %vm579, %v1755, -inf
    %1768 = vmax.xlane.f32.xlu0 %v1767
    %v1769 = vpop.xlane.xlu0 %1768
    %v1770 = vsub.f32 %v1711, %v1760
    %v1771 = vsub.f32 %v1714, %v1763
    %v1772 = vsub.f32 %v1752, %v1766
    %v1773 = vsub.f32 %v1755, %v1769
    %v1774 = vmul.f32 %v1770, 1.442695
    %v1775 = vpow.pop %v1774
    %v1776 = vmul.f32 %v1771, 1.442695
    %v1777 = vpow.pop %v1776
    %v1778 = vmul.f32 %v1772, 1.442695
    %v1779 = vpow.pop %v1778
    %v1780 = vmul.f32 %v1773, 1.442695
    %v1781 = vpow.pop %v1780
    %v1782 = vsel %vm579, %v1775, 0.0
    %1783 = vadd.xlane.f32.xlu0 %v1782
    %v1784 = vpop.xlane.xlu0 %1783
    %v1785 = vsel %vm579, %v1777, 0.0
    %1786 = vadd.xlane.f32.xlu0 %v1785
    %v1787 = vpop.xlane.xlu0 %1786
    %v1788 = vsel %vm579, %v1779, 0.0
    %1789 = vadd.xlane.f32.xlu0 %v1788
    %v1790 = vpop.xlane.xlu0 %1789
    %v1791 = vsel %vm579, %v1781, 0.0
    %1792 = vadd.xlane.f32.xlu0 %v1791
    %v1793 = vpop.xlane.xlu0 %1792
    %v1794 = vrcp.pop %v1784
    %v1795 = vrcp.pop %v1787
    %v1796 = vrcp.pop %v1790
    %v1797 = vrcp.pop %v1793
    %v1798 = vmul.f32 %v1775, %v1794
    %v1799 = vmul.f32 %v1777, %v1795
    %v1800 = vmul.f32 %v1779, %v1796
    %v1801 = vmul.f32 %v1781, %v1797
    %v1802 = vpack.c.bf16 %v1799, %v1798
    %v1803 = vpack.c.bf16 %v1801, %v1800
    %v1805 = vsel %vm579, %v1802, 0
    %1807 = vmatprep.subr.bf16.mxu0 0
    %1808 = vmatpush1.bf16.msra.mxu0 %v1674
    %1809 = vmatprep.subr.bf16.mxu0 0
    %1810 = vmatpush1.bf16.msra.mxu0 0
    %1811 = vmatprep.subr.bf16.mxu0 0
    %1812 = vmatpush1.bf16.msra.mxu0 0
    %1813 = vmatprep.subr.bf16.mxu0 0
    %1814 = vmatpush1.bf16.msra.mxu0 0
    %1815 = vmatprep.subr.bf16.mxu0 0
    %1816 = vmatpush1.bf16.msra.mxu0 0
    %1817 = vmatprep.subr.bf16.mxu0 0
    %1818 = vmatpush1.bf16.msra.mxu0 0
    %1819 = vmatprep.subr.bf16.mxu0 0
    %1820 = vmatpush1.bf16.msra.mxu0 0
    %1821 = vmatprep.subr.bf16.mxu0 0
    %1822 = vmatpush1.bf16.msra.mxu0 0
    %1823 = vmatprep.subr.bf16.mxu0 0
    %1824 = vmatpush1.bf16.msra.mxu0 0
    %1825 = vmatprep.subr.bf16.mxu0 0
    %1826 = vmatpush1.bf16.msra.mxu0 0
    %1827 = vmatprep.subr.bf16.mxu0 0
    %1828 = vmatpush1.bf16.msra.mxu0 0
    %1829 = vmatprep.subr.bf16.mxu0 0
    %1830 = vmatpush1.bf16.msra.mxu0 0
    %1831 = vmatprep.subr.bf16.mxu0 0
    %1832 = vmatpush1.bf16.msra.mxu0 0
    %1833 = vmatprep.subr.bf16.mxu0 0
    %1834 = vmatpush1.bf16.msra.mxu0 0
    %1835 = vmatprep.subr.bf16.mxu0 0
    %1836 = vmatpush1.bf16.msra.mxu0 0
    %1837 = vmatprep.subr.bf16.mxu0 0
    %1838 = vmatpush1.bf16.msra.mxu0 0
    %1839 = vmatprep.mubr.bf16.mxu0 0
    %1840 = vmatmul.mubr.bf16.gmra.mrb[0].mxu0 %v1805
    %v1841 = vpop.f32.mrb[0].mxu0
    %v1842 = vadd.f32 0.0, %v1841
    %v1843 = vpop.f32.mrb[0].mxu0
    %v1844 = vpop.f32.mrb[0].mxu0
    %v1845 = vadd.f32 0.0, %v1844
    %v1846 = vpop.f32.mrb[0].mxu0
    %1847 = vdwg.mxu0
    %v1849 = vsel %vm579, %v1803, 0
    %1851 = vmatprep.subr.bf16.mxu0 0
    %1852 = vmatpush1.bf16.msra.mxu0 %v1675
    %1853 = vmatprep.subr.bf16.mxu0 0
    %1854 = vmatpush1.bf16.msra.mxu0 0
    %1855 = vmatprep.subr.bf16.mxu0 0
    %1856 = vmatpush1.bf16.msra.mxu0 0
    %1857 = vmatprep.subr.bf16.mxu0 0
    %1858 = vmatpush1.bf16.msra.mxu0 0
    %1859 = vmatprep.subr.bf16.mxu0 0
    %1860 = vmatpush1.bf16.msra.mxu0 0
    %1861 = vmatprep.subr.bf16.mxu0 0
    %1862 = vmatpush1.bf16.msra.mxu0 0
    %1863 = vmatprep.subr.bf16.mxu0 0
    %1864 = vmatpush1.bf16.msra.mxu0 0
    %1865 = vmatprep.subr.bf16.mxu0 0
    %1866 = vmatpush1.bf16.msra.mxu0 0
    %1867 = vmatprep.subr.bf16.mxu0 0
    %1868 = vmatpush1.bf16.msra.mxu0 0
    %1869 = vmatprep.subr.bf16.mxu0 0
    %1870 = vmatpush1.bf16.msra.mxu0 0
    %1871 = vmatprep.subr.bf16.mxu0 0
    %1872 = vmatpush1.bf16.msra.mxu0 0
    %1873 = vmatprep.subr.bf16.mxu0 0
    %1874 = vmatpush1.bf16.msra.mxu0 0
    %1875 = vmatprep.subr.bf16.mxu0 0
    %1876 = vmatpush1.bf16.msra.mxu0 0
    %1877 = vmatprep.subr.bf16.mxu0 0
    %1878 = vmatpush1.bf16.msra.mxu0 0
    %1879 = vmatprep.subr.bf16.mxu0 0
    %1880 = vmatpush1.bf16.msra.mxu0 0
    %1881 = vmatprep.subr.bf16.mxu0 0
    %1882 = vmatpush1.bf16.msra.mxu0 0
    %1883 = vmatprep.mubr.bf16.mxu0 0
    %1884 = vmatmul.mubr.bf16.gmra.mrb[0].mxu0 %v1849
    %v1885 = vpop.f32.mrb[0].mxu0
    %v1886 = vadd.f32 0.0, %v1885
    %v1887 = vpop.f32.mrb[0].mxu0
    %v1888 = vpop.f32.mrb[0].mxu0
    %v1889 = vadd.f32 0.0, %v1888
    %v1890 = vpop.f32.mrb[0].mxu0
    %1891 = vdwg.mxu0
    %v1892 = vpack.c.bf16 %v1845, %v1842
    %v1893 = vpack.c.bf16 %v1889, %v1886
    %s1894 = scalar_lea.vmem %s7, 64
    %v1895 = vld [vmem:[%s1894] sm:$0xf]
    %v1896 = vld [vmem:[%s1894 + $0x4] sm:$0xf]
    %v1897 = vld [vmem:[%s1894 + $0x8] sm:$0xf]
    %v1898 = vld [vmem:[%s1894 + $0xc] sm:$0xf]
    %v1899 = vld [vmem:[%s1894 + $0x10] sm:$0xf]
    %v1900 = vld [vmem:[%s1894 + $0x14] sm:$0xf]
    %v1901 = vld [vmem:[%s1894 + $0x18] sm:$0xf]
    %v1902 = vld [vmem:[%s1894 + $0x1c] sm:$0xf]
    %v1903 = vld [vmem:[%s1894 + $0x20] sm:$0xf]
    %v1904 = vld [vmem:[%s1894 + $0x24] sm:$0xf]
    %v1905 = vld [vmem:[%s1894 + $0x28] sm:$0xf]
    %v1906 = vld [vmem:[%s1894 + $0x2c] sm:$0xf]
    %v1907 = vld [vmem:[%s1894 + $0x30] sm:$0xf]
    %v1908 = vld [vmem:[%s1894 + $0x34] sm:$0xf]
    %v1909 = vld [vmem:[%s1894 + $0x38] sm:$0xf]
    %v1910 = vld [vmem:[%s1894 + $0x3c] sm:$0xf]
    %s1911 = scalar_lea.vmem %s8, 1
    %v1912 = vld [vmem:[%s1911] sm:$0x1]
    %v1914 = vlaneseq
    %v1915 = vshrl.u32 %v1914, 7
    %v1916 = vsub.s32 0, %v1915
    %v1917 = vrot.slane %v1912, %v1916
    %v1935 = vunpack.c.l.b16 %v1895
    %v1936 = vunpack.c.l.b16 %v1896
    %v1937 = vunpack.c.l.b16 %v1897
    %v1938 = vunpack.c.l.b16 %v1898
    %v1939 = vunpack.c.l.b16 %v1899
    %v1940 = vunpack.c.l.b16 %v1900
    %v1941 = vunpack.c.l.b16 %v1901
    %v1942 = vunpack.c.l.b16 %v1902
    %v1943 = vunpack.c.l.b16 %v1903
    %v1944 = vunpack.c.l.b16 %v1904
    %v1945 = vunpack.c.l.b16 %v1905
    %v1946 = vunpack.c.l.b16 %v1906
    %v1947 = vunpack.c.l.b16 %v1907
    %v1948 = vunpack.c.l.b16 %v1908
    %v1949 = vunpack.c.l.b16 %v1909
    %v1950 = vunpack.c.l.b16 %v1910
    %v1951 = vpack.c.b16 %v1936, %v1935
    %v1952 = vpack.c.b16 %v1938, %v1937
    %v1953 = vpack.c.b16 %v1940, %v1939
    %v1954 = vpack.c.b16 %v1942, %v1941
    %v1955 = vpack.c.b16 %v1944, %v1943
    %v1956 = vpack.c.b16 %v1946, %v1945
    %v1957 = vpack.c.b16 %v1948, %v1947
    %v1958 = vpack.c.b16 %v1950, %v1949
    %1967 = vmatprep.subr.bf16.mxu0 0
    %1968 = vmatpush1.bf16.msra.mxu0 %v1951
    %1969 = vmatprep.subr.bf16.mxu0 0
    %1970 = vmatpush1.bf16.msra.mxu0 %v1952
    %1971 = vmatprep.subr.bf16.mxu0 0
    %1972 = vmatpush1.bf16.msra.mxu0 %v1953
    %1973 = vmatprep.subr.bf16.mxu0 0
    %1974 = vmatpush1.bf16.msra.mxu0 %v1954
    %1975 = vmatprep.subr.bf16.mxu0 0
    %1976 = vmatpush1.bf16.msra.mxu0 %v1955
    %1977 = vmatprep.subr.bf16.mxu0 0
    %1978 = vmatpush1.bf16.msra.mxu0 %v1956
    %1979 = vmatprep.subr.bf16.mxu0 0
    %1980 = vmatpush1.bf16.msra.mxu0 %v1957
    %1981 = vmatprep.subr.bf16.mxu0 0
    %1982 = vmatpush1.bf16.msra.mxu0 %v1958
    %1983 = vmatprep.subr.bf16.mxu0 0
    %1984 = vmatpush1.bf16.msra.mxu0 0
    %1985 = vmatprep.subr.bf16.mxu0 0
    %1986 = vmatpush1.bf16.msra.mxu0 0
    %1987 = vmatprep.subr.bf16.mxu0 0
    %1988 = vmatpush1.bf16.msra.mxu0 0
    %1989 = vmatprep.subr.bf16.mxu0 0
    %1990 = vmatpush1.bf16.msra.mxu0 0
    %1991 = vmatprep.subr.bf16.mxu0 0
    %1992 = vmatpush1.bf16.msra.mxu0 0
    %1993 = vmatprep.subr.bf16.mxu0 0
    %1994 = vmatpush1.bf16.msra.mxu0 0
    %1995 = vmatprep.subr.bf16.mxu0 0
    %1996 = vmatpush1.bf16.msra.mxu0 0
    %1997 = vmatprep.subr.bf16.mxu0 0
    %1998 = vmatpush1.bf16.msra.mxu0 0
    %1999 = vmatprep.mubr.bf16.mxu0 0
    %2000 = vmatmul.mubr.bf16.gmra.mrb[0].mxu0 %v1892
    %v2001 = vpop.f32.mrb[0].mxu0
    %v2002 = vadd.f32 %v1917, %v2001
    %v2003 = vpop.f32.mrb[0].mxu0
    %v2004 = vpop.f32.mrb[0].mxu0
    %v2005 = vadd.f32 %v1917, %v2004
    %v2006 = vpop.f32.mrb[0].mxu0
    %2007 = vmatprep.mubr.bf16.mxu0 0
    %2008 = vmatmul.mubr.bf16.gmra.mrb[0].mxu0 %v1893
    %v2009 = vpop.f32.mrb[0].mxu0
    %v2010 = vadd.f32 %v1917, %v2009
    %v2011 = vpop.f32.mrb[0].mxu0
    %v2012 = vpop.f32.mrb[0].mxu0
    %v2013 = vadd.f32 %v1917, %v2012
    %v2014 = vpop.f32.mrb[0].mxu0
    %2015 = vdwg.mxu0
    %v2016 = vadd.f32 %v1315, %v2002
    %v2017 = vadd.f32 %v1316, %v2005
    %v2018 = vadd.f32 %v1317, %v2010
    %v2019 = vadd.f32 %v1318, %v2013
    %2020 = vadd.xlane.f32.xlu0 %v2016
    %v2021 = vpop.xlane.xlu0 %2020
    %2022 = vadd.xlane.f32.xlu0 %v2017
    %v2023 = vpop.xlane.xlu0 %2022
    %2024 = vadd.xlane.f32.xlu0 %v2018
    %v2025 = vpop.xlane.xlu0 %2024
    %2026 = vadd.xlane.f32.xlu0 %v2019
    %v2027 = vpop.xlane.xlu0 %2026
    %v2028 = vmul.f32 %v2021, %v153
    %v2029 = vmul.f32 %v2023, %v153
    %v2030 = vmul.f32 %v2025, %v153
    %v2031 = vmul.f32 %v2027, %v153
    %v2032 = vsub.f32 %v2016, %v2028
    %v2033 = vsub.f32 %v2017, %v2029
    %v2034 = vsub.f32 %v2018, %v2030
    %v2035 = vsub.f32 %v2019, %v2031
    %v2036 = vmul.f32 %v2032, %v2032
    %v2037 = vmul.f32 %v2033, %v2033
    %v2038 = vmul.f32 %v2034, %v2034
    %v2039 = vmul.f32 %v2035, %v2035
    %2040 = vadd.xlane.f32.xlu0 %v2036
    %v2041 = vpop.xlane.xlu0 %2040
    %2042 = vadd.xlane.f32.xlu0 %v2037
    %v2043 = vpop.xlane.xlu0 %2042
    %2044 = vadd.xlane.f32.xlu0 %v2038
    %v2045 = vpop.xlane.xlu0 %2044
    %2046 = vadd.xlane.f32.xlu0 %v2039
    %v2047 = vpop.xlane.xlu0 %2046
    %v2048 = vmul.f32 %v2041, %v153
    %v2049 = vmul.f32 %v2043, %v153
    %v2050 = vmul.f32 %v2045, %v153
    %v2051 = vmul.f32 %v2047, %v153
    %v2052 = vadd.f32 %v2048, 1e-05
    %v2053 = vadd.f32 %v2049, 1e-05
    %v2054 = vadd.f32 %v2050, 1e-05
    %v2055 = vadd.f32 %v2051, 1e-05
    %v2056 = vrsqrt.pop %v2052
    %v2057 = vrsqrt.pop %v2053
    %v2058 = vrsqrt.pop %v2054
    %v2059 = vrsqrt.pop %v2055
    %v2060 = vmul.f32 %v2032, %v2056
    %v2061 = vmul.f32 %v2033, %v2057
    %v2062 = vmul.f32 %v2034, %v2058
    %v2063 = vmul.f32 %v2035, %v2059
    %v2064 = vmul.f32 %v2060, %v1371
    %v2065 = vmul.f32 %v2061, %v1371
    %v2066 = vmul.f32 %v2062, %v1371
    %v2067 = vmul.f32 %v2063, %v1371
    %v2068 = vadd.f32 %v2064, %v1381
    %v2069 = vadd.f32 %v2065, %v1381
    %v2070 = vadd.f32 %v2066, %v1381
    %v2071 = vadd.f32 %v2067, %v1381
    %v2072 = vpack.c.bf16 %v2069, %v2068
    %v2073 = vpack.c.bf16 %v2071, %v2070
    %s2074 = scalar_lea.vmem %s9, 128
    %v2075 = vld [vmem:[%s2074] sm:$0xff]
    %v2076 = vld [vmem:[%s2074 + $0x8] sm:$0xff]
    %v2077 = vld [vmem:[%s2074 + $0x10] sm:$0xff]
    %v2078 = vld [vmem:[%s2074 + $0x18] sm:$0xff]
    %v2079 = vld [vmem:[%s2074 + $0x20] sm:$0xff]
    %v2080 = vld [vmem:[%s2074 + $0x28] sm:$0xff]
    %v2081 = vld [vmem:[%s2074 + $0x30] sm:$0xff]
    %v2082 = vld [vmem:[%s2074 + $0x38] sm:$0xff]
    %v2083 = vld [vmem:[%s2074 + $0x40] sm:$0xff]
    %v2084 = vld [vmem:[%s2074 + $0x48] sm:$0xff]
    %v2085 = vld [vmem:[%s2074 + $0x50] sm:$0xff]
    %v2086 = vld [vmem:[%s2074 + $0x58] sm:$0xff]
    %v2087 = vld [vmem:[%s2074 + $0x60] sm:$0xff]
    %v2088 = vld [vmem:[%s2074 + $0x68] sm:$0xff]
    %v2089 = vld [vmem:[%s2074 + $0x70] sm:$0xff]
    %v2090 = vld [vmem:[%s2074 + $0x78] sm:$0xff]
    %s2091 = scalar_lea.vmem %s10, 2
    %v2092 = vld [vmem:[%s2091] sm:$0x3]
    %v2094 = vlaneseq
    %v2095 = vshrl.u32 %v2094, 7
    %v2096 = vsub.s32 0, %v2095
    %v2097 = vrot.slane %v2092, %v2096
    %v2098 = vlaneseq
    %v2099 = vshrl.u32 %v2098, 7
    %v2100 = vsub.s32 1, %v2099
    %v2101 = vrot.slane %v2092, %v2100
    %v2120 = vunpack.c.l.b16 %v2075
    %v2121 = vunpack.c.h.b16 %v2075
    %v2122 = vunpack.c.l.b16 %v2076
    %v2123 = vunpack.c.h.b16 %v2076
    %v2124 = vunpack.c.l.b16 %v2077
    %v2125 = vunpack.c.h.b16 %v2077
    %v2126 = vunpack.c.l.b16 %v2078
    %v2127 = vunpack.c.h.b16 %v2078
    %v2128 = vunpack.c.l.b16 %v2079
    %v2129 = vunpack.c.h.b16 %v2079
    %v2130 = vunpack.c.l.b16 %v2080
    %v2131 = vunpack.c.h.b16 %v2080
    %v2132 = vunpack.c.l.b16 %v2081
    %v2133 = vunpack.c.h.b16 %v2081
    %v2134 = vunpack.c.l.b16 %v2082
    %v2135 = vunpack.c.h.b16 %v2082
    %v2136 = vunpack.c.l.b16 %v2083
    %v2137 = vunpack.c.h.b16 %v2083
    %v2138 = vunpack.c.l.b16 %v2084
    %v2139 = vunpack.c.h.b16 %v2084
    %v2140 = vunpack.c.l.b16 %v2085
    %v2141 = vunpack.c.h.b16 %v2085
    %v2142 = vunpack.c.l.b16 %v2086
    %v2143 = vunpack.c.h.b16 %v2086
    %v2144 = vunpack.c.l.b16 %v2087
    %v2145 = vunpack.c.h.b16 %v2087
    %v2146 = vunpack.c.l.b16 %v2088
    %v2147 = vunpack.c.h.b16 %v2088
    %v2148 = vunpack.c.l.b16 %v2089
    %v2149 = vunpack.c.h.b16 %v2089
    %v2150 = vunpack.c.l.b16 %v2090
    %v2151 = vunpack.c.h.b16 %v2090
    %v2152 = vpack.c.b16 %v2122, %v2120
    %v2153 = vpack.c.b16 %v2123, %v2121
    %v2154 = vpack.c.b16 %v2126, %v2124
    %v2155 = vpack.c.b16 %v2127, %v2125
    %v2156 = vpack.c.b16 %v2130, %v2128
    %v2157 = vpack.c.b16 %v2131, %v2129
    %v2158 = vpack.c.b16 %v2134, %v2132
    %v2159 = vpack.c.b16 %v2135, %v2133
    %v2160 = vpack.c.b16 %v2138, %v2136
    %v2161 = vpack.c.b16 %v2139, %v2137
    %v2162 = vpack.c.b16 %v2142, %v2140
    %v2163 = vpack.c.b16 %v2143, %v2141
    %v2164 = vpack.c.b16 %v2146, %v2144
    %v2165 = vpack.c.b16 %v2147, %v2145
    %v2166 = vpack.c.b16 %v2150, %v2148
    %v2167 = vpack.c.b16 %v2151, %v2149
    %2184 = vmatprep.subr.bf16.mxu0 %v2153
    %2185 = vmatpush1.bf16.msra.mxu0 %v2152
    %2186 = vmatprep.subr.bf16.mxu0 %v2155
    %2187 = vmatpush1.bf16.msra.mxu0 %v2154
    %2188 = vmatprep.subr.bf16.mxu0 %v2157
    %2189 = vmatpush1.bf16.msra.mxu0 %v2156
    %2190 = vmatprep.subr.bf16.mxu0 %v2159
    %2191 = vmatpush1.bf16.msra.mxu0 %v2158
    %2192 = vmatprep.subr.bf16.mxu0 %v2161
    %2193 = vmatpush1.bf16.msra.mxu0 %v2160
    %2194 = vmatprep.subr.bf16.mxu0 %v2163
    %2195 = vmatpush1.bf16.msra.mxu0 %v2162
    %2196 = vmatprep.subr.bf16.mxu0 %v2165
    %2197 = vmatpush1.bf16.msra.mxu0 %v2164
    %2198 = vmatprep.subr.bf16.mxu0 %v2167
    %2199 = vmatpush1.bf16.msra.mxu0 %v2166
    %2200 = vmatprep.subr.bf16.mxu0 0
    %2201 = vmatpush1.bf16.msra.mxu0 0
    %2202 = vmatprep.subr.bf16.mxu0 0
    %2203 = vmatpush1.bf16.msra.mxu0 0
    %2204 = vmatprep.subr.bf16.mxu0 0
    %2205 = vmatpush1.bf16.msra.mxu0 0
    %2206 = vmatprep.subr.bf16.mxu0 0
    %2207 = vmatpush1.bf16.msra.mxu0 0
    %2208 = vmatprep.subr.bf16.mxu0 0
    %2209 = vmatpush1.bf16.msra.mxu0 0
    %2210 = vmatprep.subr.bf16.mxu0 0
    %2211 = vmatpush1.bf16.msra.mxu0 0
    %2212 = vmatprep.subr.bf16.mxu0 0
    %2213 = vmatpush1.bf16.msra.mxu0 0
    %2214 = vmatprep.subr.bf16.mxu0 0
    %2215 = vmatpush1.bf16.msra.mxu0 0
    %2216 = vmatprep.mubr.bf16.mxu0 0
    %2217 = vmatmul.mubr.bf16.gmra.mrb[0].mxu0 %v2072
    %v2218 = vpop.f32.mrb[0].mxu0
    %v2219 = vadd.f32 %v2097, %v2218
    %v2220 = vpop.f32.mrb[0].mxu0
    %v2221 = vadd.f32 %v2101, %v2220
    %v2222 = vpop.f32.mrb[0].mxu0
    %v2223 = vadd.f32 %v2097, %v2222
    %v2224 = vpop.f32.mrb[0].mxu0
    %v2225 = vadd.f32 %v2101, %v2224
    %2226 = vmatprep.mubr.bf16.mxu0 0
    %2227 = vmatmul.mubr.bf16.gmra.mrb[0].mxu0 %v2073
    %v2228 = vpop.f32.mrb[0].mxu0
    %v2229 = vadd.f32 %v2097, %v2228
    %v2230 = vpop.f32.mrb[0].mxu0
    %v2231 = vadd.f32 %v2101, %v2230
    %v2232 = vpop.f32.mrb[0].mxu0
    %v2233 = vadd.f32 %v2097, %v2232
    %v2234 = vpop.f32.mrb[0].mxu0
    %v2235 = vadd.f32 %v2101, %v2234
    %2236 = vdwg.mxu0
    %v2237 = vmul.f32 %v2219, 0.5
    %v2238 = vmul.f32 %v2221, 0.5
    %v2239 = vmul.f32 %v2223, 0.5
    %v2240 = vmul.f32 %v2225, 0.5
    %v2241 = vmul.f32 %v2229, 0.5
    %v2242 = vmul.f32 %v2231, 0.5
    %v2243 = vmul.f32 %v2233, 0.5
    %v2244 = vmul.f32 %v2235, 0.5
    %v2245 = vmul.f32 %v2219, 0.044715
    %v2246 = vmul.f32 %v2221, 0.044715
    %v2247 = vmul.f32 %v2223, 0.044715
    %v2248 = vmul.f32 %v2225, 0.044715
    %v2249 = vmul.f32 %v2229, 0.044715
    %v2250 = vmul.f32 %v2231, 0.044715
    %v2251 = vmul.f32 %v2233, 0.044715
    %v2252 = vmul.f32 %v2235, 0.044715
    %v2253 = vmul.f32 %v2245, %v2219
    %v2254 = vmul.f32 %v2246, %v2221
    %v2255 = vmul.f32 %v2247, %v2223
    %v2256 = vmul.f32 %v2248, %v2225
    %v2257 = vmul.f32 %v2249, %v2229
    %v2258 = vmul.f32 %v2250, %v2231
    %v2259 = vmul.f32 %v2251, %v2233
    %v2260 = vmul.f32 %v2252, %v2235
    %v2261 = vmul.f32 %v2253, %v2219
    %v2262 = vmul.f32 %v2254, %v2221
    %v2263 = vmul.f32 %v2255, %v2223
    %v2264 = vmul.f32 %v2256, %v2225
    %v2265 = vmul.f32 %v2257, %v2229
    %v2266 = vmul.f32 %v2258, %v2231
    %v2267 = vmul.f32 %v2259, %v2233
    %v2268 = vmul.f32 %v2260, %v2235
    %v2269 = vadd.f32 %v2219, %v2261
    %v2270 = vadd.f32 %v2221, %v2262
    %v2271 = vadd.f32 %v2223, %v2263
    %v2272 = vadd.f32 %v2225, %v2264
    %v2273 = vadd.f32 %v2229, %v2265
    %v2274 = vadd.f32 %v2231, %v2266
    %v2275 = vadd.f32 %v2233, %v2267
    %v2276 = vadd.f32 %v2235, %v2268
    %v2277 = vmul.f32 %v2269, 0.7978846
    %v2278 = vmul.f32 %v2270, 0.7978846
    %v2279 = vmul.f32 %v2271, 0.7978846
    %v2280 = vmul.f32 %v2272, 0.7978846
    %v2281 = vmul.f32 %v2273, 0.7978846
    %v2282 = vmul.f32 %v2274, 0.7978846
    %v2283 = vmul.f32 %v2275, 0.7978846
    %v2284 = vmul.f32 %v2276, 0.7978846
    %v2285 = vtanh.pop %v2277
    %v2286 = vtanh.pop %v2278
    %v2287 = vtanh.pop %v2279
    %v2288 = vtanh.pop %v2280
    %v2289 = vtanh.pop %v2281
    %v2290 = vtanh.pop %v2282
    %v2291 = vtanh.pop %v2283
    %v2292 = vtanh.pop %v2284
    %v2293 = vadd.f32 %v2285, 1.0
    %v2294 = vadd.f32 %v2286, 1.0
    %v2295 = vadd.f32 %v2287, 1.0
    %v2296 = vadd.f32 %v2288, 1.0
    %v2297 = vadd.f32 %v2289, 1.0
    %v2298 = vadd.f32 %v2290, 1.0
    %v2299 = vadd.f32 %v2291, 1.0
    %v2300 = vadd.f32 %v2292, 1.0
    %v2301 = vmul.f32 %v2237, %v2293
    %v2302 = vmul.f32 %v2238, %v2294
    %v2303 = vmul.f32 %v2239, %v2295
    %v2304 = vmul.f32 %v2240, %v2296
    %v2305 = vmul.f32 %v2241, %v2297
    %v2306 = vmul.f32 %v2242, %v2298
    %v2307 = vmul.f32 %v2243, %v2299
    %v2308 = vmul.f32 %v2244, %v2300
    %v2309 = vpack.c.bf16 %v2303, %v2301
    %v2310 = vpack.c.bf16 %v2304, %v2302
    %v2311 = vpack.c.bf16 %v2307, %v2305
    %v2312 = vpack.c.bf16 %v2308, %v2306
    %s2313 = scalar_lea.vmem %s11, 128
    %v2314 = vld [vmem:[%s2313] sm:$0xf]
    %v2315 = vld [vmem:[%s2313 + $0x4] sm:$0xf]
    %v2316 = vld [vmem:[%s2313 + $0x8] sm:$0xf]
    %v2317 = vld [vmem:[%s2313 + $0xc] sm:$0xf]
    %v2318 = vld [vmem:[%s2313 + $0x10] sm:$0xf]
    %v2319 = vld [vmem:[%s2313 + $0x14] sm:$0xf]
    %v2320 = vld [vmem:[%s2313 + $0x18] sm:$0xf]
    %v2321 = vld [vmem:[%s2313 + $0x1c] sm:$0xf]
    %v2322 = vld [vmem:[%s2313 + $0x20] sm:$0xf]
    %v2323 = vld [vmem:[%s2313 + $0x24] sm:$0xf]
    %v2324 = vld [vmem:[%s2313 + $0x28] sm:$0xf]
    %v2325 = vld [vmem:[%s2313 + $0x2c] sm:$0xf]
    %v2326 = vld [vmem:[%s2313 + $0x30] sm:$0xf]
    %v2327 = vld [vmem:[%s2313 + $0x34] sm:$0xf]
    %v2328 = vld [vmem:[%s2313 + $0x38] sm:$0xf]
    %v2329 = vld [vmem:[%s2313 + $0x3c] sm:$0xf]
    %v2330 = vld [vmem:[%s2313 + $0x40] sm:$0xf]
    %v2331 = vld [vmem:[%s2313 + $0x44] sm:$0xf]
    %v2332 = vld [vmem:[%s2313 + $0x48] sm:$0xf]
    %v2333 = vld [vmem:[%s2313 + $0x4c] sm:$0xf]
    %v2334 = vld [vmem:[%s2313 + $0x50] sm:$0xf]
    %v2335 = vld [vmem:[%s2313 + $0x54] sm:$0xf]
    %v2336 = vld [vmem:[%s2313 + $0x58] sm:$0xf]
    %v2337 = vld [vmem:[%s2313 + $0x5c] sm:$0xf]
    %v2338 = vld [vmem:[%s2313 + $0x60] sm:$0xf]
    %v2339 = vld [vmem:[%s2313 + $0x64] sm:$0xf]
    %v2340 = vld [vmem:[%s2313 + $0x68] sm:$0xf]
    %v2341 = vld [vmem:[%s2313 + $0x6c] sm:$0xf]
    %v2342 = vld [vmem:[%s2313 + $0x70] sm:$0xf]
    %v2343 = vld [vmem:[%s2313 + $0x74] sm:$0xf]
    %v2344 = vld [vmem:[%s2313 + $0x78] sm:$0xf]
    %v2345 = vld [vmem:[%s2313 + $0x7c] sm:$0xf]
    %s2346 = scalar_lea.vmem %s12, 1
    %v2347 = vld [vmem:[%s2346] sm:$0x1]
    %v2349 = vlaneseq
    %v2350 = vshrl.u32 %v2349, 7
    %v2351 = vsub.s32 0, %v2350
    %v2352 = vrot.slane %v2347, %v2351
    %v2386 = vunpack.c.l.b16 %v2314
    %v2387 = vunpack.c.l.b16 %v2315
    %v2388 = vunpack.c.l.b16 %v2316
    %v2389 = vunpack.c.l.b16 %v2317
    %v2390 = vunpack.c.l.b16 %v2318
    %v2391 = vunpack.c.l.b16 %v2319
    %v2392 = vunpack.c.l.b16 %v2320
    %v2393 = vunpack.c.l.b16 %v2321
    %v2394 = vunpack.c.l.b16 %v2322
    %v2395 = vunpack.c.l.b16 %v2323
    %v2396 = vunpack.c.l.b16 %v2324
    %v2397 = vunpack.c.l.b16 %v2325
    %v2398 = vunpack.c.l.b16 %v2326
    %v2399 = vunpack.c.l.b16 %v2327
    %v2400 = vunpack.c.l.b16 %v2328
    %v2401 = vunpack.c.l.b16 %v2329
    %v2402 = vunpack.c.l.b16 %v2330
    %v2403 = vunpack.c.l.b16 %v2331
    %v2404 = vunpack.c.l.b16 %v2332
    %v2405 = vunpack.c.l.b16 %v2333
    %v2406 = vunpack.c.l.b16 %v2334
    %v2407 = vunpack.c.l.b16 %v2335
    %v2408 = vunpack.c.l.b16 %v2336
    %v2409 = vunpack.c.l.b16 %v2337
    %v2410 = vunpack.c.l.b16 %v2338
    %v2411 = vunpack.c.l.b16 %v2339
    %v2412 = vunpack.c.l.b16 %v2340
    %v2413 = vunpack.c.l.b16 %v2341
    %v2414 = vunpack.c.l.b16 %v2342
    %v2415 = vunpack.c.l.b16 %v2343
    %v2416 = vunpack.c.l.b16 %v2344
    %v2417 = vunpack.c.l.b16 %v2345
    %v2418 = vpack.c.b16 %v2387, %v2386
    %v2419 = vpack.c.b16 %v2389, %v2388
    %v2420 = vpack.c.b16 %v2391, %v2390
    %v2421 = vpack.c.b16 %v2393, %v2392
    %v2422 = vpack.c.b16 %v2395, %v2394
    %v2423 = vpack.c.b16 %v2397, %v2396
    %v2424 = vpack.c.b16 %v2399, %v2398
    %v2425 = vpack.c.b16 %v2401, %v2400
    %v2426 = vpack.c.b16 %v2403, %v2402
    %v2427 = vpack.c.b16 %v2405, %v2404
    %v2428 = vpack.c.b16 %v2407, %v2406
    %v2429 = vpack.c.b16 %v2409, %v2408
    %v2430 = vpack.c.b16 %v2411, %v2410
    %v2431 = vpack.c.b16 %v2413, %v2412
    %v2432 = vpack.c.b16 %v2415, %v2414
    %v2433 = vpack.c.b16 %v2417, %v2416
    %2450 = vmatprep.subr.bf16.mxu0 0
    %2451 = vmatpush1.bf16.msra.mxu0 %v2418
    %2452 = vmatprep.subr.bf16.mxu0 0
    %2453 = vmatpush1.bf16.msra.mxu0 %v2419
    %2454 = vmatprep.subr.bf16.mxu0 0
    %2455 = vmatpush1.bf16.msra.mxu0 %v2420
    %2456 = vmatprep.subr.bf16.mxu0 0
    %2457 = vmatpush1.bf16.msra.mxu0 %v2421
    %2458 = vmatprep.subr.bf16.mxu0 0
    %2459 = vmatpush1.bf16.msra.mxu0 %v2422
    %2460 = vmatprep.subr.bf16.mxu0 0
    %2461 = vmatpush1.bf16.msra.mxu0 %v2423
    %2462 = vmatprep.subr.bf16.mxu0 0
    %2463 = vmatpush1.bf16.msra.mxu0 %v2424
    %2464 = vmatprep.subr.bf16.mxu0 0
    %2465 = vmatpush1.bf16.msra.mxu0 %v2425
    %2466 = vmatprep.subr.bf16.mxu0 0
    %2467 = vmatpush1.bf16.msra.mxu0 %v2426
    %2468 = vmatprep.subr.bf16.mxu0 0
    %2469 = vmatpush1.bf16.msra.mxu0 %v2427
    %2470 = vmatprep.subr.bf16.mxu0 0
    %2471 = vmatpush1.bf16.msra.mxu0 %v2428
    %2472 = vmatprep.subr.bf16.mxu0 0
    %2473 = vmatpush1.bf16.msra.mxu0 %v2429
    %2474 = vmatprep.subr.bf16.mxu0 0
    %2475 = vmatpush1.bf16.msra.mxu0 %v2430
    %2476 = vmatprep.subr.bf16.mxu0 0
    %2477 = vmatpush1.bf16.msra.mxu0 %v2431
    %2478 = vmatprep.subr.bf16.mxu0 0
    %2479 = vmatpush1.bf16.msra.mxu0 %v2432
    %2480 = vmatprep.subr.bf16.mxu0 0
    %2481 = vmatpush1.bf16.msra.mxu0 %v2433
    %2482 = vmatprep.mubr.bf16.mxu0 %v2310
    %2483 = vmatmul.mubr.bf16.gmra.mrb[0].mxu0 %v2309
    %v2484 = vpop.f32.mrb[0].mxu0
    %v2485 = vadd.f32 %v2352, %v2484
    %v2486 = vpop.f32.mrb[0].mxu0
    %v2487 = vpop.f32.mrb[0].mxu0
    %v2488 = vadd.f32 %v2352, %v2487
    %v2489 = vpop.f32.mrb[0].mxu0
    %2490 = vmatprep.mubr.bf16.mxu0 %v2312
    %2491 = vmatmul.mubr.bf16.gmra.mrb[0].mxu0 %v2311
    %v2492 = vpop.f32.mrb[0].mxu0
    %v2493 = vadd.f32 %v2352, %v2492
    %v2494 = vpop.f32.mrb[0].mxu0
    %v2495 = vpop.f32.mrb[0].mxu0
    %v2496 = vadd.f32 %v2352, %v2495
    %v2497 = vpop.f32.mrb[0].mxu0
    %2498 = vdwg.mxu0
    %v2499 = vadd.f32 %v2016, %v2485
    %v2500 = vadd.f32 %v2017, %v2488
    %v2501 = vadd.f32 %v2018, %v2493
    %v2502 = vadd.f32 %v2019, %v2496
    %s2503 = scalar_lea.vmem %s3, 2
    %v2504 = vld [vmem:[%s2503] sm:$0x1]
    %s2505 = scalar_lea.vmem %s4, 2
    %v2506 = vld [vmem:[%s2505] sm:$0x1]
    %2507 = vadd.xlane.f32.xlu0 %v2499
    %v2508 = vpop.xlane.xlu0 %2507
    %2509 = vadd.xlane.f32.xlu0 %v2500
    %v2510 = vpop.xlane.xlu0 %2509
    %2511 = vadd.xlane.f32.xlu0 %v2501
    %v2512 = vpop.xlane.xlu0 %2511
    %2513 = vadd.xlane.f32.xlu0 %v2502
    %v2514 = vpop.xlane.xlu0 %2513
    %v2515 = vmul.f32 %v2508, %v153
    %v2516 = vmul.f32 %v2510, %v153
    %v2517 = vmul.f32 %v2512, %v153
    %v2518 = vmul.f32 %v2514, %v153
    %v2519 = vsub.f32 %v2499, %v2515
    %v2520 = vsub.f32 %v2500, %v2516
    %v2521 = vsub.f32 %v2501, %v2517
    %v2522 = vsub.f32 %v2502, %v2518
    %v2523 = vmul.f32 %v2519, %v2519
    %v2524 = vmul.f32 %v2520, %v2520
    %v2525 = vmul.f32 %v2521, %v2521
    %v2526 = vmul.f32 %v2522, %v2522
    %2527 = vadd.xlane.f32.xlu0 %v2523
    %v2528 = vpop.xlane.xlu0 %2527
    %2529 = vadd.xlane.f32.xlu0 %v2524
    %v2530 = vpop.xlane.xlu0 %2529
    %2531 = vadd.xlane.f32.xlu0 %v2525
    %v2532 = vpop.xlane.xlu0 %2531
    %2533 = vadd.xlane.f32.xlu0 %v2526
    %v2534 = vpop.xlane.xlu0 %2533
    %v2535 = vmul.f32 %v2528, %v153
    %v2536 = vmul.f32 %v2530, %v153
    %v2537 = vmul.f32 %v2532, %v153
    %v2538 = vmul.f32 %v2534, %v153
    %v2539 = vadd.f32 %v2535, 1e-05
    %v2540 = vadd.f32 %v2536, 1e-05
    %v2541 = vadd.f32 %v2537, 1e-05
    %v2542 = vadd.f32 %v2538, 1e-05
    %v2543 = vrsqrt.pop %v2539
    %v2544 = vrsqrt.pop %v2540
    %v2545 = vrsqrt.pop %v2541
    %v2546 = vrsqrt.pop %v2542
    %v2547 = vmul.f32 %v2519, %v2543
    %v2548 = vmul.f32 %v2520, %v2544
    %v2549 = vmul.f32 %v2521, %v2545
    %v2550 = vmul.f32 %v2522, %v2546
    %v2552 = vlaneseq
    %v2553 = vshrl.u32 %v2552, 7
    %v2554 = vsub.s32 0, %v2553
    %v2555 = vrot.slane %v2504, %v2554
    %v2557 = vmul.f32 %v2547, %v2555
    %v2558 = vmul.f32 %v2548, %v2555
    %v2559 = vmul.f32 %v2549, %v2555
    %v2560 = vmul.f32 %v2550, %v2555
    %v2562 = vlaneseq
    %v2563 = vshrl.u32 %v2562, 7
    %v2564 = vsub.s32 0, %v2563
    %v2565 = vrot.slane %v2506, %v2564
    %v2567 = vadd.f32 %v2557, %v2565
    %v2568 = vadd.f32 %v2558, %v2565
    %v2569 = vadd.f32 %v2559, %v2565
    %v2570 = vadd.f32 %v2560, %v2565
    %v2571 = vpack.c.bf16 %v2568, %v2567
    %v2572 = vpack.c.bf16 %v2570, %v2569
    %s2573 = scalar_lea.vmem %s5, 384
    %v2574 = vld [vmem:[%s2573] sm:$0xff]
    %v2575 = vld [vmem:[%s2573 + $0x8] sm:$0xf]
    %v2576 = vld [vmem:[%s2573 + $0xc] sm:$0xff]
    %v2577 = vld [vmem:[%s2573 + $0x14] sm:$0xf]
    %v2578 = vld [vmem:[%s2573 + $0x18] sm:$0xff]
    %v2579 = vld [vmem:[%s2573 + $0x20] sm:$0xf]
    %v2580 = vld [vmem:[%s2573 + $0x24] sm:$0xff]
    %v2581 = vld [vmem:[%s2573 + $0x2c] sm:$0xf]
    %v2582 = vld [vmem:[%s2573 + $0x30] sm:$0xff]
    %v2583 = vld [vmem:[%s2573 + $0x38] sm:$0xf]
    %v2584 = vld [vmem:[%s2573 + $0x3c] sm:$0xff]
    %v2585 = vld [vmem:[%s2573 + $0x44] sm:$0xf]
    %v2586 = vld [vmem:[%s2573 + $0x48] sm:$0xff]
    %v2587 = vld [vmem:[%s2573 + $0x50] sm:$0xf]
    %v2588 = vld [vmem:[%s2573 + $0x54] sm:$0xff]
    %v2589 = vld [vmem:[%s2573 + $0x5c] sm:$0xf]
    %v2590 = vld [vmem:[%s2573 + $0x60] sm:$0xff]
    %v2591 = vld [vmem:[%s2573 + $0x68] sm:$0xf]
    %v2592 = vld [vmem:[%s2573 + $0x6c] sm:$0xff]
    %v2593 = vld [vmem:[%s2573 + $0x74] sm:$0xf]
    %v2594 = vld [vmem:[%s2573 + $0x78] sm:$0xff]
    %v2595 = vld [vmem:[%s2573 + $0x80] sm:$0xf]
    %v2596 = vld [vmem:[%s2573 + $0x84] sm:$0xff]
    %v2597 = vld [vmem:[%s2573 + $0x8c] sm:$0xf]
    %v2598 = vld [vmem:[%s2573 + $0x90] sm:$0xff]
    %v2599 = vld [vmem:[%s2573 + $0x98] sm:$0xf]
    %v2600 = vld [vmem:[%s2573 + $0x9c] sm:$0xff]
    %v2601 = vld [vmem:[%s2573 + $0xa4] sm:$0xf]
    %v2602 = vld [vmem:[%s2573 + $0xa8] sm:$0xff]
    %v2603 = vld [vmem:[%s2573 + $0xb0] sm:$0xf]
    %v2604 = vld [vmem:[%s2573 + $0xb4] sm:$0xff]
    %v2605 = vld [vmem:[%s2573 + $0xbc] sm:$0xf]
    %s2606 = scalar_lea.vmem %s6, 6
    %v2607 = vld [vmem:[%s2606] sm:$0x7]
    %v2609 = vlaneseq
    %v2610 = vshrl.u32 %v2609, 7
    %v2611 = vsub.s32 0, %v2610
    %v2612 = vrot.slane %v2607, %v2611
    %v2613 = vlaneseq
    %v2614 = vshrl.u32 %v2613, 7
    %v2615 = vsub.s32 1, %v2614
    %v2616 = vrot.slane %v2607, %v2615
    %v2617 = vlaneseq
    %v2618 = vshrl.u32 %v2617, 7
    %v2619 = vsub.s32 2, %v2618
    %v2620 = vrot.slane %v2607, %v2619
    %v2656 = vunpack.c.l.b16 %v2574
    %v2657 = vunpack.c.h.b16 %v2574
    %v2658 = vunpack.c.l.b16 %v2575
    %v2659 = vunpack.c.l.b16 %v2576
    %v2660 = vunpack.c.h.b16 %v2576
    %v2661 = vunpack.c.l.b16 %v2577
    %v2662 = vunpack.c.l.b16 %v2578
    %v2663 = vunpack.c.h.b16 %v2578
    %v2664 = vunpack.c.l.b16 %v2579
    %v2665 = vunpack.c.l.b16 %v2580
    %v2666 = vunpack.c.h.b16 %v2580
    %v2667 = vunpack.c.l.b16 %v2581
    %v2668 = vunpack.c.l.b16 %v2582
    %v2669 = vunpack.c.h.b16 %v2582
    %v2670 = vunpack.c.l.b16 %v2583
    %v2671 = vunpack.c.l.b16 %v2584
    %v2672 = vunpack.c.h.b16 %v2584
    %v2673 = vunpack.c.l.b16 %v2585
    %v2674 = vunpack.c.l.b16 %v2586
    %v2675 = vunpack.c.h.b16 %v2586
    %v2676 = vunpack.c.l.b16 %v2587
    %v2677 = vunpack.c.l.b16 %v2588
    %v2678 = vunpack.c.h.b16 %v2588
    %v2679 = vunpack.c.l.b16 %v2589
    %v2680 = vunpack.c.l.b16 %v2590
    %v2681 = vunpack.c.h.b16 %v2590
    %v2682 = vunpack.c.l.b16 %v2591
    %v2683 = vunpack.c.l.b16 %v2592
    %v2684 = vunpack.c.h.b16 %v2592
    %v2685 = vunpack.c.l.b16 %v2593
    %v2686 = vunpack.c.l.b16 %v2594
    %v2687 = vunpack.c.h.b16 %v2594
    %v2688 = vunpack.c.l.b16 %v2595
    %v2689 = vunpack.c.l.b16 %v2596
    %v2690 = vunpack.c.h.b16 %v2596
    %v2691 = vunpack.c.l.b16 %v2597
    %v2692 = vunpack.c.l.b16 %v2598
    %v2693 = vunpack.c.h.b16 %v2598
    %v2694 = vunpack.c.l.b16 %v2599
    %v2695 = vunpack.c.l.b16 %v2600
    %v2696 = vunpack.c.h.b16 %v2600
    %v2697 = vunpack.c.l.b16 %v2601
    %v2698 = vunpack.c.l.b16 %v2602
    %v2699 = vunpack.c.h.b16 %v2602
    %v2700 = vunpack.c.l.b16 %v2603
    %v2701 = vunpack.c.l.b16 %v2604
    %v2702 = vunpack.c.h.b16 %v2604
    %v2703 = vunpack.c.l.b16 %v2605
    %v2704 = vpack.c.b16 %v2659, %v2656
    %v2705 = vpack.c.b16 %v2660, %v2657
    %v2706 = vpack.c.b16 %v2661, %v2658
    %v2707 = vpack.c.b16 %v2665, %v2662
    %v2708 = vpack.c.b16 %v2666, %v2663
    %v2709 = vpack.c.b16 %v2667, %v2664
    %v2710 = vpack.c.b16 %v2671, %v2668
    %v2711 = vpack.c.b16 %v2672, %v2669
    %v2712 = vpack.c.b16 %v2673, %v2670
    %v2713 = vpack.c.b16 %v2677, %v2674
    %v2714 = vpack.c.b16 %v2678, %v2675
    %v2715 = vpack.c.b16 %v2679, %v2676
    %v2716 = vpack.c.b16 %v2683, %v2680
    %v2717 = vpack.c.b16 %v2684, %v2681
    %v2718 = vpack.c.b16 %v2685, %v2682
    %v2719 = vpack.c.b16 %v2689, %v2686
    %v2720 = vpack.c.b16 %v2690, %v2687
    %v2721 = vpack.c.b16 %v2691, %v2688
    %v2722 = vpack.c.b16 %v2695, %v2692
    %v2723 = vpack.c.b16 %v2696, %v2693
    %v2724 = vpack.c.b16 %v2697, %v2694
    %v2725 = vpack.c.b16 %v2701, %v2698
    %v2726 = vpack.c.b16 %v2702, %v2699
    %v2727 = vpack.c.b16 %v2703, %v2700
    %2752 = vmatprep.subr.bf16.mxu0 %v2705
    %2753 = vmatpush1.bf16.msra.mxu0 %v2704
    %2754 = vmatprep.subr.bf16.mxu0 %v2708
    %2755 = vmatpush1.bf16.msra.mxu0 %v2707
    %2756 = vmatprep.subr.bf16.mxu0 %v2711
    %2757 = vmatpush1.bf16.msra.mxu0 %v2710
    %2758 = vmatprep.subr.bf16.mxu0 %v2714
    %2759 = vmatpush1.bf16.msra.mxu0 %v2713
    %2760 = vmatprep.subr.bf16.mxu0 %v2717
    %2761 = vmatpush1.bf16.msra.mxu0 %v2716
    %2762 = vmatprep.subr.bf16.mxu0 %v2720
    %2763 = vmatpush1.bf16.msra.mxu0 %v2719
    %2764 = vmatprep.subr.bf16.mxu0 %v2723
    %2765 = vmatpush1.bf16.msra.mxu0 %v2722
    %2766 = vmatprep.subr.bf16.mxu0 %v2726
    %2767 = vmatpush1.bf16.msra.mxu0 %v2725
    %2768 = vmatprep.subr.bf16.mxu0 0
    %2769 = vmatpush1.bf16.msra.mxu0 0
    %2770 = vmatprep.subr.bf16.mxu0 0
    %2771 = vmatpush1.bf16.msra.mxu0 0
    %2772 = vmatprep.subr.bf16.mxu0 0
    %2773 = vmatpush1.bf16.msra.mxu0 0
    %2774 = vmatprep.subr.bf16.mxu0 0
    %2775 = vmatpush1.bf16.msra.mxu0 0
    %2776 = vmatprep.subr.bf16.mxu0 0
    %2777 = vmatpush1.bf16.msra.mxu0 0
    %2778 = vmatprep.subr.bf16.mxu0 0
    %2779 = vmatpush1.bf16.msra.mxu0 0
    %2780 = vmatprep.subr.bf16.mxu0 0
    %2781 = vmatpush1.bf16.msra.mxu0 0
    %2782 = vmatprep.subr.bf16.mxu0 0
    %2783 = vmatpush1.bf16.msra.mxu0 0
    %2784 = vmatprep.mubr.bf16.mxu0 0
    %2785 = vmatmul.mubr.bf16.gmra.mrb[0].mxu0 %v2571
    %v2786 = vpop.f32.mrb[0].mxu0
    %v2787 = vadd.f32 %v2612, %v2786
    %v2788 = vpop.f32.mrb[0].mxu0
    %v2789 = vadd.f32 %v2616, %v2788
    %v2790 = vpop.f32.mrb[0].mxu0
    %v2791 = vadd.f32 %v2612, %v2790
    %v2792 = vpop.f32.mrb[0].mxu0
    %v2793 = vadd.f32 %v2616, %v2792
    %2794 = vmatprep.mubr.bf16.mxu0 0
    %2795 = vmatmul.mubr.bf16.gmra.mrb[0].mxu0 %v2572
    %v2796 = vpop.f32.mrb[0].mxu0
    %v2797 = vadd.f32 %v2612, %v2796
    %v2798 = vpop.f32.mrb[0].mxu0
    %v2799 = vadd.f32 %v2616, %v2798
    %v2800 = vpop.f32.mrb[0].mxu0
    %v2801 = vadd.f32 %v2612, %v2800
    %v2802 = vpop.f32.mrb[0].mxu0
    %v2803 = vadd.f32 %v2616, %v2802
    %2804 = vdwg.mxu0
    %2805 = vmatprep.subr.bf16.mxu0 0
    %2806 = vmatpush1.bf16.msra.mxu0 %v2706
    %2807 = vmatprep.subr.bf16.mxu0 0
    %2808 = vmatpush1.bf16.msra.mxu0 %v2709
    %2809 = vmatprep.subr.bf16.mxu0 0
    %2810 = vmatpush1.bf16.msra.mxu0 %v2712
    %2811 = vmatprep.subr.bf16.mxu0 0
    %2812 = vmatpush1.bf16.msra.mxu0 %v2715
    %2813 = vmatprep.subr.bf16.mxu0 0
    %2814 = vmatpush1.bf16.msra.mxu0 %v2718
    %2815 = vmatprep.subr.bf16.mxu0 0
    %2816 = vmatpush1.bf16.msra.mxu0 %v2721
    %2817 = vmatprep.subr.bf16.mxu0 0
    %2818 = vmatpush1.bf16.msra.mxu0 %v2724
    %2819 = vmatprep.subr.bf16.mxu0 0
    %2820 = vmatpush1.bf16.msra.mxu0 %v2727
    %2821 = vmatprep.subr.bf16.mxu0 0
    %2822 = vmatpush1.bf16.msra.mxu0 0
    %2823 = vmatprep.subr.bf16.mxu0 0
    %2824 = vmatpush1.bf16.msra.mxu0 0
    %2825 = vmatprep.subr.bf16.mxu0 0
    %2826 = vmatpush1.bf16.msra.mxu0 0
    %2827 = vmatprep.subr.bf16.mxu0 0
    %2828 = vmatpush1.bf16.msra.mxu0 0
    %2829 = vmatprep.subr.bf16.mxu0 0
    %2830 = vmatpush1.bf16.msra.mxu0 0
    %2831 = vmatprep.subr.bf16.mxu0 0
    %2832 = vmatpush1.bf16.msra.mxu0 0
    %2833 = vmatprep.subr.bf16.mxu0 0
    %2834 = vmatpush1.bf16.msra.mxu0 0
    %2835 = vmatprep.subr.bf16.mxu0 0
    %2836 = vmatpush1.bf16.msra.mxu0 0
    %2837 = vmatprep.mubr.bf16.mxu0 0
    %2838 = vmatmul.mubr.bf16.gmra.mrb[0].mxu0 %v2571
    %v2839 = vpop.f32.mrb[0].mxu0
    %v2840 = vadd.f32 %v2620, %v2839
    %v2841 = vpop.f32.mrb[0].mxu0
    %v2842 = vpop.f32.mrb[0].mxu0
    %v2843 = vadd.f32 %v2620, %v2842
    %v2844 = vpop.f32.mrb[0].mxu0
    %2845 = vmatprep.mubr.bf16.mxu0 0
    %2846 = vmatmul.mubr.bf16.gmra.mrb[0].mxu0 %v2572
    %v2847 = vpop.f32.mrb[0].mxu0
    %v2848 = vadd.f32 %v2620, %v2847
    %v2849 = vpop.f32.mrb[0].mxu0
    %v2850 = vpop.f32.mrb[0].mxu0
    %v2851 = vadd.f32 %v2620, %v2850
    %v2852 = vpop.f32.mrb[0].mxu0
    %2853 = vdwg.mxu0
    %v2854 = vpack.c.bf16 %v2791, %v2787
    %v2855 = vpack.c.bf16 %v2801, %v2797
    %v2856 = vpack.c.bf16 %v2793, %v2789
    %v2857 = vpack.c.bf16 %v2803, %v2799
    %v2858 = vpack.c.bf16 %v2843, %v2840
    %v2859 = vpack.c.bf16 %v2851, %v2848
    %2860 = vmatprep.subr.bf16.mxu0 0
    %2861 = vmatpush1.bf16.xpose.msra.mxu0 %v2856
    %2862 = vmatprep.subr.bf16.mxu0 0
    %2863 = vmatpush1.bf16.xpose.msra.mxu0 0
    %2864 = vmatprep.subr.bf16.mxu0 0
    %2865 = vmatpush1.bf16.xpose.msra.mxu0 0
    %2866 = vmatprep.subr.bf16.mxu0 0
    %2867 = vmatpush1.bf16.xpose.msra.mxu0 0
    %2868 = vmatprep.subr.bf16.mxu0 0
    %2869 = vmatpush1.bf16.xpose.msra.mxu0 0
    %2870 = vmatprep.subr.bf16.mxu0 0
    %2871 = vmatpush1.bf16.xpose.msra.mxu0 0
    %2872 = vmatprep.subr.bf16.mxu0 0
    %2873 = vmatpush1.bf16.xpose.msra.mxu0 0
    %2874 = vmatprep.subr.bf16.mxu0 0
    %2875 = vmatpush1.bf16.xpose.msra.mxu0 0
    %2876 = vmatprep.subr.bf16.mxu0 0
    %2877 = vmatpush1.bf16.xpose.msra.mxu0 0
    %2878 = vmatprep.subr.bf16.mxu0 0
    %2879 = vmatpush1.bf16.xpose.msra.mxu0 0
    %2880 = vmatprep.subr.bf16.mxu0 0
    %2881 = vmatpush1.bf16.xpose.msra.mxu0 0
    %2882 = vmatprep.subr.bf16.mxu0 0
    %2883 = vmatpush1.bf16.xpose.msra.mxu0 0
    %2884 = vmatprep.subr.bf16.mxu0 0
    %2885 = vmatpush1.bf16.xpose.msra.mxu0 0
    %2886 = vmatprep.subr.bf16.mxu0 0
    %2887 = vmatpush1.bf16.xpose.msra.mxu0 0
    %2888 = vmatprep.subr.bf16.mxu0 0
    %2889 = vmatpush1.bf16.xpose.msra.mxu0 0
    %2890 = vmatprep.subr.bf16.mxu0 0
    %2891 = vmatpush1.bf16.xpose.msra.mxu0 0
    %2892 = vmatprep.mubr.bf16.mxu0 0
    %2893 = vmatmul.mubr.bf16.gmra.mrb[0].mxu0 %v2854
    %v2894 = vpop.f32.mrb[0].mxu0
    %v2895 = vadd.f32 0.0, %v2894
    %v2896 = vpop.f32.mrb[0].mxu0
    %v2897 = vpop.f32.mrb[0].mxu0
    %v2898 = vadd.f32 0.0, %v2897
    %v2899 = vpop.f32.mrb[0].mxu0
    %2900 = vdwg.mxu0
    %2901 = vmatprep.subr.bf16.mxu0 0
    %2902 = vmatpush1.bf16.xpose.msra.mxu0 %v2857
    %2903 = vmatprep.subr.bf16.mxu0 0
    %2904 = vmatpush1.bf16.xpose.msra.mxu0 0
    %2905 = vmatprep.subr.bf16.mxu0 0
    %2906 = vmatpush1.bf16.xpose.msra.mxu0 0
    %2907 = vmatprep.subr.bf16.mxu0 0
    %2908 = vmatpush1.bf16.xpose.msra.mxu0 0
    %2909 = vmatprep.subr.bf16.mxu0 0
    %2910 = vmatpush1.bf16.xpose.msra.mxu0 0
    %2911 = vmatprep.subr.bf16.mxu0 0
    %2912 = vmatpush1.bf16.xpose.msra.mxu0 0
    %2913 = vmatprep.subr.bf16.mxu0 0
    %2914 = vmatpush1.bf16.xpose.msra.mxu0 0
    %2915 = vmatprep.subr.bf16.mxu0 0
    %2916 = vmatpush1.bf16.xpose.msra.mxu0 0
    %2917 = vmatprep.subr.bf16.mxu0 0
    %2918 = vmatpush1.bf16.xpose.msra.mxu0 0
    %2919 = vmatprep.subr.bf16.mxu0 0
    %2920 = vmatpush1.bf16.xpose.msra.mxu0 0
    %2921 = vmatprep.subr.bf16.mxu0 0
    %2922 = vmatpush1.bf16.xpose.msra.mxu0 0
    %2923 = vmatprep.subr.bf16.mxu0 0
    %2924 = vmatpush1.bf16.xpose.msra.mxu0 0
    %2925 = vmatprep.subr.bf16.mxu0 0
    %2926 = vmatpush1.bf16.xpose.msra.mxu0 0
    %2927 = vmatprep.subr.bf16.mxu0 0
    %2928 = vmatpush1.bf16.xpose.msra.mxu0 0
    %2929 = vmatprep.subr.bf16.mxu0 0
    %2930 = vmatpush1.bf16.xpose.msra.mxu0 0
    %2931 = vmatprep.subr.bf16.mxu0 0
    %2932 = vmatpush1.bf16.xpose.msra.mxu0 0
    %2933 = vmatprep.mubr.bf16.mxu0 0
    %2934 = vmatmul.mubr.bf16.gmra.mrb[0].mxu0 %v2855
    %v2935 = vpop.f32.mrb[0].mxu0
    %v2936 = vadd.f32 0.0, %v2935
    %v2937 = vpop.f32.mrb[0].mxu0
    %v2938 = vpop.f32.mrb[0].mxu0
    %v2939 = vadd.f32 0.0, %v2938
    %v2940 = vpop.f32.mrb[0].mxu0
    %2941 = vdwg.mxu0
    %v2942 = vsel %vm579, %v2895, -inf
    %2943 = vmax.xlane.f32.xlu0 %v2942
    %v2944 = vpop.xlane.xlu0 %2943
    %v2945 = vsel %vm579, %v2898, -inf
    %2946 = vmax.xlane.f32.xlu0 %v2945
    %v2947 = vpop.xlane.xlu0 %2946
    %v2948 = vsel %vm579, %v2936, -inf
    %2949 = vmax.xlane.f32.xlu0 %v2948
    %v2950 = vpop.xlane.xlu0 %2949
    %v2951 = vsel %vm579, %v2939, -inf
    %2952 = vmax.xlane.f32.xlu0 %v2951
    %v2953 = vpop.xlane.xlu0 %2952
    %v2954 = vsub.f32 %v2895, %v2944
    %v2955 = vsub.f32 %v2898, %v2947
    %v2956 = vsub.f32 %v2936, %v2950
    %v2957 = vsub.f32 %v2939, %v2953
    %v2958 = vmul.f32 %v2954, 1.442695
    %v2959 = vpow.pop %v2958
    %v2960 = vmul.f32 %v2955, 1.442695
    %v2961 = vpow.pop %v2960
    %v2962 = vmul.f32 %v2956, 1.442695
    %v2963 = vpow.pop %v2962
    %v2964 = vmul.f32 %v2957, 1.442695
    %v2965 = vpow.pop %v2964
    %v2966 = vsel %vm579, %v2959, 0.0
    %2967 = vadd.xlane.f32.xlu0 %v2966
    %v2968 = vpop.xlane.xlu0 %2967
    %v2969 = vsel %vm579, %v2961, 0.0
    %2970 = vadd.xlane.f32.xlu0 %v2969
    %v2971 = vpop.xlane.xlu0 %2970
    %v2972 = vsel %vm579, %v2963, 0.0
    %2973 = vadd.xlane.f32.xlu0 %v2972
    %v2974 = vpop.xlane.xlu0 %2973
    %v2975 = vsel %vm579, %v2965, 0.0
    %2976 = vadd.xlane.f32.xlu0 %v2975
    %v2977 = vpop.xlane.xlu0 %2976
    %v2978 = vrcp.pop %v2968
    %v2979 = vrcp.pop %v2971
    %v2980 = vrcp.pop %v2974
    %v2981 = vrcp.pop %v2977
    %v2982 = vmul.f32 %v2959, %v2978
    %v2983 = vmul.f32 %v2961, %v2979
    %v2984 = vmul.f32 %v2963, %v2980
    %v2985 = vmul.f32 %v2965, %v2981
    %v2986 = vpack.c.bf16 %v2983, %v2982
    %v2987 = vpack.c.bf16 %v2985, %v2984
    %v2989 = vsel %vm579, %v2986, 0
    %2991 = vmatprep.subr.bf16.mxu0 0
    %2992 = vmatpush1.bf16.msra.mxu0 %v2858
    %2993 = vmatprep.subr.bf16.mxu0 0
    %2994 = vmatpush1.bf16.msra.mxu0 0
    %2995 = vmatprep.subr.bf16.mxu0 0
    %2996 = vmatpush1.bf16.msra.mxu0 0
    %2997 = vmatprep.subr.bf16.mxu0 0
    %2998 = vmatpush1.bf16.msra.mxu0 0
    %2999 = vmatprep.subr.bf16.mxu0 0
    %3000 = vmatpush1.bf16.msra.mxu0 0
    %3001 = vmatprep.subr.bf16.mxu0 0
    %3002 = vmatpush1.bf16.msra.mxu0 0
    %3003 = vmatprep.subr.bf16.mxu0 0
    %3004 = vmatpush1.bf16.msra.mxu0 0
    %3005 = vmatprep.subr.bf16.mxu0 0
    %3006 = vmatpush1.bf16.msra.mxu0 0
    %3007 = vmatprep.subr.bf16.mxu0 0
    %3008 = vmatpush1.bf16.msra.mxu0 0
    %3009 = vmatprep.subr.bf16.mxu0 0
    %3010 = vmatpush1.bf16.msra.mxu0 0
    %3011 = vmatprep.subr.bf16.mxu0 0
    %3012 = vmatpush1.bf16.msra.mxu0 0
    %3013 = vmatprep.subr.bf16.mxu0 0
    %3014 = vmatpush1.bf16.msra.mxu0 0
    %3015 = vmatprep.subr.bf16.mxu0 0
    %3016 = vmatpush1.bf16.msra.mxu0 0
    %3017 = vmatprep.subr.bf16.mxu0 0
    %3018 = vmatpush1.bf16.msra.mxu0 0
    %3019 = vmatprep.subr.bf16.mxu0 0
    %3020 = vmatpush1.bf16.msra.mxu0 0
    %3021 = vmatprep.subr.bf16.mxu0 0
    %3022 = vmatpush1.bf16.msra.mxu0 0
    %3023 = vmatprep.mubr.bf16.mxu0 0
    %3024 = vmatmul.mubr.bf16.gmra.mrb[0].mxu0 %v2989
    %v3025 = vpop.f32.mrb[0].mxu0
    %v3026 = vadd.f32 0.0, %v3025
    %v3027 = vpop.f32.mrb[0].mxu0
    %v3028 = vpop.f32.mrb[0].mxu0
    %v3029 = vadd.f32 0.0, %v3028
    %v3030 = vpop.f32.mrb[0].mxu0
    %3031 = vdwg.mxu0
    %v3033 = vsel %vm579, %v2987, 0
    %3035 = vmatprep.subr.bf16.mxu0 0
    %3036 = vmatpush1.bf16.msra.mxu0 %v2859
    %3037 = vmatprep.subr.bf16.mxu0 0
    %3038 = vmatpush1.bf16.msra.mxu0 0
    %3039 = vmatprep.subr.bf16.mxu0 0
    %3040 = vmatpush1.bf16.msra.mxu0 0
    %3041 = vmatprep.subr.bf16.mxu0 0
    %3042 = vmatpush1.bf16.msra.mxu0 0
    %3043 = vmatprep.subr.bf16.mxu0 0
    %3044 = vmatpush1.bf16.msra.mxu0 0
    %3045 = vmatprep.subr.bf16.mxu0 0
    %3046 = vmatpush1.bf16.msra.mxu0 0
    %3047 = vmatprep.subr.bf16.mxu0 0
    %3048 = vmatpush1.bf16.msra.mxu0 0
    %3049 = vmatprep.subr.bf16.mxu0 0
    %3050 = vmatpush1.bf16.msra.mxu0 0
    %3051 = vmatprep.subr.bf16.mxu0 0
    %3052 = vmatpush1.bf16.msra.mxu0 0
    %3053 = vmatprep.subr.bf16.mxu0 0
    %3054 = vmatpush1.bf16.msra.mxu0 0
    %3055 = vmatprep.subr.bf16.mxu0 0
    %3056 = vmatpush1.bf16.msra.mxu0 0
    %3057 = vmatprep.subr.bf16.mxu0 0
    %3058 = vmatpush1.bf16.msra.mxu0 0
    %3059 = vmatprep.subr.bf16.mxu0 0
    %3060 = vmatpush1.bf16.msra.mxu0 0
    %3061 = vmatprep.subr.bf16.mxu0 0
    %3062 = vmatpush1.bf16.msra.mxu0 0
    %3063 = vmatprep.subr.bf16.mxu0 0
    %3064 = vmatpush1.bf16.msra.mxu0 0
    %3065 = vmatprep.subr.bf16.mxu0 0
    %3066 = vmatpush1.bf16.msra.mxu0 0
    %3067 = vmatprep.mubr.bf16.mxu0 0
    %3068 = vmatmul.mubr.bf16.gmra.mrb[0].mxu0 %v3033
    %v3069 = vpop.f32.mrb[0].mxu0
    %v3070 = vadd.f32 0.0, %v3069
    %v3071 = vpop.f32.mrb[0].mxu0
    %v3072 = vpop.f32.mrb[0].mxu0
    %v3073 = vadd.f32 0.0, %v3072
    %v3074 = vpop.f32.mrb[0].mxu0
    %3075 = vdwg.mxu0
    %v3076 = vpack.c.bf16 %v3029, %v3026
    %v3077 = vpack.c.bf16 %v3073, %v3070
    %s3078 = scalar_lea.vmem %s7, 128
    %v3079 = vld [vmem:[%s3078] sm:$0xf]
    %v3080 = vld [vmem:[%s3078 + $0x4] sm:$0xf]
    %v3081 = vld [vmem:[%s3078 + $0x8] sm:$0xf]
    %v3082 = vld [vmem:[%s3078 + $0xc] sm:$0xf]
    %v3083 = vld [vmem:[%s3078 + $0x10] sm:$0xf]
    %v3084 = vld [vmem:[%s3078 + $0x14] sm:$0xf]
    %v3085 = vld [vmem:[%s3078 + $0x18] sm:$0xf]
    %v3086 = vld [vmem:[%s3078 + $0x1c] sm:$0xf]
    %v3087 = vld [vmem:[%s3078 + $0x20] sm:$0xf]
    %v3088 = vld [vmem:[%s3078 + $0x24] sm:$0xf]
    %v3089 = vld [vmem:[%s3078 + $0x28] sm:$0xf]
    %v3090 = vld [vmem:[%s3078 + $0x2c] sm:$0xf]
    %v3091 = vld [vmem:[%s3078 + $0x30] sm:$0xf]
    %v3092 = vld [vmem:[%s3078 + $0x34] sm:$0xf]
    %v3093 = vld [vmem:[%s3078 + $0x38] sm:$0xf]
    %v3094 = vld [vmem:[%s3078 + $0x3c] sm:$0xf]
    %s3095 = scalar_lea.vmem %s8, 2
    %v3096 = vld [vmem:[%s3095] sm:$0x1]
    %v3098 = vlaneseq
    %v3099 = vshrl.u32 %v3098, 7
    %v3100 = vsub.s32 0, %v3099
    %v3101 = vrot.slane %v3096, %v3100
    %v3119 = vunpack.c.l.b16 %v3079
    %v3120 = vunpack.c.l.b16 %v3080
    %v3121 = vunpack.c.l.b16 %v3081
    %v3122 = vunpack.c.l.b16 %v3082
    %v3123 = vunpack.c.l.b16 %v3083
    %v3124 = vunpack.c.l.b16 %v3084
    %v3125 = vunpack.c.l.b16 %v3085
    %v3126 = vunpack.c.l.b16 %v3086
    %v3127 = vunpack.c.l.b16 %v3087
    %v3128 = vunpack.c.l.b16 %v3088
    %v3129 = vunpack.c.l.b16 %v3089
    %v3130 = vunpack.c.l.b16 %v3090
    %v3131 = vunpack.c.l.b16 %v3091
    %v3132 = vunpack.c.l.b16 %v3092
    %v3133 = vunpack.c.l.b16 %v3093
    %v3134 = vunpack.c.l.b16 %v3094
    %v3135 = vpack.c.b16 %v3120, %v3119
    %v3136 = vpack.c.b16 %v3122, %v3121
    %v3137 = vpack.c.b16 %v3124, %v3123
    %v3138 = vpack.c.b16 %v3126, %v3125
    %v3139 = vpack.c.b16 %v3128, %v3127
    %v3140 = vpack.c.b16 %v3130, %v3129
    %v3141 = vpack.c.b16 %v3132, %v3131
    %v3142 = vpack.c.b16 %v3134, %v3133
    %3151 = vmatprep.subr.bf16.mxu0 0
    %3152 = vmatpush1.bf16.msra.mxu0 %v3135
    %3153 = vmatprep.subr.bf16.mxu0 0
    %3154 = vmatpush1.bf16.msra.mxu0 %v3136
    %3155 = vmatprep.subr.bf16.mxu0 0
    %3156 = vmatpush1.bf16.msra.mxu0 %v3137
    %3157 = vmatprep.subr.bf16.mxu0 0
    %3158 = vmatpush1.bf16.msra.mxu0 %v3138
    %3159 = vmatprep.subr.bf16.mxu0 0
    %3160 = vmatpush1.bf16.msra.mxu0 %v3139
    %3161 = vmatprep.subr.bf16.mxu0 0
    %3162 = vmatpush1.bf16.msra.mxu0 %v3140
    %3163 = vmatprep.subr.bf16.mxu0 0
    %3164 = vmatpush1.bf16.msra.mxu0 %v3141
    %3165 = vmatprep.subr.bf16.mxu0 0
    %3166 = vmatpush1.bf16.msra.mxu0 %v3142
    %3167 = vmatprep.subr.bf16.mxu0 0
    %3168 = vmatpush1.bf16.msra.mxu0 0
    %3169 = vmatprep.subr.bf16.mxu0 0
    %3170 = vmatpush1.bf16.msra.mxu0 0
    %3171 = vmatprep.subr.bf16.mxu0 0
    %3172 = vmatpush1.bf16.msra.mxu0 0
    %3173 = vmatprep.subr.bf16.mxu0 0
    %3174 = vmatpush1.bf16.msra.mxu0 0
    %3175 = vmatprep.subr.bf16.mxu0 0
    %3176 = vmatpush1.bf16.msra.mxu0 0
    %3177 = vmatprep.subr.bf16.mxu0 0
    %3178 = vmatpush1.bf16.msra.mxu0 0
    %3179 = vmatprep.subr.bf16.mxu0 0
    %3180 = vmatpush1.bf16.msra.mxu0 0
    %3181 = vmatprep.subr.bf16.mxu0 0
    %3182 = vmatpush1.bf16.msra.mxu0 0
    %3183 = vmatprep.mubr.bf16.mxu0 0
    %3184 = vmatmul.mubr.bf16.gmra.mrb[0].mxu0 %v3076
    %v3185 = vpop.f32.mrb[0].mxu0
    %v3186 = vadd.f32 %v3101, %v3185
    %v3187 = vpop.f32.mrb[0].mxu0
    %v3188 = vpop.f32.mrb[0].mxu0
    %v3189 = vadd.f32 %v3101, %v3188
    %v3190 = vpop.f32.mrb[0].mxu0
    %3191 = vmatprep.mubr.bf16.mxu0 0
    %3192 = vmatmul.mubr.bf16.gmra.mrb[0].mxu0 %v3077
    %v3193 = vpop.f32.mrb[0].mxu0
    %v3194 = vadd.f32 %v3101, %v3193
    %v3195 = vpop.f32.mrb[0].mxu0
    %v3196 = vpop.f32.mrb[0].mxu0
    %v3197 = vadd.f32 %v3101, %v3196
    %v3198 = vpop.f32.mrb[0].mxu0
    %3199 = vdwg.mxu0
    %v3200 = vadd.f32 %v2499, %v3186
    %v3201 = vadd.f32 %v2500, %v3189
    %v3202 = vadd.f32 %v2501, %v3194
    %v3203 = vadd.f32 %v2502, %v3197
    %3204 = vadd.xlane.f32.xlu0 %v3200
    %v3205 = vpop.xlane.xlu0 %3204
    %3206 = vadd.xlane.f32.xlu0 %v3201
    %v3207 = vpop.xlane.xlu0 %3206
    %3208 = vadd.xlane.f32.xlu0 %v3202
    %v3209 = vpop.xlane.xlu0 %3208
    %3210 = vadd.xlane.f32.xlu0 %v3203
    %v3211 = vpop.xlane.xlu0 %3210
    %v3212 = vmul.f32 %v3205, %v153
    %v3213 = vmul.f32 %v3207, %v153
    %v3214 = vmul.f32 %v3209, %v153
    %v3215 = vmul.f32 %v3211, %v153
    %v3216 = vsub.f32 %v3200, %v3212
    %v3217 = vsub.f32 %v3201, %v3213
    %v3218 = vsub.f32 %v3202, %v3214
    %v3219 = vsub.f32 %v3203, %v3215
    %v3220 = vmul.f32 %v3216, %v3216
    %v3221 = vmul.f32 %v3217, %v3217
    %v3222 = vmul.f32 %v3218, %v3218
    %v3223 = vmul.f32 %v3219, %v3219
    %3224 = vadd.xlane.f32.xlu0 %v3220
    %v3225 = vpop.xlane.xlu0 %3224
    %3226 = vadd.xlane.f32.xlu0 %v3221
    %v3227 = vpop.xlane.xlu0 %3226
    %3228 = vadd.xlane.f32.xlu0 %v3222
    %v3229 = vpop.xlane.xlu0 %3228
    %3230 = vadd.xlane.f32.xlu0 %v3223
    %v3231 = vpop.xlane.xlu0 %3230
    %v3232 = vmul.f32 %v3225, %v153
    %v3233 = vmul.f32 %v3227, %v153
    %v3234 = vmul.f32 %v3229, %v153
    %v3235 = vmul.f32 %v3231, %v153
    %v3236 = vadd.f32 %v3232, 1e-05
    %v3237 = vadd.f32 %v3233, 1e-05
    %v3238 = vadd.f32 %v3234, 1e-05
    %v3239 = vadd.f32 %v3235, 1e-05
    %v3240 = vrsqrt.pop %v3236
    %v3241 = vrsqrt.pop %v3237
    %v3242 = vrsqrt.pop %v3238
    %v3243 = vrsqrt.pop %v3239
    %v3244 = vmul.f32 %v3216, %v3240
    %v3245 = vmul.f32 %v3217, %v3241
    %v3246 = vmul.f32 %v3218, %v3242
    %v3247 = vmul.f32 %v3219, %v3243
    %v3248 = vmul.f32 %v3244, %v2555
    %v3249 = vmul.f32 %v3245, %v2555
    %v3250 = vmul.f32 %v3246, %v2555
    %v3251 = vmul.f32 %v3247, %v2555
    %v3252 = vadd.f32 %v3248, %v2565
    %v3253 = vadd.f32 %v3249, %v2565
    %v3254 = vadd.f32 %v3250, %v2565
    %v3255 = vadd.f32 %v3251, %v2565
    %v3256 = vpack.c.bf16 %v3253, %v3252
    %v3257 = vpack.c.bf16 %v3255, %v3254
    %s3258 = scalar_lea.vmem %s9, 256
    %v3259 = vld [vmem:[%s3258] sm:$0xff]
    %v3260 = vld [vmem:[%s3258 + $0x8] sm:$0xff]
    %v3261 = vld [vmem:[%s3258 + $0x10] sm:$0xff]
    %v3262 = vld [vmem:[%s3258 + $0x18] sm:$0xff]
    %v3263 = vld [vmem:[%s3258 + $0x20] sm:$0xff]
    %v3264 = vld [vmem:[%s3258 + $0x28] sm:$0xff]
    %v3265 = vld [vmem:[%s3258 + $0x30] sm:$0xff]
    %v3266 = vld [vmem:[%s3258 + $0x38] sm:$0xff]
    %v3267 = vld [vmem:[%s3258 + $0x40] sm:$0xff]
    %v3268 = vld [vmem:[%s3258 + $0x48] sm:$0xff]
    %v3269 = vld [vmem:[%s3258 + $0x50] sm:$0xff]
    %v3270 = vld [vmem:[%s3258 + $0x58] sm:$0xff]
    %v3271 = vld [vmem:[%s3258 + $0x60] sm:$0xff]
    %v3272 = vld [vmem:[%s3258 + $0x68] sm:$0xff]
    %v3273 = vld [vmem:[%s3258 + $0x70] sm:$0xff]
    %v3274 = vld [vmem:[%s3258 + $0x78] sm:$0xff]
    %s3275 = scalar_lea.vmem %s10, 4
    %v3276 = vld [vmem:[%s3275] sm:$0x3]
    %v3278 = vlaneseq
    %v3279 = vshrl.u32 %v3278, 7
    %v3280 = vsub.s32 0, %v3279
    %v3281 = vrot.slane %v3276, %v3280
    %v3282 = vlaneseq
    %v3283 = vshrl.u32 %v3282, 7
    %v3284 = vsub.s32 1, %v3283
    %v3285 = vrot.slane %v3276, %v3284
    %v3304 = vunpack.c.l.b16 %v3259
    %v3305 = vunpack.c.h.b16 %v3259
    %v3306 = vunpack.c.l.b16 %v3260
    %v3307 = vunpack.c.h.b16 %v3260
    %v3308 = vunpack.c.l.b16 %v3261
    %v3309 = vunpack.c.h.b16 %v3261
    %v3310 = vunpack.c.l.b16 %v3262
    %v3311 = vunpack.c.h.b16 %v3262
    %v3312 = vunpack.c.l.b16 %v3263
    %v3313 = vunpack.c.h.b16 %v3263
    %v3314 = vunpack.c.l.b16 %v3264
    %v3315 = vunpack.c.h.b16 %v3264
    %v3316 = vunpack.c.l.b16 %v3265
    %v3317 = vunpack.c.h.b16 %v3265
    %v3318 = vunpack.c.l.b16 %v3266
    %v3319 = vunpack.c.h.b16 %v3266
    %v3320 = vunpack.c.l.b16 %v3267
    %v3321 = vunpack.c.h.b16 %v3267
    %v3322 = vunpack.c.l.b16 %v3268
    %v3323 = vunpack.c.h.b16 %v3268
    %v3324 = vunpack.c.l.b16 %v3269
    %v3325 = vunpack.c.h.b16 %v3269
    %v3326 = vunpack.c.l.b16 %v3270
    %v3327 = vunpack.c.h.b16 %v3270
    %v3328 = vunpack.c.l.b16 %v3271
    %v3329 = vunpack.c.h.b16 %v3271
    %v3330 = vunpack.c.l.b16 %v3272
    %v3331 = vunpack.c.h.b16 %v3272
    %v3332 = vunpack.c.l.b16 %v3273
    %v3333 = vunpack.c.h.b16 %v3273
    %v3334 = vunpack.c.l.b16 %v3274
    %v3335 = vunpack.c.h.b16 %v3274
    %v3336 = vpack.c.b16 %v3306, %v3304
    %v3337 = vpack.c.b16 %v3307, %v3305
    %v3338 = vpack.c.b16 %v3310, %v3308
    %v3339 = vpack.c.b16 %v3311, %v3309
    %v3340 = vpack.c.b16 %v3314, %v3312
    %v3341 = vpack.c.b16 %v3315, %v3313
    %v3342 = vpack.c.b16 %v3318, %v3316
    %v3343 = vpack.c.b16 %v3319, %v3317
    %v3344 = vpack.c.b16 %v3322, %v3320
    %v3345 = vpack.c.b16 %v3323, %v3321
    %v3346 = vpack.c.b16 %v3326, %v3324
    %v3347 = vpack.c.b16 %v3327, %v3325
    %v3348 = vpack.c.b16 %v3330, %v3328
    %v3349 = vpack.c.b16 %v3331, %v3329
    %v3350 = vpack.c.b16 %v3334, %v3332
    %v3351 = vpack.c.b16 %v3335, %v3333
    %3368 = vmatprep.subr.bf16.mxu0 %v3337
    %3369 = vmatpush1.bf16.msra.mxu0 %v3336
    %3370 = vmatprep.subr.bf16.mxu0 %v3339
    %3371 = vmatpush1.bf16.msra.mxu0 %v3338
    %3372 = vmatprep.subr.bf16.mxu0 %v3341
    %3373 = vmatpush1.bf16.msra.mxu0 %v3340
    %3374 = vmatprep.subr.bf16.mxu0 %v3343
    %3375 = vmatpush1.bf16.msra.mxu0 %v3342
    %3376 = vmatprep.subr.bf16.mxu0 %v3345
    %3377 = vmatpush1.bf16.msra.mxu0 %v3344
    %3378 = vmatprep.subr.bf16.mxu0 %v3347
    %3379 = vmatpush1.bf16.msra.mxu0 %v3346
    %3380 = vmatprep.subr.bf16.mxu0 %v3349
    %3381 = vmatpush1.bf16.msra.mxu0 %v3348
    %3382 = vmatprep.subr.bf16.mxu0 %v3351
    %3383 = vmatpush1.bf16.msra.mxu0 %v3350
    %3384 = vmatprep.subr.bf16.mxu0 0
    %3385 = vmatpush1.bf16.msra.mxu0 0
    %3386 = vmatprep.subr.bf16.mxu0 0
    %3387 = vmatpush1.bf16.msra.mxu0 0
    %3388 = vmatprep.subr.bf16.mxu0 0
    %3389 = vmatpush1.bf16.msra.mxu0 0
    %3390 = vmatprep.subr.bf16.mxu0 0
    %3391 = vmatpush1.bf16.msra.mxu0 0
    %3392 = vmatprep.subr.bf16.mxu0 0
    %3393 = vmatpush1.bf16.msra.mxu0 0
    %3394 = vmatprep.subr.bf16.mxu0 0
    %3395 = vmatpush1.bf16.msra.mxu0 0
    %3396 = vmatprep.subr.bf16.mxu0 0
    %3397 = vmatpush1.bf16.msra.mxu0 0
    %3398 = vmatprep.subr.bf16.mxu0 0
    %3399 = vmatpush1.bf16.msra.mxu0 0
    %3400 = vmatprep.mubr.bf16.mxu0 0
    %3401 = vmatmul.mubr.bf16.gmra.mrb[0].mxu0 %v3256
    %v3402 = vpop.f32.mrb[0].mxu0
    %v3403 = vadd.f32 %v3281, %v3402
    %v3404 = vpop.f32.mrb[0].mxu0
    %v3405 = vadd.f32 %v3285, %v3404
    %v3406 = vpop.f32.mrb[0].mxu0
    %v3407 = vadd.f32 %v3281, %v3406
    %v3408 = vpop.f32.mrb[0].mxu0
    %v3409 = vadd.f32 %v3285, %v3408
    %3410 = vmatprep.mubr.bf16.mxu0 0
    %3411 = vmatmul.mubr.bf16.gmra.mrb[0].mxu0 %v3257
    %v3412 = vpop.f32.mrb[0].mxu0
    %v3413 = vadd.f32 %v3281, %v3412
    %v3414 = vpop.f32.mrb[0].mxu0
    %v3415 = vadd.f32 %v3285, %v3414
    %v3416 = vpop.f32.mrb[0].mxu0
    %v3417 = vadd.f32 %v3281, %v3416
    %v3418 = vpop.f32.mrb[0].mxu0
    %v3419 = vadd.f32 %v3285, %v3418
    %3420 = vdwg.mxu0
    %v3421 = vmul.f32 %v3403, 0.5
    %v3422 = vmul.f32 %v3405, 0.5
    %v3423 = vmul.f32 %v3407, 0.5
    %v3424 = vmul.f32 %v3409, 0.5
    %v3425 = vmul.f32 %v3413, 0.5
    %v3426 = vmul.f32 %v3415, 0.5
    %v3427 = vmul.f32 %v3417, 0.5
    %v3428 = vmul.f32 %v3419, 0.5
    %v3429 = vmul.f32 %v3403, 0.044715
    %v3430 = vmul.f32 %v3405, 0.044715
    %v3431 = vmul.f32 %v3407, 0.044715
    %v3432 = vmul.f32 %v3409, 0.044715
    %v3433 = vmul.f32 %v3413, 0.044715
    %v3434 = vmul.f32 %v3415, 0.044715
    %v3435 = vmul.f32 %v3417, 0.044715
    %v3436 = vmul.f32 %v3419, 0.044715
    %v3437 = vmul.f32 %v3429, %v3403
    %v3438 = vmul.f32 %v3430, %v3405
    %v3439 = vmul.f32 %v3431, %v3407
    %v3440 = vmul.f32 %v3432, %v3409
    %v3441 = vmul.f32 %v3433, %v3413
    %v3442 = vmul.f32 %v3434, %v3415
    %v3443 = vmul.f32 %v3435, %v3417
    %v3444 = vmul.f32 %v3436, %v3419
    %v3445 = vmul.f32 %v3437, %v3403
    %v3446 = vmul.f32 %v3438, %v3405
    %v3447 = vmul.f32 %v3439, %v3407
    %v3448 = vmul.f32 %v3440, %v3409
    %v3449 = vmul.f32 %v3441, %v3413
    %v3450 = vmul.f32 %v3442, %v3415
    %v3451 = vmul.f32 %v3443, %v3417
    %v3452 = vmul.f32 %v3444, %v3419
    %v3453 = vadd.f32 %v3403, %v3445
    %v3454 = vadd.f32 %v3405, %v3446
    %v3455 = vadd.f32 %v3407, %v3447
    %v3456 = vadd.f32 %v3409, %v3448
    %v3457 = vadd.f32 %v3413, %v3449
    %v3458 = vadd.f32 %v3415, %v3450
    %v3459 = vadd.f32 %v3417, %v3451
    %v3460 = vadd.f32 %v3419, %v3452
    %v3461 = vmul.f32 %v3453, 0.7978846
    %v3462 = vmul.f32 %v3454, 0.7978846
    %v3463 = vmul.f32 %v3455, 0.7978846
    %v3464 = vmul.f32 %v3456, 0.7978846
    %v3465 = vmul.f32 %v3457, 0.7978846
    %v3466 = vmul.f32 %v3458, 0.7978846
    %v3467 = vmul.f32 %v3459, 0.7978846
    %v3468 = vmul.f32 %v3460, 0.7978846
    %v3469 = vtanh.pop %v3461
    %v3470 = vtanh.pop %v3462
    %v3471 = vtanh.pop %v3463
    %v3472 = vtanh.pop %v3464
    %v3473 = vtanh.pop %v3465
    %v3474 = vtanh.pop %v3466
    %v3475 = vtanh.pop %v3467
    %v3476 = vtanh.pop %v3468
    %v3477 = vadd.f32 %v3469, 1.0
    %v3478 = vadd.f32 %v3470, 1.0
    %v3479 = vadd.f32 %v3471, 1.0
    %v3480 = vadd.f32 %v3472, 1.0
    %v3481 = vadd.f32 %v3473, 1.0
    %v3482 = vadd.f32 %v3474, 1.0
    %v3483 = vadd.f32 %v3475, 1.0
    %v3484 = vadd.f32 %v3476, 1.0
    %v3485 = vmul.f32 %v3421, %v3477
    %v3486 = vmul.f32 %v3422, %v3478
    %v3487 = vmul.f32 %v3423, %v3479
    %v3488 = vmul.f32 %v3424, %v3480
    %v3489 = vmul.f32 %v3425, %v3481
    %v3490 = vmul.f32 %v3426, %v3482
    %v3491 = vmul.f32 %v3427, %v3483
    %v3492 = vmul.f32 %v3428, %v3484
    %v3493 = vpack.c.bf16 %v3487, %v3485
    %v3494 = vpack.c.bf16 %v3488, %v3486
    %v3495 = vpack.c.bf16 %v3491, %v3489
    %v3496 = vpack.c.bf16 %v3492, %v3490
    %s3497 = scalar_lea.vmem %s11, 256
    %v3498 = vld [vmem:[%s3497] sm:$0xf]
    %v3499 = vld [vmem:[%s3497 + $0x4] sm:$0xf]
    %v3500 = vld [vmem:[%s3497 + $0x8] sm:$0xf]
    %v3501 = vld [vmem:[%s3497 + $0xc] sm:$0xf]
    %v3502 = vld [vmem:[%s3497 + $0x10] sm:$0xf]
    %v3503 = vld [vmem:[%s3497 + $0x14] sm:$0xf]
    %v3504 = vld [vmem:[%s3497 + $0x18] sm:$0xf]
    %v3505 = vld [vmem:[%s3497 + $0x1c] sm:$0xf]
    %v3506 = vld [vmem:[%s3497 + $0x20] sm:$0xf]
    %v3507 = vld [vmem:[%s3497 + $0x24] sm:$0xf]
    %v3508 = vld [vmem:[%s3497 + $0x28] sm:$0xf]
    %v3509 = vld [vmem:[%s3497 + $0x2c] sm:$0xf]
    %v3510 = vld [vmem:[%s3497 + $0x30] sm:$0xf]
    %v3511 = vld [vmem:[%s3497 + $0x34] sm:$0xf]
    %v3512 = vld [vmem:[%s3497 + $0x38] sm:$0xf]
    %v3513 = vld [vmem:[%s3497 + $0x3c] sm:$0xf]
    %v3514 = vld [vmem:[%s3497 + $0x40] sm:$0xf]
    %v3515 = vld [vmem:[%s3497 + $0x44] sm:$0xf]
    %v3516 = vld [vmem:[%s3497 + $0x48] sm:$0xf]
    %v3517 = vld [vmem:[%s3497 + $0x4c] sm:$0xf]
    %v3518 = vld [vmem:[%s3497 + $0x50] sm:$0xf]
    %v3519 = vld [vmem:[%s3497 + $0x54] sm:$0xf]
    %v3520 = vld [vmem:[%s3497 + $0x58] sm:$0xf]
    %v3521 = vld [vmem:[%s3497 + $0x5c] sm:$0xf]
    %v3522 = vld [vmem:[%s3497 + $0x60] sm:$0xf]
    %v3523 = vld [vmem:[%s3497 + $0x64] sm:$0xf]
    %v3524 = vld [vmem:[%s3497 + $0x68] sm:$0xf]
    %v3525 = vld [vmem:[%s3497 + $0x6c] sm:$0xf]
    %v3526 = vld [vmem:[%s3497 + $0x70] sm:$0xf]
    %v3527 = vld [vmem:[%s3497 + $0x74] sm:$0xf]
    %v3528 = vld [vmem:[%s3497 + $0x78] sm:$0xf]
    %v3529 = vld [vmem:[%s3497 + $0x7c] sm:$0xf]
    %s3530 = scalar_lea.vmem %s12, 2
    %v3531 = vld [vmem:[%s3530] sm:$0x1]
    %v3533 = vlaneseq
    %v3534 = vshrl.u32 %v3533, 7
    %v3535 = vsub.s32 0, %v3534
    %v3536 = vrot.slane %v3531, %v3535
    %v3570 = vunpack.c.l.b16 %v3498
    %v3571 = vunpack.c.l.b16 %v3499
    %v3572 = vunpack.c.l.b16 %v3500
    %v3573 = vunpack.c.l.b16 %v3501
    %v3574 = vunpack.c.l.b16 %v3502
    %v3575 = vunpack.c.l.b16 %v3503
    %v3576 = vunpack.c.l.b16 %v3504
    %v3577 = vunpack.c.l.b16 %v3505
    %v3578 = vunpack.c.l.b16 %v3506
    %v3579 = vunpack.c.l.b16 %v3507
    %v3580 = vunpack.c.l.b16 %v3508
    %v3581 = vunpack.c.l.b16 %v3509
    %v3582 = vunpack.c.l.b16 %v3510
    %v3583 = vunpack.c.l.b16 %v3511
    %v3584 = vunpack.c.l.b16 %v3512
    %v3585 = vunpack.c.l.b16 %v3513
    %v3586 = vunpack.c.l.b16 %v3514
    %v3587 = vunpack.c.l.b16 %v3515
    %v3588 = vunpack.c.l.b16 %v3516
    %v3589 = vunpack.c.l.b16 %v3517
    %v3590 = vunpack.c.l.b16 %v3518
    %v3591 = vunpack.c.l.b16 %v3519
    %v3592 = vunpack.c.l.b16 %v3520
    %v3593 = vunpack.c.l.b16 %v3521
    %v3594 = vunpack.c.l.b16 %v3522
    %v3595 = vunpack.c.l.b16 %v3523
    %v3596 = vunpack.c.l.b16 %v3524
    %v3597 = vunpack.c.l.b16 %v3525
    %v3598 = vunpack.c.l.b16 %v3526
    %v3599 = vunpack.c.l.b16 %v3527
    %v3600 = vunpack.c.l.b16 %v3528
    %v3601 = vunpack.c.l.b16 %v3529
    %v3602 = vpack.c.b16 %v3571, %v3570
    %v3603 = vpack.c.b16 %v3573, %v3572
    %v3604 = vpack.c.b16 %v3575, %v3574
    %v3605 = vpack.c.b16 %v3577, %v3576
    %v3606 = vpack.c.b16 %v3579, %v3578
    %v3607 = vpack.c.b16 %v3581, %v3580
    %v3608 = vpack.c.b16 %v3583, %v3582
    %v3609 = vpack.c.b16 %v3585, %v3584
    %v3610 = vpack.c.b16 %v3587, %v3586
    %v3611 = vpack.c.b16 %v3589, %v3588
    %v3612 = vpack.c.b16 %v3591, %v3590
    %v3613 = vpack.c.b16 %v3593, %v3592
    %v3614 = vpack.c.b16 %v3595, %v3594
    %v3615 = vpack.c.b16 %v3597, %v3596
    %v3616 = vpack.c.b16 %v3599, %v3598
    %v3617 = vpack.c.b16 %v3601, %v3600
    %3634 = vmatprep.subr.bf16.mxu0 0
    %3635 = vmatpush1.bf16.msra.mxu0 %v3602
    %3636 = vmatprep.subr.bf16.mxu0 0
    %3637 = vmatpush1.bf16.msra.mxu0 %v3603
    %3638 = vmatprep.subr.bf16.mxu0 0
    %3639 = vmatpush1.bf16.msra.mxu0 %v3604
    %3640 = vmatprep.subr.bf16.mxu0 0
    %3641 = vmatpush1.bf16.msra.mxu0 %v3605
    %3642 = vmatprep.subr.bf16.mxu0 0
    %3643 = vmatpush1.bf16.msra.mxu0 %v3606
    %3644 = vmatprep.subr.bf16.mxu0 0
    %3645 = vmatpush1.bf16.msra.mxu0 %v3607
    %3646 = vmatprep.subr.bf16.mxu0 0
    %3647 = vmatpush1.bf16.msra.mxu0 %v3608
    %3648 = vmatprep.subr.bf16.mxu0 0
    %3649 = vmatpush1.bf16.msra.mxu0 %v3609
    %3650 = vmatprep.subr.bf16.mxu0 0
    %3651 = vmatpush1.bf16.msra.mxu0 %v3610
    %3652 = vmatprep.subr.bf16.mxu0 0
    %3653 = vmatpush1.bf16.msra.mxu0 %v3611
    %3654 = vmatprep.subr.bf16.mxu0 0
    %3655 = vmatpush1.bf16.msra.mxu0 %v3612
    %3656 = vmatprep.subr.bf16.mxu0 0
    %3657 = vmatpush1.bf16.msra.mxu0 %v3613
    %3658 = vmatprep.subr.bf16.mxu0 0
    %3659 = vmatpush1.bf16.msra.mxu0 %v3614
    %3660 = vmatprep.subr.bf16.mxu0 0
    %3661 = vmatpush1.bf16.msra.mxu0 %v3615
    %3662 = vmatprep.subr.bf16.mxu0 0
    %3663 = vmatpush1.bf16.msra.mxu0 %v3616
    %3664 = vmatprep.subr.bf16.mxu0 0
    %3665 = vmatpush1.bf16.msra.mxu0 %v3617
    %3666 = vmatprep.mubr.bf16.mxu0 %v3494
    %3667 = vmatmul.mubr.bf16.gmra.mrb[0].mxu0 %v3493
    %v3668 = vpop.f32.mrb[0].mxu0
    %v3669 = vadd.f32 %v3536, %v3668
    %v3670 = vpop.f32.mrb[0].mxu0
    %v3671 = vpop.f32.mrb[0].mxu0
    %v3672 = vadd.f32 %v3536, %v3671
    %v3673 = vpop.f32.mrb[0].mxu0
    %3674 = vmatprep.mubr.bf16.mxu0 %v3496
    %3675 = vmatmul.mubr.bf16.gmra.mrb[0].mxu0 %v3495
    %v3676 = vpop.f32.mrb[0].mxu0
    %v3677 = vadd.f32 %v3536, %v3676
    %v3678 = vpop.f32.mrb[0].mxu0
    %v3679 = vpop.f32.mrb[0].mxu0
    %v3680 = vadd.f32 %v3536, %v3679
    %v3681 = vpop.f32.mrb[0].mxu0
    %3682 = vdwg.mxu0
    %v3683 = vadd.f32 %v3200, %v3669
    %v3684 = vadd.f32 %v3201, %v3672
    %v3685 = vadd.f32 %v3202, %v3677
    %v3686 = vadd.f32 %v3203, %v3680
    %s3687 = scalar_lea.vmem %s3, 3
    %v3688 = vld [vmem:[%s3687] sm:$0x1]
    %s3689 = scalar_lea.vmem %s4, 3
    %v3690 = vld [vmem:[%s3689] sm:$0x1]
    %3691 = vadd.xlane.f32.xlu0 %v3683
    %v3692 = vpop.xlane.xlu0 %3691
    %3693 = vadd.xlane.f32.xlu0 %v3684
    %v3694 = vpop.xlane.xlu0 %3693
    %3695 = vadd.xlane.f32.xlu0 %v3685
    %v3696 = vpop.xlane.xlu0 %3695
    %3697 = vadd.xlane.f32.xlu0 %v3686
    %v3698 = vpop.xlane.xlu0 %3697
    %v3699 = vmul.f32 %v3692, %v153
    %v3700 = vmul.f32 %v3694, %v153
    %v3701 = vmul.f32 %v3696, %v153
    %v3702 = vmul.f32 %v3698, %v153
    %v3703 = vsub.f32 %v3683, %v3699
    %v3704 = vsub.f32 %v3684, %v3700
    %v3705 = vsub.f32 %v3685, %v3701
    %v3706 = vsub.f32 %v3686, %v3702
    %v3707 = vmul.f32 %v3703, %v3703
    %v3708 = vmul.f32 %v3704, %v3704
    %v3709 = vmul.f32 %v3705, %v3705
    %v3710 = vmul.f32 %v3706, %v3706
    %3711 = vadd.xlane.f32.xlu0 %v3707
    %v3712 = vpop.xlane.xlu0 %3711
    %3713 = vadd.xlane.f32.xlu0 %v3708
    %v3714 = vpop.xlane.xlu0 %3713
    %3715 = vadd.xlane.f32.xlu0 %v3709
    %v3716 = vpop.xlane.xlu0 %3715
    %3717 = vadd.xlane.f32.xlu0 %v3710
    %v3718 = vpop.xlane.xlu0 %3717
    %v3719 = vmul.f32 %v3712, %v153
    %v3720 = vmul.f32 %v3714, %v153
    %v3721 = vmul.f32 %v3716, %v153
    %v3722 = vmul.f32 %v3718, %v153
    %v3723 = vadd.f32 %v3719, 1e-05
    %v3724 = vadd.f32 %v3720, 1e-05
    %v3725 = vadd.f32 %v3721, 1e-05
    %v3726 = vadd.f32 %v3722, 1e-05
    %v3727 = vrsqrt.pop %v3723
    %v3728 = vrsqrt.pop %v3724
    %v3729 = vrsqrt.pop %v3725
    %v3730 = vrsqrt.pop %v3726
    %v3731 = vmul.f32 %v3703, %v3727
    %v3732 = vmul.f32 %v3704, %v3728
    %v3733 = vmul.f32 %v3705, %v3729
    %v3734 = vmul.f32 %v3706, %v3730
    %v3736 = vlaneseq
    %v3737 = vshrl.u32 %v3736, 7
    %v3738 = vsub.s32 0, %v3737
    %v3739 = vrot.slane %v3688, %v3738
    %v3741 = vmul.f32 %v3731, %v3739
    %v3742 = vmul.f32 %v3732, %v3739
    %v3743 = vmul.f32 %v3733, %v3739
    %v3744 = vmul.f32 %v3734, %v3739
    %v3746 = vlaneseq
    %v3747 = vshrl.u32 %v3746, 7
    %v3748 = vsub.s32 0, %v3747
    %v3749 = vrot.slane %v3690, %v3748
    %v3751 = vadd.f32 %v3741, %v3749
    %v3752 = vadd.f32 %v3742, %v3749
    %v3753 = vadd.f32 %v3743, %v3749
    %v3754 = vadd.f32 %v3744, %v3749
    %v3755 = vpack.c.bf16 %v3752, %v3751
    %v3756 = vpack.c.bf16 %v3754, %v3753
    %s3757 = scalar_lea.vmem %s5, 576
    %v3758 = vld [vmem:[%s3757] sm:$0xff]
    %v3759 = vld [vmem:[%s3757 + $0x8] sm:$0xf]
    %v3760 = vld [vmem:[%s3757 + $0xc] sm:$0xff]
    %v3761 = vld [vmem:[%s3757 + $0x14] sm:$0xf]
    %v3762 = vld [vmem:[%s3757 + $0x18] sm:$0xff]
    %v3763 = vld [vmem:[%s3757 + $0x20] sm:$0xf]
    %v3764 = vld [vmem:[%s3757 + $0x24] sm:$0xff]
    %v3765 = vld [vmem:[%s3757 + $0x2c] sm:$0xf]
    %v3766 = vld [vmem:[%s3757 + $0x30] sm:$0xff]
    %v3767 = vld [vmem:[%s3757 + $0x38] sm:$0xf]
    %v3768 = vld [vmem:[%s3757 + $0x3c] sm:$0xff]
    %v3769 = vld [vmem:[%s3757 + $0x44] sm:$0xf]
    %v3770 = vld [vmem:[%s3757 + $0x48] sm:$0xff]
    %v3771 = vld [vmem:[%s3757 + $0x50] sm:$0xf]
    %v3772 = vld [vmem:[%s3757 + $0x54] sm:$0xff]
    %v3773 = vld [vmem:[%s3757 + $0x5c] sm:$0xf]
    %v3774 = vld [vmem:[%s3757 + $0x60] sm:$0xff]
    %v3775 = vld [vmem:[%s3757 + $0x68] sm:$0xf]
    %v3776 = vld [vmem:[%s3757 + $0x6c] sm:$0xff]
    %v3777 = vld [vmem:[%s3757 + $0x74] sm:$0xf]
    %v3778 = vld [vmem:[%s3757 + $0x78] sm:$0xff]
    %v3779 = vld [vmem:[%s3757 + $0x80] sm:$0xf]
    %v3780 = vld [vmem:[%s3757 + $0x84] sm:$0xff]
    %v3781 = vld [vmem:[%s3757 + $0x8c] sm:$0xf]
    %v3782 = vld [vmem:[%s3757 + $0x90] sm:$0xff]
    %v3783 = vld [vmem:[%s3757 + $0x98] sm:$0xf]
    %v3784 = vld [vmem:[%s3757 + $0x9c] sm:$0xff]
    %v3785 = vld [vmem:[%s3757 + $0xa4] sm:$0xf]
    %v3786 = vld [vmem:[%s3757 + $0xa8] sm:$0xff]
    %v3787 = vld [vmem:[%s3757 + $0xb0] sm:$0xf]
    %v3788 = vld [vmem:[%s3757 + $0xb4] sm:$0xff]
    %v3789 = vld [vmem:[%s3757 + $0xbc] sm:$0xf]
    %s3790 = scalar_lea.vmem %s6, 9
    %v3791 = vld [vmem:[%s3790] sm:$0x7]
    %v3793 = vlaneseq
    %v3794 = vshrl.u32 %v3793, 7
    %v3795 = vsub.s32 0, %v3794
    %v3796 = vrot.slane %v3791, %v3795
    %v3797 = vlaneseq
    %v3798 = vshrl.u32 %v3797, 7
    %v3799 = vsub.s32 1, %v3798
    %v3800 = vrot.slane %v3791, %v3799
    %v3801 = vlaneseq
    %v3802 = vshrl.u32 %v3801, 7
    %v3803 = vsub.s32 2, %v3802
    %v3804 = vrot.slane %v3791, %v3803
    %v3840 = vunpack.c.l.b16 %v3758
    %v3841 = vunpack.c.h.b16 %v3758
    %v3842 = vunpack.c.l.b16 %v3759
    %v3843 = vunpack.c.l.b16 %v3760
    %v3844 = vunpack.c.h.b16 %v3760
    %v3845 = vunpack.c.l.b16 %v3761
    %v3846 = vunpack.c.l.b16 %v3762
    %v3847 = vunpack.c.h.b16 %v3762
    %v3848 = vunpack.c.l.b16 %v3763
    %v3849 = vunpack.c.l.b16 %v3764
    %v3850 = vunpack.c.h.b16 %v3764
    %v3851 = vunpack.c.l.b16 %v3765
    %v3852 = vunpack.c.l.b16 %v3766
    %v3853 = vunpack.c.h.b16 %v3766
    %v3854 = vunpack.c.l.b16 %v3767
    %v3855 = vunpack.c.l.b16 %v3768
    %v3856 = vunpack.c.h.b16 %v3768
    %v3857 = vunpack.c.l.b16 %v3769
    %v3858 = vunpack.c.l.b16 %v3770
    %v3859 = vunpack.c.h.b16 %v3770
    %v3860 = vunpack.c.l.b16 %v3771
    %v3861 = vunpack.c.l.b16 %v3772
    %v3862 = vunpack.c.h.b16 %v3772
    %v3863 = vunpack.c.l.b16 %v3773
    %v3864 = vunpack.c.l.b16 %v3774
    %v3865 = vunpack.c.h.b16 %v3774
    %v3866 = vunpack.c.l.b16 %v3775
    %v3867 = vunpack.c.l.b16 %v3776
    %v3868 = vunpack.c.h.b16 %v3776
    %v3869 = vunpack.c.l.b16 %v3777
    %v3870 = vunpack.c.l.b16 %v3778
    %v3871 = vunpack.c.h.b16 %v3778
    %v3872 = vunpack.c.l.b16 %v3779
    %v3873 = vunpack.c.l.b16 %v3780
    %v3874 = vunpack.c.h.b16 %v3780
    %v3875 = vunpack.c.l.b16 %v3781
    %v3876 = vunpack.c.l.b16 %v3782
    %v3877 = vunpack.c.h.b16 %v3782
    %v3878 = vunpack.c.l.b16 %v3783
    %v3879 = vunpack.c.l.b16 %v3784
    %v3880 = vunpack.c.h.b16 %v3784
    %v3881 = vunpack.c.l.b16 %v3785
    %v3882 = vunpack.c.l.b16 %v3786
    %v3883 = vunpack.c.h.b16 %v3786
    %v3884 = vunpack.c.l.b16 %v3787
    %v3885 = vunpack.c.l.b16 %v3788
    %v3886 = vunpack.c.h.b16 %v3788
    %v3887 = vunpack.c.l.b16 %v3789
    %v3888 = vpack.c.b16 %v3843, %v3840
    %v3889 = vpack.c.b16 %v3844, %v3841
    %v3890 = vpack.c.b16 %v3845, %v3842
    %v3891 = vpack.c.b16 %v3849, %v3846
    %v3892 = vpack.c.b16 %v3850, %v3847
    %v3893 = vpack.c.b16 %v3851, %v3848
    %v3894 = vpack.c.b16 %v3855, %v3852
    %v3895 = vpack.c.b16 %v3856, %v3853
    %v3896 = vpack.c.b16 %v3857, %v3854
    %v3897 = vpack.c.b16 %v3861, %v3858
    %v3898 = vpack.c.b16 %v3862, %v3859
    %v3899 = vpack.c.b16 %v3863, %v3860
    %v3900 = vpack.c.b16 %v3867, %v3864
    %v3901 = vpack.c.b16 %v3868, %v3865
    %v3902 = vpack.c.b16 %v3869, %v3866
    %v3903 = vpack.c.b16 %v3873, %v3870
    %v3904 = vpack.c.b16 %v3874, %v3871
    %v3905 = vpack.c.b16 %v3875, %v3872
    %v3906 = vpack.c.b16 %v3879, %v3876
    %v3907 = vpack.c.b16 %v3880, %v3877
    %v3908 = vpack.c.b16 %v3881, %v3878
    %v3909 = vpack.c.b16 %v3885, %v3882
    %v3910 = vpack.c.b16 %v3886, %v3883
    %v3911 = vpack.c.b16 %v3887, %v3884
    %3936 = vmatprep.subr.bf16.mxu0 %v3889
    %3937 = vmatpush1.bf16.msra.mxu0 %v3888
    %3938 = vmatprep.subr.bf16.mxu0 %v3892
    %3939 = vmatpush1.bf16.msra.mxu0 %v3891
    %3940 = vmatprep.subr.bf16.mxu0 %v3895
    %3941 = vmatpush1.bf16.msra.mxu0 %v3894
    %3942 = vmatprep.subr.bf16.mxu0 %v3898
    %3943 = vmatpush1.bf16.msra.mxu0 %v3897
    %3944 = vmatprep.subr.bf16.mxu0 %v3901
    %3945 = vmatpush1.bf16.msra.mxu0 %v3900
    %3946 = vmatprep.subr.bf16.mxu0 %v3904
    %3947 = vmatpush1.bf16.msra.mxu0 %v3903
    %3948 = vmatprep.subr.bf16.mxu0 %v3907
    %3949 = vmatpush1.bf16.msra.mxu0 %v3906
    %3950 = vmatprep.subr.bf16.mxu0 %v3910
    %3951 = vmatpush1.bf16.msra.mxu0 %v3909
    %3952 = vmatprep.subr.bf16.mxu0 0
    %3953 = vmatpush1.bf16.msra.mxu0 0
    %3954 = vmatprep.subr.bf16.mxu0 0
    %3955 = vmatpush1.bf16.msra.mxu0 0
    %3956 = vmatprep.subr.bf16.mxu0 0
    %3957 = vmatpush1.bf16.msra.mxu0 0
    %3958 = vmatprep.subr.bf16.mxu0 0
    %3959 = vmatpush1.bf16.msra.mxu0 0
    %3960 = vmatprep.subr.bf16.mxu0 0
    %3961 = vmatpush1.bf16.msra.mxu0 0
    %3962 = vmatprep.subr.bf16.mxu0 0
    %3963 = vmatpush1.bf16.msra.mxu0 0
    %3964 = vmatprep.subr.bf16.mxu0 0
    %3965 = vmatpush1.bf16.msra.mxu0 0
    %3966 = vmatprep.subr.bf16.mxu0 0
    %3967 = vmatpush1.bf16.msra.mxu0 0
    %3968 = vmatprep.mubr.bf16.mxu0 0
    %3969 = vmatmul.mubr.bf16.gmra.mrb[0].mxu0 %v3755
    %v3970 = vpop.f32.mrb[0].mxu0
    %v3971 = vadd.f32 %v3796, %v3970
    %v3972 = vpop.f32.mrb[0].mxu0
    %v3973 = vadd.f32 %v3800, %v3972
    %v3974 = vpop.f32.mrb[0].mxu0
    %v3975 = vadd.f32 %v3796, %v3974
    %v3976 = vpop.f32.mrb[0].mxu0
    %v3977 = vadd.f32 %v3800, %v3976
    %3978 = vmatprep.mubr.bf16.mxu0 0
    %3979 = vmatmul.mubr.bf16.gmra.mrb[0].mxu0 %v3756
    %v3980 = vpop.f32.mrb[0].mxu0
    %v3981 = vadd.f32 %v3796, %v3980
    %v3982 = vpop.f32.mrb[0].mxu0
    %v3983 = vadd.f32 %v3800, %v3982
    %v3984 = vpop.f32.mrb[0].mxu0
    %v3985 = vadd.f32 %v3796, %v3984
    %v3986 = vpop.f32.mrb[0].mxu0
    %v3987 = vadd.f32 %v3800, %v3986
    %3988 = vdwg.mxu0
    %3989 = vmatprep.subr.bf16.mxu0 0
    %3990 = vmatpush1.bf16.msra.mxu0 %v3890
    %3991 = vmatprep.subr.bf16.mxu0 0
    %3992 = vmatpush1.bf16.msra.mxu0 %v3893
    %3993 = vmatprep.subr.bf16.mxu0 0
    %3994 = vmatpush1.bf16.msra.mxu0 %v3896
    %3995 = vmatprep.subr.bf16.mxu0 0
    %3996 = vmatpush1.bf16.msra.mxu0 %v3899
    %3997 = vmatprep.subr.bf16.mxu0 0
    %3998 = vmatpush1.bf16.msra.mxu0 %v3902
    %3999 = vmatprep.subr.bf16.mxu0 0
    %4000 = vmatpush1.bf16.msra.mxu0 %v3905
    %4001 = vmatprep.subr.bf16.mxu0 0
    %4002 = vmatpush1.bf16.msra.mxu0 %v3908
    %4003 = vmatprep.subr.bf16.mxu0 0
    %4004 = vmatpush1.bf16.msra.mxu0 %v3911
    %4005 = vmatprep.subr.bf16.mxu0 0
    %4006 = vmatpush1.bf16.msra.mxu0 0
    %4007 = vmatprep.subr.bf16.mxu0 0
    %4008 = vmatpush1.bf16.msra.mxu0 0
    %4009 = vmatprep.subr.bf16.mxu0 0
    %4010 = vmatpush1.bf16.msra.mxu0 0
    %4011 = vmatprep.subr.bf16.mxu0 0
    %4012 = vmatpush1.bf16.msra.mxu0 0
    %4013 = vmatprep.subr.bf16.mxu0 0
    %4014 = vmatpush1.bf16.msra.mxu0 0
    %4015 = vmatprep.subr.bf16.mxu0 0
    %4016 = vmatpush1.bf16.msra.mxu0 0
    %4017 = vmatprep.subr.bf16.mxu0 0
    %4018 = vmatpush1.bf16.msra.mxu0 0
    %4019 = vmatprep.subr.bf16.mxu0 0
    %4020 = vmatpush1.bf16.msra.mxu0 0
    %4021 = vmatprep.mubr.bf16.mxu0 0
    %4022 = vmatmul.mubr.bf16.gmra.mrb[0].mxu0 %v3755
    %v4023 = vpop.f32.mrb[0].mxu0
    %v4024 = vadd.f32 %v3804, %v4023
    %v4025 = vpop.f32.mrb[0].mxu0
    %v4026 = vpop.f32.mrb[0].mxu0
    %v4027 = vadd.f32 %v3804, %v4026
    %v4028 = vpop.f32.mrb[0].mxu0
    %4029 = vmatprep.mubr.bf16.mxu0 0
    %4030 = vmatmul.mubr.bf16.gmra.mrb[0].mxu0 %v3756
    %v4031 = vpop.f32.mrb[0].mxu0
    %v4032 = vadd.f32 %v3804, %v4031
    %v4033 = vpop.f32.mrb[0].mxu0
    %v4034 = vpop.f32.mrb[0].mxu0
    %v4035 = vadd.f32 %v3804, %v4034
    %v4036 = vpop.f32.mrb[0].mxu0
    %4037 = vdwg.mxu0
    %v4038 = vpack.c.bf16 %v3975, %v3971
    %v4039 = vpack.c.bf16 %v3985, %v3981
    %v4040 = vpack.c.bf16 %v3977, %v3973
    %v4041 = vpack.c.bf16 %v3987, %v3983
    %v4042 = vpack.c.bf16 %v4027, %v4024
    %v4043 = vpack.c.bf16 %v4035, %v4032
    %4044 = vmatprep.subr.bf16.mxu0 0
    %4045 = vmatpush1.bf16.xpose.msra.mxu0 %v4040
    %4046 = vmatprep.subr.bf16.mxu0 0
    %4047 = vmatpush1.bf16.xpose.msra.mxu0 0
    %4048 = vmatprep.subr.bf16.mxu0 0
    %4049 = vmatpush1.bf16.xpose.msra.mxu0 0
    %4050 = vmatprep.subr.bf16.mxu0 0
    %4051 = vmatpush1.bf16.xpose.msra.mxu0 0
    %4052 = vmatprep.subr.bf16.mxu0 0
    %4053 = vmatpush1.bf16.xpose.msra.mxu0 0
    %4054 = vmatprep.subr.bf16.mxu0 0
    %4055 = vmatpush1.bf16.xpose.msra.mxu0 0
    %4056 = vmatprep.subr.bf16.mxu0 0
    %4057 = vmatpush1.bf16.xpose.msra.mxu0 0
    %4058 = vmatprep.subr.bf16.mxu0 0
    %4059 = vmatpush1.bf16.xpose.msra.mxu0 0
    %4060 = vmatprep.subr.bf16.mxu0 0
    %4061 = vmatpush1.bf16.xpose.msra.mxu0 0
    %4062 = vmatprep.subr.bf16.mxu0 0
    %4063 = vmatpush1.bf16.xpose.msra.mxu0 0
    %4064 = vmatprep.subr.bf16.mxu0 0
    %4065 = vmatpush1.bf16.xpose.msra.mxu0 0
    %4066 = vmatprep.subr.bf16.mxu0 0
    %4067 = vmatpush1.bf16.xpose.msra.mxu0 0
    %4068 = vmatprep.subr.bf16.mxu0 0
    %4069 = vmatpush1.bf16.xpose.msra.mxu0 0
    %4070 = vmatprep.subr.bf16.mxu0 0
    %4071 = vmatpush1.bf16.xpose.msra.mxu0 0
    %4072 = vmatprep.subr.bf16.mxu0 0
    %4073 = vmatpush1.bf16.xpose.msra.mxu0 0
    %4074 = vmatprep.subr.bf16.mxu0 0
    %4075 = vmatpush1.bf16.xpose.msra.mxu0 0
    %4076 = vmatprep.mubr.bf16.mxu0 0
    %4077 = vmatmul.mubr.bf16.gmra.mrb[0].mxu0 %v4038
    %v4078 = vpop.f32.mrb[0].mxu0
    %v4079 = vadd.f32 0.0, %v4078
    %v4080 = vpop.f32.mrb[0].mxu0
    %v4081 = vpop.f32.mrb[0].mxu0
    %v4082 = vadd.f32 0.0, %v4081
    %v4083 = vpop.f32.mrb[0].mxu0
    %4084 = vdwg.mxu0
    %4085 = vmatprep.subr.bf16.mxu0 0
    %4086 = vmatpush1.bf16.xpose.msra.mxu0 %v4041
    %4087 = vmatprep.subr.bf16.mxu0 0
    %4088 = vmatpush1.bf16.xpose.msra.mxu0 0
    %4089 = vmatprep.subr.bf16.mxu0 0
    %4090 = vmatpush1.bf16.xpose.msra.mxu0 0
    %4091 = vmatprep.subr.bf16.mxu0 0
    %4092 = vmatpush1.bf16.xpose.msra.mxu0 0
    %4093 = vmatprep.subr.bf16.mxu0 0
    %4094 = vmatpush1.bf16.xpose.msra.mxu0 0
    %4095 = vmatprep.subr.bf16.mxu0 0
    %4096 = vmatpush1.bf16.xpose.msra.mxu0 0
    %4097 = vmatprep.subr.bf16.mxu0 0
    %4098 = vmatpush1.bf16.xpose.msra.mxu0 0
    %4099 = vmatprep.subr.bf16.mxu0 0
    %4100 = vmatpush1.bf16.xpose.msra.mxu0 0
    %4101 = vmatprep.subr.bf16.mxu0 0
    %4102 = vmatpush1.bf16.xpose.msra.mxu0 0
    %4103 = vmatprep.subr.bf16.mxu0 0
    %4104 = vmatpush1.bf16.xpose.msra.mxu0 0
    %4105 = vmatprep.subr.bf16.mxu0 0
    %4106 = vmatpush1.bf16.xpose.msra.mxu0 0
    %4107 = vmatprep.subr.bf16.mxu0 0
    %4108 = vmatpush1.bf16.xpose.msra.mxu0 0
    %4109 = vmatprep.subr.bf16.mxu0 0
    %4110 = vmatpush1.bf16.xpose.msra.mxu0 0
    %4111 = vmatprep.subr.bf16.mxu0 0
    %4112 = vmatpush1.bf16.xpose.msra.mxu0 0
    %4113 = vmatprep.subr.bf16.mxu0 0
    %4114 = vmatpush1.bf16.xpose.msra.mxu0 0
    %4115 = vmatprep.subr.bf16.mxu0 0
    %4116 = vmatpush1.bf16.xpose.msra.mxu0 0
    %4117 = vmatprep.mubr.bf16.mxu0 0
    %4118 = vmatmul.mubr.bf16.gmra.mrb[0].mxu0 %v4039
    %v4119 = vpop.f32.mrb[0].mxu0
    %v4120 = vadd.f32 0.0, %v4119
    %v4121 = vpop.f32.mrb[0].mxu0
    %v4122 = vpop.f32.mrb[0].mxu0
    %v4123 = vadd.f32 0.0, %v4122
    %v4124 = vpop.f32.mrb[0].mxu0
    %4125 = vdwg.mxu0
    %v4126 = vsel %vm579, %v4079, -inf
    %4127 = vmax.xlane.f32.xlu0 %v4126
    %v4128 = vpop.xlane.xlu0 %4127
    %v4129 = vsel %vm579, %v4082, -inf
    %4130 = vmax.xlane.f32.xlu0 %v4129
    %v4131 = vpop.xlane.xlu0 %4130
    %v4132 = vsel %vm579, %v4120, -inf
    %4133 = vmax.xlane.f32.xlu0 %v4132
    %v4134 = vpop.xlane.xlu0 %4133
    %v4135 = vsel %vm579, %v4123, -inf
    %4136 = vmax.xlane.f32.xlu0 %v4135
    %v4137 = vpop.xlane.xlu0 %4136
    %v4138 = vsub.f32 %v4079, %v4128
    %v4139 = vsub.f32 %v4082, %v4131
    %v4140 = vsub.f32 %v4120, %v4134
    %v4141 = vsub.f32 %v4123, %v4137
    %v4142 = vmul.f32 %v4138, 1.442695
    %v4143 = vpow.pop %v4142
    %v4144 = vmul.f32 %v4139, 1.442695
    %v4145 = vpow.pop %v4144
    %v4146 = vmul.f32 %v4140, 1.442695
    %v4147 = vpow.pop %v4146
    %v4148 = vmul.f32 %v4141, 1.442695
    %v4149 = vpow.pop %v4148
    %v4150 = vsel %vm579, %v4143, 0.0
    %4151 = vadd.xlane.f32.xlu0 %v4150
    %v4152 = vpop.xlane.xlu0 %4151
    %v4153 = vsel %vm579, %v4145, 0.0
    %4154 = vadd.xlane.f32.xlu0 %v4153
    %v4155 = vpop.xlane.xlu0 %4154
    %v4156 = vsel %vm579, %v4147, 0.0
    %4157 = vadd.xlane.f32.xlu0 %v4156
    %v4158 = vpop.xlane.xlu0 %4157
    %v4159 = vsel %vm579, %v4149, 0.0
    %4160 = vadd.xlane.f32.xlu0 %v4159
    %v4161 = vpop.xlane.xlu0 %4160
    %v4162 = vrcp.pop %v4152
    %v4163 = vrcp.pop %v4155
    %v4164 = vrcp.pop %v4158
    %v4165 = vrcp.pop %v4161
    %v4166 = vmul.f32 %v4143, %v4162
    %v4167 = vmul.f32 %v4145, %v4163
    %v4168 = vmul.f32 %v4147, %v4164
    %v4169 = vmul.f32 %v4149, %v4165
    %v4170 = vpack.c.bf16 %v4167, %v4166
    %v4171 = vpack.c.bf16 %v4169, %v4168
    %v4173 = vsel %vm579, %v4170, 0
    %4175 = vmatprep.subr.bf16.mxu0 0
    %4176 = vmatpush1.bf16.msra.mxu0 %v4042
    %4177 = vmatprep.subr.bf16.mxu0 0
    %4178 = vmatpush1.bf16.msra.mxu0 0
    %4179 = vmatprep.subr.bf16.mxu0 0
    %4180 = vmatpush1.bf16.msra.mxu0 0
    %4181 = vmatprep.subr.bf16.mxu0 0
    %4182 = vmatpush1.bf16.msra.mxu0 0
    %4183 = vmatprep.subr.bf16.mxu0 0
    %4184 = vmatpush1.bf16.msra.mxu0 0
    %4185 = vmatprep.subr.bf16.mxu0 0
    %4186 = vmatpush1.bf16.msra.mxu0 0
    %4187 = vmatprep.subr.bf16.mxu0 0
    %4188 = vmatpush1.bf16.msra.mxu0 0
    %4189 = vmatprep.subr.bf16.mxu0 0
    %4190 = vmatpush1.bf16.msra.mxu0 0
    %4191 = vmatprep.subr.bf16.mxu0 0
    %4192 = vmatpush1.bf16.msra.mxu0 0
    %4193 = vmatprep.subr.bf16.mxu0 0
    %4194 = vmatpush1.bf16.msra.mxu0 0
    %4195 = vmatprep.subr.bf16.mxu0 0
    %4196 = vmatpush1.bf16.msra.mxu0 0
    %4197 = vmatprep.subr.bf16.mxu0 0
    %4198 = vmatpush1.bf16.msra.mxu0 0
    %4199 = vmatprep.subr.bf16.mxu0 0
    %4200 = vmatpush1.bf16.msra.mxu0 0
    %4201 = vmatprep.subr.bf16.mxu0 0
    %4202 = vmatpush1.bf16.msra.mxu0 0
    %4203 = vmatprep.subr.bf16.mxu0 0
    %4204 = vmatpush1.bf16.msra.mxu0 0
    %4205 = vmatprep.subr.bf16.mxu0 0
    %4206 = vmatpush1.bf16.msra.mxu0 0
    %4207 = vmatprep.mubr.bf16.mxu0 0
    %4208 = vmatmul.mubr.bf16.gmra.mrb[0].mxu0 %v4173
    %v4209 = vpop.f32.mrb[0].mxu0
    %v4210 = vadd.f32 0.0, %v4209
    %v4211 = vpop.f32.mrb[0].mxu0
    %v4212 = vpop.f32.mrb[0].mxu0
    %v4213 = vadd.f32 0.0, %v4212
    %v4214 = vpop.f32.mrb[0].mxu0
    %4215 = vdwg.mxu0
    %v4217 = vsel %vm579, %v4171, 0
    %4219 = vmatprep.subr.bf16.mxu0 0
    %4220 = vmatpush1.bf16.msra.mxu0 %v4043
    %4221 = vmatprep.subr.bf16.mxu0 0
    %4222 = vmatpush1.bf16.msra.mxu0 0
    %4223 = vmatprep.subr.bf16.mxu0 0
    %4224 = vmatpush1.bf16.msra.mxu0 0
    %4225 = vmatprep.subr.bf16.mxu0 0
    %4226 = vmatpush1.bf16.msra.mxu0 0
    %4227 = vmatprep.subr.bf16.mxu0 0
    %4228 = vmatpush1.bf16.msra.mxu0 0
    %4229 = vmatprep.subr.bf16.mxu0 0
    %4230 = vmatpush1.bf16.msra.mxu0 0
    %4231 = vmatprep.subr.bf16.mxu0 0
    %4232 = vmatpush1.bf16.msra.mxu0 0
    %4233 = vmatprep.subr.bf16.mxu0 0
    %4234 = vmatpush1.bf16.msra.mxu0 0
    %4235 = vmatprep.subr.bf16.mxu0 0
    %4236 = vmatpush1.bf16.msra.mxu0 0
    %4237 = vmatprep.subr.bf16.mxu0 0
    %4238 = vmatpush1.bf16.msra.mxu0 0
    %4239 = vmatprep.subr.bf16.mxu0 0
    %4240 = vmatpush1.bf16.msra.mxu0 0
    %4241 = vmatprep.subr.bf16.mxu0 0
    %4242 = vmatpush1.bf16.msra.mxu0 0
    %4243 = vmatprep.subr.bf16.mxu0 0
    %4244 = vmatpush1.bf16.msra.mxu0 0
    %4245 = vmatprep.subr.bf16.mxu0 0
    %4246 = vmatpush1.bf16.msra.mxu0 0
    %4247 = vmatprep.subr.bf16.mxu0 0
    %4248 = vmatpush1.bf16.msra.mxu0 0
    %4249 = vmatprep.subr.bf16.mxu0 0
    %4250 = vmatpush1.bf16.msra.mxu0 0
    %4251 = vmatprep.mubr.bf16.mxu0 0
    %4252 = vmatmul.mubr.bf16.gmra.mrb[0].mxu0 %v4217
    %v4253 = vpop.f32.mrb[0].mxu0
    %v4254 = vadd.f32 0.0, %v4253
    %v4255 = vpop.f32.mrb[0].mxu0
    %v4256 = vpop.f32.mrb[0].mxu0
    %v4257 = vadd.f32 0.0, %v4256
    %v4258 = vpop.f32.mrb[0].mxu0
    %4259 = vdwg.mxu0
    %v4260 = vpack.c.bf16 %v4213, %v4210
    %v4261 = vpack.c.bf16 %v4257, %v4254
    %s4262 = scalar_lea.vmem %s7, 192
    %v4263 = vld [vmem:[%s4262] sm:$0xf]
    %v4264 = vld [vmem:[%s4262 + $0x4] sm:$0xf]
    %v4265 = vld [vmem:[%s4262 + $0x8] sm:$0xf]
    %v4266 = vld [vmem:[%s4262 + $0xc] sm:$0xf]
    %v4267 = vld [vmem:[%s4262 + $0x10] sm:$0xf]
    %v4268 = vld [vmem:[%s4262 + $0x14] sm:$0xf]
    %v4269 = vld [vmem:[%s4262 + $0x18] sm:$0xf]
    %v4270 = vld [vmem:[%s4262 + $0x1c] sm:$0xf]
    %v4271 = vld [vmem:[%s4262 + $0x20] sm:$0xf]
    %v4272 = vld [vmem:[%s4262 + $0x24] sm:$0xf]
    %v4273 = vld [vmem:[%s4262 + $0x28] sm:$0xf]
    %v4274 = vld [vmem:[%s4262 + $0x2c] sm:$0xf]
    %v4275 = vld [vmem:[%s4262 + $0x30] sm:$0xf]
    %v4276 = vld [vmem:[%s4262 + $0x34] sm:$0xf]
    %v4277 = vld [vmem:[%s4262 + $0x38] sm:$0xf]
    %v4278 = vld [vmem:[%s4262 + $0x3c] sm:$0xf]
    %s4279 = scalar_lea.vmem %s8, 3
    %v4280 = vld [vmem:[%s4279] sm:$0x1]
    %v4282 = vlaneseq
    %v4283 = vshrl.u32 %v4282, 7
    %v4284 = vsub.s32 0, %v4283
    %v4285 = vrot.slane %v4280, %v4284
    %v4303 = vunpack.c.l.b16 %v4263
    %v4304 = vunpack.c.l.b16 %v4264
    %v4305 = vunpack.c.l.b16 %v4265
    %v4306 = vunpack.c.l.b16 %v4266
    %v4307 = vunpack.c.l.b16 %v4267
    %v4308 = vunpack.c.l.b16 %v4268
    %v4309 = vunpack.c.l.b16 %v4269
    %v4310 = vunpack.c.l.b16 %v4270
    %v4311 = vunpack.c.l.b16 %v4271
    %v4312 = vunpack.c.l.b16 %v4272
    %v4313 = vunpack.c.l.b16 %v4273
    %v4314 = vunpack.c.l.b16 %v4274
    %v4315 = vunpack.c.l.b16 %v4275
    %v4316 = vunpack.c.l.b16 %v4276
    %v4317 = vunpack.c.l.b16 %v4277
    %v4318 = vunpack.c.l.b16 %v4278
    %v4319 = vpack.c.b16 %v4304, %v4303
    %v4320 = vpack.c.b16 %v4306, %v4305
    %v4321 = vpack.c.b16 %v4308, %v4307
    %v4322 = vpack.c.b16 %v4310, %v4309
    %v4323 = vpack.c.b16 %v4312, %v4311
    %v4324 = vpack.c.b16 %v4314, %v4313
    %v4325 = vpack.c.b16 %v4316, %v4315
    %v4326 = vpack.c.b16 %v4318, %v4317
    %4335 = vmatprep.subr.bf16.mxu0 0
    %4336 = vmatpush1.bf16.msra.mxu0 %v4319
    %4337 = vmatprep.subr.bf16.mxu0 0
    %4338 = vmatpush1.bf16.msra.mxu0 %v4320
    %4339 = vmatprep.subr.bf16.mxu0 0
    %4340 = vmatpush1.bf16.msra.mxu0 %v4321
    %4341 = vmatprep.subr.bf16.mxu0 0
    %4342 = vmatpush1.bf16.msra.mxu0 %v4322
    %4343 = vmatprep.subr.bf16.mxu0 0
    %4344 = vmatpush1.bf16.msra.mxu0 %v4323
    %4345 = vmatprep.subr.bf16.mxu0 0
    %4346 = vmatpush1.bf16.msra.mxu0 %v4324
    %4347 = vmatprep.subr.bf16.mxu0 0
    %4348 = vmatpush1.bf16.msra.mxu0 %v4325
    %4349 = vmatprep.subr.bf16.mxu0 0
    %4350 = vmatpush1.bf16.msra.mxu0 %v4326
    %4351 = vmatprep.subr.bf16.mxu0 0
    %4352 = vmatpush1.bf16.msra.mxu0 0
    %4353 = vmatprep.subr.bf16.mxu0 0
    %4354 = vmatpush1.bf16.msra.mxu0 0
    %4355 = vmatprep.subr.bf16.mxu0 0
    %4356 = vmatpush1.bf16.msra.mxu0 0
    %4357 = vmatprep.subr.bf16.mxu0 0
    %4358 = vmatpush1.bf16.msra.mxu0 0
    %4359 = vmatprep.subr.bf16.mxu0 0
    %4360 = vmatpush1.bf16.msra.mxu0 0
    %4361 = vmatprep.subr.bf16.mxu0 0
    %4362 = vmatpush1.bf16.msra.mxu0 0
    %4363 = vmatprep.subr.bf16.mxu0 0
    %4364 = vmatpush1.bf16.msra.mxu0 0
    %4365 = vmatprep.subr.bf16.mxu0 0
    %4366 = vmatpush1.bf16.msra.mxu0 0
    %4367 = vmatprep.mubr.bf16.mxu0 0
    %4368 = vmatmul.mubr.bf16.gmra.mrb[0].mxu0 %v4260
    %v4369 = vpop.f32.mrb[0].mxu0
    %v4370 = vadd.f32 %v4285, %v4369
    %v4371 = vpop.f32.mrb[0].mxu0
    %v4372 = vpop.f32.mrb[0].mxu0
    %v4373 = vadd.f32 %v4285, %v4372
    %v4374 = vpop.f32.mrb[0].mxu0
    %4375 = vmatprep.mubr.bf16.mxu0 0
    %4376 = vmatmul.mubr.bf16.gmra.mrb[0].mxu0 %v4261
    %v4377 = vpop.f32.mrb[0].mxu0
    %v4378 = vadd.f32 %v4285, %v4377
    %v4379 = vpop.f32.mrb[0].mxu0
    %v4380 = vpop.f32.mrb[0].mxu0
    %v4381 = vadd.f32 %v4285, %v4380
    %v4382 = vpop.f32.mrb[0].mxu0
    %4383 = vdwg.mxu0
    %v4384 = vadd.f32 %v3683, %v4370
    %v4385 = vadd.f32 %v3684, %v4373
    %v4386 = vadd.f32 %v3685, %v4378
    %v4387 = vadd.f32 %v3686, %v4381
    %4388 = vadd.xlane.f32.xlu0 %v4384
    %v4389 = vpop.xlane.xlu0 %4388
    %4390 = vadd.xlane.f32.xlu0 %v4385
    %v4391 = vpop.xlane.xlu0 %4390
    %4392 = vadd.xlane.f32.xlu0 %v4386
    %v4393 = vpop.xlane.xlu0 %4392
    %4394 = vadd.xlane.f32.xlu0 %v4387
    %v4395 = vpop.xlane.xlu0 %4394
    %v4396 = vmul.f32 %v4389, %v153
    %v4397 = vmul.f32 %v4391, %v153
    %v4398 = vmul.f32 %v4393, %v153
    %v4399 = vmul.f32 %v4395, %v153
    %v4400 = vsub.f32 %v4384, %v4396
    %v4401 = vsub.f32 %v4385, %v4397
    %v4402 = vsub.f32 %v4386, %v4398
    %v4403 = vsub.f32 %v4387, %v4399
    %v4404 = vmul.f32 %v4400, %v4400
    %v4405 = vmul.f32 %v4401, %v4401
    %v4406 = vmul.f32 %v4402, %v4402
    %v4407 = vmul.f32 %v4403, %v4403
    %4408 = vadd.xlane.f32.xlu0 %v4404
    %v4409 = vpop.xlane.xlu0 %4408
    %4410 = vadd.xlane.f32.xlu0 %v4405
    %v4411 = vpop.xlane.xlu0 %4410
    %4412 = vadd.xlane.f32.xlu0 %v4406
    %v4413 = vpop.xlane.xlu0 %4412
    %4414 = vadd.xlane.f32.xlu0 %v4407
    %v4415 = vpop.xlane.xlu0 %4414
    %v4416 = vmul.f32 %v4409, %v153
    %v4417 = vmul.f32 %v4411, %v153
    %v4418 = vmul.f32 %v4413, %v153
    %v4419 = vmul.f32 %v4415, %v153
    %v4420 = vadd.f32 %v4416, 1e-05
    %v4421 = vadd.f32 %v4417, 1e-05
    %v4422 = vadd.f32 %v4418, 1e-05
    %v4423 = vadd.f32 %v4419, 1e-05
    %v4424 = vrsqrt.pop %v4420
    %v4425 = vrsqrt.pop %v4421
    %v4426 = vrsqrt.pop %v4422
    %v4427 = vrsqrt.pop %v4423
    %v4428 = vmul.f32 %v4400, %v4424
    %v4429 = vmul.f32 %v4401, %v4425
    %v4430 = vmul.f32 %v4402, %v4426
    %v4431 = vmul.f32 %v4403, %v4427
    %v4432 = vmul.f32 %v4428, %v3739
    %v4433 = vmul.f32 %v4429, %v3739
    %v4434 = vmul.f32 %v4430, %v3739
    %v4435 = vmul.f32 %v4431, %v3739
    %v4436 = vadd.f32 %v4432, %v3749
    %v4437 = vadd.f32 %v4433, %v3749
    %v4438 = vadd.f32 %v4434, %v3749
    %v4439 = vadd.f32 %v4435, %v3749
    %v4440 = vpack.c.bf16 %v4437, %v4436
    %v4441 = vpack.c.bf16 %v4439, %v4438
    %s4442 = scalar_lea.vmem %s9, 384
    %v4443 = vld [vmem:[%s4442] sm:$0xff]
    %v4444 = vld [vmem:[%s4442 + $0x8] sm:$0xff]
    %v4445 = vld [vmem:[%s4442 + $0x10] sm:$0xff]
    %v4446 = vld [vmem:[%s4442 + $0x18] sm:$0xff]
    %v4447 = vld [vmem:[%s4442 + $0x20] sm:$0xff]
    %v4448 = vld [vmem:[%s4442 + $0x28] sm:$0xff]
    %v4449 = vld [vmem:[%s4442 + $0x30] sm:$0xff]
    %v4450 = vld [vmem:[%s4442 + $0x38] sm:$0xff]
    %v4451 = vld [vmem:[%s4442 + $0x40] sm:$0xff]
    %v4452 = vld [vmem:[%s4442 + $0x48] sm:$0xff]
    %v4453 = vld [vmem:[%s4442 + $0x50] sm:$0xff]
    %v4454 = vld [vmem:[%s4442 + $0x58] sm:$0xff]
    %v4455 = vld [vmem:[%s4442 + $0x60] sm:$0xff]
    %v4456 = vld [vmem:[%s4442 + $0x68] sm:$0xff]
    %v4457 = vld [vmem:[%s4442 + $0x70] sm:$0xff]
    %v4458 = vld [vmem:[%s4442 + $0x78] sm:$0xff]
    %s4459 = scalar_lea.vmem %s10, 6
    %v4460 = vld [vmem:[%s4459] sm:$0x3]
    %v4462 = vlaneseq
    %v4463 = vshrl.u32 %v4462, 7
    %v4464 = vsub.s32 0, %v4463
    %v4465 = vrot.slane %v4460, %v4464
    %v4466 = vlaneseq
    %v4467 = vshrl.u32 %v4466, 7
    %v4468 = vsub.s32 1, %v4467
    %v4469 = vrot.slane %v4460, %v4468
    %v4488 = vunpack.c.l.b16 %v4443
    %v4489 = vunpack.c.h.b16 %v4443
    %v4490 = vunpack.c.l.b16 %v4444
    %v4491 = vunpack.c.h.b16 %v4444
    %v4492 = vunpack.c.l.b16 %v4445
    %v4493 = vunpack.c.h.b16 %v4445
    %v4494 = vunpack.c.l.b16 %v4446
    %v4495 = vunpack.c.h.b16 %v4446
    %v4496 = vunpack.c.l.b16 %v4447
    %v4497 = vunpack.c.h.b16 %v4447
    %v4498 = vunpack.c.l.b16 %v4448
    %v4499 = vunpack.c.h.b16 %v4448
    %v4500 = vunpack.c.l.b16 %v4449
    %v4501 = vunpack.c.h.b16 %v4449
    %v4502 = vunpack.c.l.b16 %v4450
    %v4503 = vunpack.c.h.b16 %v4450
    %v4504 = vunpack.c.l.b16 %v4451
    %v4505 = vunpack.c.h.b16 %v4451
    %v4506 = vunpack.c.l.b16 %v4452
    %v4507 = vunpack.c.h.b16 %v4452
    %v4508 = vunpack.c.l.b16 %v4453
    %v4509 = vunpack.c.h.b16 %v4453
    %v4510 = vunpack.c.l.b16 %v4454
    %v4511 = vunpack.c.h.b16 %v4454
    %v4512 = vunpack.c.l.b16 %v4455
    %v4513 = vunpack.c.h.b16 %v4455
    %v4514 = vunpack.c.l.b16 %v4456
    %v4515 = vunpack.c.h.b16 %v4456
    %v4516 = vunpack.c.l.b16 %v4457
    %v4517 = vunpack.c.h.b16 %v4457
    %v4518 = vunpack.c.l.b16 %v4458
    %v4519 = vunpack.c.h.b16 %v4458
    %v4520 = vpack.c.b16 %v4490, %v4488
    %v4521 = vpack.c.b16 %v4491, %v4489
    %v4522 = vpack.c.b16 %v4494, %v4492
    %v4523 = vpack.c.b16 %v4495, %v4493
    %v4524 = vpack.c.b16 %v4498, %v4496
    %v4525 = vpack.c.b16 %v4499, %v4497
    %v4526 = vpack.c.b16 %v4502, %v4500
    %v4527 = vpack.c.b16 %v4503, %v4501
    %v4528 = vpack.c.b16 %v4506, %v4504
    %v4529 = vpack.c.b16 %v4507, %v4505
    %v4530 = vpack.c.b16 %v4510, %v4508
    %v4531 = vpack.c.b16 %v4511, %v4509
    %v4532 = vpack.c.b16 %v4514, %v4512
    %v4533 = vpack.c.b16 %v4515, %v4513
    %v4534 = vpack.c.b16 %v4518, %v4516
    %v4535 = vpack.c.b16 %v4519, %v4517
    %4552 = vmatprep.subr.bf16.mxu0 %v4521
    %4553 = vmatpush1.bf16.msra.mxu0 %v4520
    %4554 = vmatprep.subr.bf16.mxu0 %v4523
    %4555 = vmatpush1.bf16.msra.mxu0 %v4522
    %4556 = vmatprep.subr.bf16.mxu0 %v4525
    %4557 = vmatpush1.bf16.msra.mxu0 %v4524
    %4558 = vmatprep.subr.bf16.mxu0 %v4527
    %4559 = vmatpush1.bf16.msra.mxu0 %v4526
    %4560 = vmatprep.subr.bf16.mxu0 %v4529
    %4561 = vmatpush1.bf16.msra.mxu0 %v4528
    %4562 = vmatprep.subr.bf16.mxu0 %v4531
    %4563 = vmatpush1.bf16.msra.mxu0 %v4530
    %4564 = vmatprep.subr.bf16.mxu0 %v4533
    %4565 = vmatpush1.bf16.msra.mxu0 %v4532
    %4566 = vmatprep.subr.bf16.mxu0 %v4535
    %4567 = vmatpush1.bf16.msra.mxu0 %v4534
    %4568 = vmatprep.subr.bf16.mxu0 0
    %4569 = vmatpush1.bf16.msra.mxu0 0
    %4570 = vmatprep.subr.bf16.mxu0 0
    %4571 = vmatpush1.bf16.msra.mxu0 0
    %4572 = vmatprep.subr.bf16.mxu0 0
    %4573 = vmatpush1.bf16.msra.mxu0 0
    %4574 = vmatprep.subr.bf16.mxu0 0
    %4575 = vmatpush1.bf16.msra.mxu0 0
    %4576 = vmatprep.subr.bf16.mxu0 0
    %4577 = vmatpush1.bf16.msra.mxu0 0
    %4578 = vmatprep.subr.bf16.mxu0 0
    %4579 = vmatpush1.bf16.msra.mxu0 0
    %4580 = vmatprep.subr.bf16.mxu0 0
    %4581 = vmatpush1.bf16.msra.mxu0 0
    %4582 = vmatprep.subr.bf16.mxu0 0
    %4583 = vmatpush1.bf16.msra.mxu0 0
    %4584 = vmatprep.mubr.bf16.mxu0 0
    %4585 = vmatmul.mubr.bf16.gmra.mrb[0].mxu0 %v4440
    %v4586 = vpop.f32.mrb[0].mxu0
    %v4587 = vadd.f32 %v4465, %v4586
    %v4588 = vpop.f32.mrb[0].mxu0
    %v4589 = vadd.f32 %v4469, %v4588
    %v4590 = vpop.f32.mrb[0].mxu0
    %v4591 = vadd.f32 %v4465, %v4590
    %v4592 = vpop.f32.mrb[0].mxu0
    %v4593 = vadd.f32 %v4469, %v4592
    %4594 = vmatprep.mubr.bf16.mxu0 0
    %4595 = vmatmul.mubr.bf16.gmra.mrb[0].mxu0 %v4441
    %v4596 = vpop.f32.mrb[0].mxu0
    %v4597 = vadd.f32 %v4465, %v4596
    %v4598 = vpop.f32.mrb[0].mxu0
    %v4599 = vadd.f32 %v4469, %v4598
    %v4600 = vpop.f32.mrb[0].mxu0
    %v4601 = vadd.f32 %v4465, %v4600
    %v4602 = vpop.f32.mrb[0].mxu0
    %v4603 = vadd.f32 %v4469, %v4602
    %4604 = vdwg.mxu0
    %v4605 = vmul.f32 %v4587, 0.5
    %v4606 = vmul.f32 %v4589, 0.5
    %v4607 = vmul.f32 %v4591, 0.5
    %v4608 = vmul.f32 %v4593, 0.5
    %v4609 = vmul.f32 %v4597, 0.5
    %v4610 = vmul.f32 %v4599, 0.5
    %v4611 = vmul.f32 %v4601, 0.5
    %v4612 = vmul.f32 %v4603, 0.5
    %v4613 = vmul.f32 %v4587, 0.044715
    %v4614 = vmul.f32 %v4589, 0.044715
    %v4615 = vmul.f32 %v4591, 0.044715
    %v4616 = vmul.f32 %v4593, 0.044715
    %v4617 = vmul.f32 %v4597, 0.044715
    %v4618 = vmul.f32 %v4599, 0.044715
    %v4619 = vmul.f32 %v4601, 0.044715
    %v4620 = vmul.f32 %v4603, 0.044715
    %v4621 = vmul.f32 %v4613, %v4587
    %v4622 = vmul.f32 %v4614, %v4589
    %v4623 = vmul.f32 %v4615, %v4591
    %v4624 = vmul.f32 %v4616, %v4593
    %v4625 = vmul.f32 %v4617, %v4597
    %v4626 = vmul.f32 %v4618, %v4599
    %v4627 = vmul.f32 %v4619, %v4601
    %v4628 = vmul.f32 %v4620, %v4603
    %v4629 = vmul.f32 %v4621, %v4587
    %v4630 = vmul.f32 %v4622, %v4589
    %v4631 = vmul.f32 %v4623, %v4591
    %v4632 = vmul.f32 %v4624, %v4593
    %v4633 = vmul.f32 %v4625, %v4597
    %v4634 = vmul.f32 %v4626, %v4599
    %v4635 = vmul.f32 %v4627, %v4601
    %v4636 = vmul.f32 %v4628, %v4603
    %v4637 = vadd.f32 %v4587, %v4629
    %v4638 = vadd.f32 %v4589, %v4630
    %v4639 = vadd.f32 %v4591, %v4631
    %v4640 = vadd.f32 %v4593, %v4632
    %v4641 = vadd.f32 %v4597, %v4633
    %v4642 = vadd.f32 %v4599, %v4634
    %v4643 = vadd.f32 %v4601, %v4635
    %v4644 = vadd.f32 %v4603, %v4636
    %v4645 = vmul.f32 %v4637, 0.7978846
    %v4646 = vmul.f32 %v4638, 0.7978846
    %v4647 = vmul.f32 %v4639, 0.7978846
    %v4648 = vmul.f32 %v4640, 0.7978846
    %v4649 = vmul.f32 %v4641, 0.7978846
    %v4650 = vmul.f32 %v4642, 0.7978846
    %v4651 = vmul.f32 %v4643, 0.7978846
    %v4652 = vmul.f32 %v4644, 0.7978846
    %v4653 = vtanh.pop %v4645
    %v4654 = vtanh.pop %v4646
    %v4655 = vtanh.pop %v4647
    %v4656 = vtanh.pop %v4648
    %v4657 = vtanh.pop %v4649
    %v4658 = vtanh.pop %v4650
    %v4659 = vtanh.pop %v4651
    %v4660 = vtanh.pop %v4652
    %v4661 = vadd.f32 %v4653, 1.0
    %v4662 = vadd.f32 %v4654, 1.0
    %v4663 = vadd.f32 %v4655, 1.0
    %v4664 = vadd.f32 %v4656, 1.0
    %v4665 = vadd.f32 %v4657, 1.0
    %v4666 = vadd.f32 %v4658, 1.0
    %v4667 = vadd.f32 %v4659, 1.0
    %v4668 = vadd.f32 %v4660, 1.0
    %v4669 = vmul.f32 %v4605, %v4661
    %v4670 = vmul.f32 %v4606, %v4662
    %v4671 = vmul.f32 %v4607, %v4663
    %v4672 = vmul.f32 %v4608, %v4664
    %v4673 = vmul.f32 %v4609, %v4665
    %v4674 = vmul.f32 %v4610, %v4666
    %v4675 = vmul.f32 %v4611, %v4667
    %v4676 = vmul.f32 %v4612, %v4668
    %v4677 = vpack.c.bf16 %v4671, %v4669
    %v4678 = vpack.c.bf16 %v4672, %v4670
    %v4679 = vpack.c.bf16 %v4675, %v4673
    %v4680 = vpack.c.bf16 %v4676, %v4674
    %s4681 = scalar_lea.vmem %s11, 384
    %v4682 = vld [vmem:[%s4681] sm:$0xf]
    %v4683 = vld [vmem:[%s4681 + $0x4] sm:$0xf]
    %v4684 = vld [vmem:[%s4681 + $0x8] sm:$0xf]
    %v4685 = vld [vmem:[%s4681 + $0xc] sm:$0xf]
    %v4686 = vld [vmem:[%s4681 + $0x10] sm:$0xf]
    %v4687 = vld [vmem:[%s4681 + $0x14] sm:$0xf]
    %v4688 = vld [vmem:[%s4681 + $0x18] sm:$0xf]
    %v4689 = vld [vmem:[%s4681 + $0x1c] sm:$0xf]
    %v4690 = vld [vmem:[%s4681 + $0x20] sm:$0xf]
    %v4691 = vld [vmem:[%s4681 + $0x24] sm:$0xf]
    %v4692 = vld [vmem:[%s4681 + $0x28] sm:$0xf]
    %v4693 = vld [vmem:[%s4681 + $0x2c] sm:$0xf]
    %v4694 = vld [vmem:[%s4681 + $0x30] sm:$0xf]
    %v4695 = vld [vmem:[%s4681 + $0x34] sm:$0xf]
    %v4696 = vld [vmem:[%s4681 + $0x38] sm:$0xf]
    %v4697 = vld [vmem:[%s4681 + $0x3c] sm:$0xf]
    %v4698 = vld [vmem:[%s4681 + $0x40] sm:$0xf]
    %v4699 = vld [vmem:[%s4681 + $0x44] sm:$0xf]
    %v4700 = vld [vmem:[%s4681 + $0x48] sm:$0xf]
    %v4701 = vld [vmem:[%s4681 + $0x4c] sm:$0xf]
    %v4702 = vld [vmem:[%s4681 + $0x50] sm:$0xf]
    %v4703 = vld [vmem:[%s4681 + $0x54] sm:$0xf]
    %v4704 = vld [vmem:[%s4681 + $0x58] sm:$0xf]
    %v4705 = vld [vmem:[%s4681 + $0x5c] sm:$0xf]
    %v4706 = vld [vmem:[%s4681 + $0x60] sm:$0xf]
    %v4707 = vld [vmem:[%s4681 + $0x64] sm:$0xf]
    %v4708 = vld [vmem:[%s4681 + $0x68] sm:$0xf]
    %v4709 = vld [vmem:[%s4681 + $0x6c] sm:$0xf]
    %v4710 = vld [vmem:[%s4681 + $0x70] sm:$0xf]
    %v4711 = vld [vmem:[%s4681 + $0x74] sm:$0xf]
    %v4712 = vld [vmem:[%s4681 + $0x78] sm:$0xf]
    %v4713 = vld [vmem:[%s4681 + $0x7c] sm:$0xf]
    %s4714 = scalar_lea.vmem %s12, 3
    %v4715 = vld [vmem:[%s4714] sm:$0x1]
    %v4717 = vlaneseq
    %v4718 = vshrl.u32 %v4717, 7
    %v4719 = vsub.s32 0, %v4718
    %v4720 = vrot.slane %v4715, %v4719
    %v4754 = vunpack.c.l.b16 %v4682
    %v4755 = vunpack.c.l.b16 %v4683
    %v4756 = vunpack.c.l.b16 %v4684
    %v4757 = vunpack.c.l.b16 %v4685
    %v4758 = vunpack.c.l.b16 %v4686
    %v4759 = vunpack.c.l.b16 %v4687
    %v4760 = vunpack.c.l.b16 %v4688
    %v4761 = vunpack.c.l.b16 %v4689
    %v4762 = vunpack.c.l.b16 %v4690
    %v4763 = vunpack.c.l.b16 %v4691
    %v4764 = vunpack.c.l.b16 %v4692
    %v4765 = vunpack.c.l.b16 %v4693
    %v4766 = vunpack.c.l.b16 %v4694
    %v4767 = vunpack.c.l.b16 %v4695
    %v4768 = vunpack.c.l.b16 %v4696
    %v4769 = vunpack.c.l.b16 %v4697
    %v4770 = vunpack.c.l.b16 %v4698
    %v4771 = vunpack.c.l.b16 %v4699
    %v4772 = vunpack.c.l.b16 %v4700
    %v4773 = vunpack.c.l.b16 %v4701
    %v4774 = vunpack.c.l.b16 %v4702
    %v4775 = vunpack.c.l.b16 %v4703
    %v4776 = vunpack.c.l.b16 %v4704
    %v4777 = vunpack.c.l.b16 %v4705
    %v4778 = vunpack.c.l.b16 %v4706
    %v4779 = vunpack.c.l.b16 %v4707
    %v4780 = vunpack.c.l.b16 %v4708
    %v4781 = vunpack.c.l.b16 %v4709
    %v4782 = vunpack.c.l.b16 %v4710
    %v4783 = vunpack.c.l.b16 %v4711
    %v4784 = vunpack.c.l.b16 %v4712
    %v4785 = vunpack.c.l.b16 %v4713
    %v4786 = vpack.c.b16 %v4755, %v4754
    %v4787 = vpack.c.b16 %v4757, %v4756
    %v4788 = vpack.c.b16 %v4759, %v4758
    %v4789 = vpack.c.b16 %v4761, %v4760
    %v4790 = vpack.c.b16 %v4763, %v4762
    %v4791 = vpack.c.b16 %v4765, %v4764
    %v4792 = vpack.c.b16 %v4767, %v4766
    %v4793 = vpack.c.b16 %v4769, %v4768
    %v4794 = vpack.c.b16 %v4771, %v4770
    %v4795 = vpack.c.b16 %v4773, %v4772
    %v4796 = vpack.c.b16 %v4775, %v4774
    %v4797 = vpack.c.b16 %v4777, %v4776
    %v4798 = vpack.c.b16 %v4779, %v4778
    %v4799 = vpack.c.b16 %v4781, %v4780
    %v4800 = vpack.c.b16 %v4783, %v4782
    %v4801 = vpack.c.b16 %v4785, %v4784
    %4818 = vmatprep.subr.bf16.mxu0 0
    %4819 = vmatpush1.bf16.msra.mxu0 %v4786
    %4820 = vmatprep.subr.bf16.mxu0 0
    %4821 = vmatpush1.bf16.msra.mxu0 %v4787
    %4822 = vmatprep.subr.bf16.mxu0 0
    %4823 = vmatpush1.bf16.msra.mxu0 %v4788
    %4824 = vmatprep.subr.bf16.mxu0 0
    %4825 = vmatpush1.bf16.msra.mxu0 %v4789
    %4826 = vmatprep.subr.bf16.mxu0 0
    %4827 = vmatpush1.bf16.msra.mxu0 %v4790
    %4828 = vmatprep.subr.bf16.mxu0 0
    %4829 = vmatpush1.bf16.msra.mxu0 %v4791
    %4830 = vmatprep.subr.bf16.mxu0 0
    %4831 = vmatpush1.bf16.msra.mxu0 %v4792
    %4832 = vmatprep.subr.bf16.mxu0 0
    %4833 = vmatpush1.bf16.msra.mxu0 %v4793
    %4834 = vmatprep.subr.bf16.mxu0 0
    %4835 = vmatpush1.bf16.msra.mxu0 %v4794
    %4836 = vmatprep.subr.bf16.mxu0 0
    %4837 = vmatpush1.bf16.msra.mxu0 %v4795
    %4838 = vmatprep.subr.bf16.mxu0 0
    %4839 = vmatpush1.bf16.msra.mxu0 %v4796
    %4840 = vmatprep.subr.bf16.mxu0 0
    %4841 = vmatpush1.bf16.msra.mxu0 %v4797
    %4842 = vmatprep.subr.bf16.mxu0 0
    %4843 = vmatpush1.bf16.msra.mxu0 %v4798
    %4844 = vmatprep.subr.bf16.mxu0 0
    %4845 = vmatpush1.bf16.msra.mxu0 %v4799
    %4846 = vmatprep.subr.bf16.mxu0 0
    %4847 = vmatpush1.bf16.msra.mxu0 %v4800
    %4848 = vmatprep.subr.bf16.mxu0 0
    %4849 = vmatpush1.bf16.msra.mxu0 %v4801
    %4850 = vmatprep.mubr.bf16.mxu0 %v4678
    %4851 = vmatmul.mubr.bf16.gmra.mrb[0].mxu0 %v4677
    %v4852 = vpop.f32.mrb[0].mxu0
    %v4853 = vadd.f32 %v4720, %v4852
    %v4854 = vpop.f32.mrb[0].mxu0
    %v4855 = vpop.f32.mrb[0].mxu0
    %v4856 = vadd.f32 %v4720, %v4855
    %v4857 = vpop.f32.mrb[0].mxu0
    %4858 = vmatprep.mubr.bf16.mxu0 %v4680
    %4859 = vmatmul.mubr.bf16.gmra.mrb[0].mxu0 %v4679
    %v4860 = vpop.f32.mrb[0].mxu0
    %v4861 = vadd.f32 %v4720, %v4860
    %v4862 = vpop.f32.mrb[0].mxu0
    %v4863 = vpop.f32.mrb[0].mxu0
    %v4864 = vadd.f32 %v4720, %v4863
    %v4865 = vpop.f32.mrb[0].mxu0
    %4866 = vdwg.mxu0
    %v4867 = vadd.f32 %v4384, %v4853
    %v4868 = vadd.f32 %v4385, %v4856
    %v4869 = vadd.f32 %v4386, %v4861
    %v4870 = vadd.f32 %v4387, %v4864
    %v4871 = vld [vmem:[%s13] sm:$0x1]
    %v4872 = vld [vmem:[%s14] sm:$0x1]
    %4873 = vadd.xlane.f32.xlu0 %v4867
    %v4874 = vpop.xlane.xlu0 %4873
    %4875 = vadd.xlane.f32.xlu0 %v4868
    %v4876 = vpop.xlane.xlu0 %4875
    %4877 = vadd.xlane.f32.xlu0 %v4869
    %v4878 = vpop.xlane.xlu0 %4877
    %4879 = vadd.xlane.f32.xlu0 %v4870
    %v4880 = vpop.xlane.xlu0 %4879
    %v4881 = vmul.f32 %v4874, %v153
    %v4882 = vmul.f32 %v4876, %v153
    %v4883 = vmul.f32 %v4878, %v153
    %v4884 = vmul.f32 %v4880, %v153
    %v4885 = vsub.f32 %v4867, %v4881
    %v4886 = vsub.f32 %v4868, %v4882
    %v4887 = vsub.f32 %v4869, %v4883
    %v4888 = vsub.f32 %v4870, %v4884
    %v4889 = vmul.f32 %v4885, %v4885
    %v4890 = vmul.f32 %v4886, %v4886
    %v4891 = vmul.f32 %v4887, %v4887
    %v4892 = vmul.f32 %v4888, %v4888
    %4893 = vadd.xlane.f32.xlu0 %v4889
    %v4894 = vpop.xlane.xlu0 %4893
    %4895 = vadd.xlane.f32.xlu0 %v4890
    %v4896 = vpop.xlane.xlu0 %4895
    %4897 = vadd.xlane.f32.xlu0 %v4891
    %v4898 = vpop.xlane.xlu0 %4897
    %4899 = vadd.xlane.f32.xlu0 %v4892
    %v4900 = vpop.xlane.xlu0 %4899
    %v4901 = vmul.f32 %v4894, %v153
    %v4902 = vmul.f32 %v4896, %v153
    %v4903 = vmul.f32 %v4898, %v153
    %v4904 = vmul.f32 %v4900, %v153
    %v4905 = vadd.f32 %v4901, 1e-05
    %v4906 = vadd.f32 %v4902, 1e-05
    %v4907 = vadd.f32 %v4903, 1e-05
    %v4908 = vadd.f32 %v4904, 1e-05
    %v4909 = vrsqrt.pop %v4905
    %v4910 = vrsqrt.pop %v4906
    %v4911 = vrsqrt.pop %v4907
    %v4912 = vrsqrt.pop %v4908
    %v4913 = vmul.f32 %v4885, %v4909
    %v4914 = vmul.f32 %v4886, %v4910
    %v4915 = vmul.f32 %v4887, %v4911
    %v4916 = vmul.f32 %v4888, %v4912
    %v4918 = vlaneseq
    %v4919 = vshrl.u32 %v4918, 7
    %v4920 = vsub.s32 0, %v4919
    %v4921 = vrot.slane %v4871, %v4920
    %v4923 = vmul.f32 %v4913, %v4921
    %v4924 = vmul.f32 %v4914, %v4921
    %v4925 = vmul.f32 %v4915, %v4921
    %v4926 = vmul.f32 %v4916, %v4921
    %v4928 = vlaneseq
    %v4929 = vshrl.u32 %v4928, 7
    %v4930 = vsub.s32 0, %v4929
    %v4931 = vrot.slane %v4872, %v4930
    %v4933 = vadd.f32 %v4923, %v4931
    %v4934 = vadd.f32 %v4924, %v4931
    %v4935 = vadd.f32 %v4925, %v4931
    %v4936 = vadd.f32 %v4926, %v4931
    %v4937 = vmax.f32 %v4933, %v4934
    %v4938 = vrot.slane %v4937, 4
    %v4939 = vmax.f32 %v4937, %v4938
    %v4940 = vrot.slane %v4939, 2
    %v4941 = vmax.f32 %v4939, %v4940
    %v4942 = vrot.slane %v4941, 1
    %v4943 = vmax.f32 %v4941, %v4942
    %v4944 = vmax.f32 %v4935, %v4936
    %v4945 = vrot.slane %v4944, 4
    %v4946 = vmax.f32 %v4944, %v4945
    %v4947 = vrot.slane %v4946, 2
    %v4948 = vmax.f32 %v4946, %v4947
    %v4949 = vrot.slane %v4948, 1
    %v4950 = vmax.f32 %v4948, %v4949
    %v4951 = vpack.c.bf16 %v4943, %v4943
    %v4952 = vpack.c.bf16 %v4950, %v4950
    %v4953 = vld [vmem:[%s15] sm:$0xf]
    %v4954 = vld [vmem:[%s15 + $0x4] sm:$0xf]
    %v4955 = vld [vmem:[%s15 + $0x8] sm:$0xf]
    %v4956 = vld [vmem:[%s15 + $0xc] sm:$0xf]
    %v4957 = vld [vmem:[%s15 + $0x10] sm:$0xf]
    %v4958 = vld [vmem:[%s15 + $0x14] sm:$0xf]
    %v4959 = vld [vmem:[%s15 + $0x18] sm:$0xf]
    %v4960 = vld [vmem:[%s15 + $0x1c] sm:$0xf]
    %v4961 = vld [vmem:[%s15 + $0x20] sm:$0xf]
    %v4962 = vld [vmem:[%s15 + $0x24] sm:$0xf]
    %v4963 = vld [vmem:[%s15 + $0x28] sm:$0xf]
    %v4964 = vld [vmem:[%s15 + $0x2c] sm:$0xf]
    %v4965 = vld [vmem:[%s15 + $0x30] sm:$0xf]
    %v4966 = vld [vmem:[%s15 + $0x34] sm:$0xf]
    %v4967 = vld [vmem:[%s15 + $0x38] sm:$0xf]
    %v4968 = vld [vmem:[%s15 + $0x3c] sm:$0xf]
    %v4969 = vld [vmem:[%s16] sm:$0x1]
    %v4971 = vlaneseq
    %v4972 = vshrl.u32 %v4971, 7
    %v4973 = vsub.s32 0, %v4972
    %v4974 = vrot.slane %v4969, %v4973
    %v4978 = vunpack.c.l.b16 %v4951
    %v4979 = vunpack.c.l.b16 %v4952
    %vm4980 = vcmask 1041409
    %v4981 = vsel %vm4980, %v4979, %v4978
    %v4982 = vpack.c.b16 %v4981, %v4981
    %v5000 = vunpack.c.l.b16 %v4953
    %v5001 = vunpack.c.l.b16 %v4954
    %v5002 = vunpack.c.l.b16 %v4955
    %v5003 = vunpack.c.l.b16 %v4956
    %v5004 = vunpack.c.l.b16 %v4957
    %v5005 = vunpack.c.l.b16 %v4958
    %v5006 = vunpack.c.l.b16 %v4959
    %v5007 = vunpack.c.l.b16 %v4960
    %v5008 = vunpack.c.l.b16 %v4961
    %v5009 = vunpack.c.l.b16 %v4962
    %v5010 = vunpack.c.l.b16 %v4963
    %v5011 = vunpack.c.l.b16 %v4964
    %v5012 = vunpack.c.l.b16 %v4965
    %v5013 = vunpack.c.l.b16 %v4966
    %v5014 = vunpack.c.l.b16 %v4967
    %v5015 = vunpack.c.l.b16 %v4968
    %v5016 = vpack.c.b16 %v5001, %v5000
    %v5017 = vpack.c.b16 %v5003, %v5002
    %v5018 = vpack.c.b16 %v5005, %v5004
    %v5019 = vpack.c.b16 %v5007, %v5006
    %v5020 = vpack.c.b16 %v5009, %v5008
    %v5021 = vpack.c.b16 %v5011, %v5010
    %v5022 = vpack.c.b16 %v5013, %v5012
    %v5023 = vpack.c.b16 %v5015, %v5014
    %5032 = vmatprep.subr.bf16.mxu0 0
    %5033 = vmatpush1.bf16.msra.mxu0 %v5016
    %5034 = vmatprep.subr.bf16.mxu0 0
    %5035 = vmatpush1.bf16.msra.mxu0 %v5017
    %5036 = vmatprep.subr.bf16.mxu0 0
    %5037 = vmatpush1.bf16.msra.mxu0 %v5018
    %5038 = vmatprep.subr.bf16.mxu0 0
    %5039 = vmatpush1.bf16.msra.mxu0 %v5019
    %5040 = vmatprep.subr.bf16.mxu0 0
    %5041 = vmatpush1.bf16.msra.mxu0 %v5020
    %5042 = vmatprep.subr.bf16.mxu0 0
    %5043 = vmatpush1.bf16.msra.mxu0 %v5021
    %5044 = vmatprep.subr.bf16.mxu0 0
    %5045 = vmatpush1.bf16.msra.mxu0 %v5022
    %5046 = vmatprep.subr.bf16.mxu0 0
    %5047 = vmatpush1.bf16.msra.mxu0 %v5023
    %5048 = vmatprep.subr.bf16.mxu0 0
    %5049 = vmatpush1.bf16.msra.mxu0 0
    %5050 = vmatprep.subr.bf16.mxu0 0
    %5051 = vmatpush1.bf16.msra.mxu0 0
    %5052 = vmatprep.subr.bf16.mxu0 0
    %5053 = vmatpush1.bf16.msra.mxu0 0
    %5054 = vmatprep.subr.bf16.mxu0 0
    %5055 = vmatpush1.bf16.msra.mxu0 0
    %5056 = vmatprep.subr.bf16.mxu0 0
    %5057 = vmatpush1.bf16.msra.mxu0 0
    %5058 = vmatprep.subr.bf16.mxu0 0
    %5059 = vmatpush1.bf16.msra.mxu0 0
    %5060 = vmatprep.subr.bf16.mxu0 0
    %5061 = vmatpush1.bf16.msra.mxu0 0
    %5062 = vmatprep.subr.bf16.mxu0 0
    %5063 = vmatpush1.bf16.msra.mxu0 0
    %5064 = vmatprep.mubr.bf16.mxu0 0
    %5065 = vmatmul.mubr.bf16.gmra.mrb[0].mxu0 %v4982
    %v5066 = vpop.f32.mrb[0].mxu0
    %v5067 = vadd.f32 %v4974, %v5066
    %v5068 = vpop.f32.mrb[0].mxu0
    %v5069 = vpop.f32.mrb[0].mxu0
    %v5070 = vpop.f32.mrb[0].mxu0
    %5071 = vdwg.mxu0
    %5072 = vst [vmem:[#allocation2] sm:$0x3] %v5067
    // Predicated region
    $region70: #{_lambda_.1} parent=1 // pred_check
      _
    $region71: #{_lambda_.1} parent=1 // pred_check_branch
      %5074 = sbr.rel (0) target = $region73
    $region72: #{_lambda_.1} parent=1 // pred_region
      %s5076 = ssub.s32 32, 32
      %5077 = vsyncadd [#allocation3], %s5076
      %s5079 = sshll.u32 [#allocation2], 4
      %s5080 = int_to_ptr.vmem [resolvable:$true] %s5079
      %5082 = dma.vmem_to_hbm [thread:$0]  %s5080, 32, %s17, [#allocation3]
    $region73: #{_lambda_.1} parent=1 // pred_fallthru
      _
    // Predicated region
    $region74: #{_lambda_.1} parent=1 // pred_check
      _
    $region75: #{_lambda_.1} parent=1 // pred_check_branch
      %5084 = sbr.rel (0) target = $region77
    $region76: #{_lambda_.1} parent=1 // pred_region
      %5085 = dma.done [#allocation3], 32
    $region77: #{_lambda_.1} parent=1 // pred_fallthru
      _
    %5086 = vsyncpa [#allocation3], 1

</llo_original>
